<compile_context>
chip_gen: v7x
topology: tpu7x:2x2x1
jax: 0.10.0
libtpu: 0.0.40
codegen_flags: <defaults>
</compile_context>

<pallas_src>
import functools

import jax
import jax.numpy as jnp
from jax import lax
from jax.experimental import pallas as pl
from jax.experimental.pallas import tpu as pltpu

_EPS = 1e-5

_D_IN = 784      # flattened input features
_HID = 16        # fc1 / fc2 / bn width
_CLS = 10        # classes

# Lane-dense padded widths (multiples of 128).
_D_INP = 896     # 784 -> 7*128
_HIDP = 128      # 16  -> 128
_CLSP = 128      # 10  -> 128

_VMEM_LIMIT = 32 * 1024 * 1024


def _round_up(x, m):
    return (x + m - 1) // m * m


# --------------------------------------------------------------------------
# Kernels
# --------------------------------------------------------------------------
def _stage1_kernel(x_ref, w1a_ref, b1a_ref, w1_ref, b1_ref,
                   z1_ref, z1a_ref, sum_ref, sumsq_ref,
                   *, rows_valid, tile_rows):
    """z1 = x@W1a+b1a ; z1a = relu(z1)@W1+b1 ; accumulate BN sum / sumsq."""
    pid = pl.program_id(0)

    @pl.when(pid == 0)
    def _():
        sum_ref[...] = jnp.zeros_like(sum_ref)
        sumsq_ref[...] = jnp.zeros_like(sumsq_ref)

    # fc1a (bf16 MXU, f32 accumulate) + bias + ReLU
    z1 = jnp.dot(x_ref[...], w1a_ref[...],
                 preferred_element_type=jnp.float32) + b1a_ref[...]
    h1 = jnp.maximum(z1, 0.0)

    # fc1
    z1a = jnp.dot(h1.astype(jnp.bfloat16), w1_ref[...],
                  preferred_element_type=jnp.float32) + b1_ref[...]

    z1_ref[...] = z1.astype(jnp.bfloat16)   # bf16 inter-stage activation
    z1a_ref[...] = z1a

    # BatchNorm statistics of relu(z1a); mask out batch-padding rows so they
    # do not dilute the per-channel mean/var.
    h2 = jnp.maximum(z1a, 0.0)
    row = lax.broadcasted_iota(jnp.int32, (tile_rows, 1), 0) + pid * tile_rows
    h2 = jnp.where(row < rows_valid, h2, 0.0)
    sum_ref[...] += jnp.sum(h2, axis=0, keepdims=True)
    sumsq_ref[...] += jnp.sum(h2 * h2, axis=0, keepdims=True)


def _stage2_kernel(z1_ref, z1a_ref, sum_ref, sumsq_ref, g_ref, beta_ref,
                   w2_ref, b2_ref, w3a_ref, w3b_ref, w3c_ref, b3_ref,
                   o_ref, *, rows_valid, eps, n_classes):
    """BN + fc2 + fc3(relu(cat[z1a,z2,z1])) + log_softmax, fused per tile."""
    z1a = z1a_ref[...]                            # (TB, HIDP) f32
    h2 = jnp.maximum(z1a, 0.0)

    inv_n = 1.0 / rows_valid
    mean = sum_ref[...] * inv_n                   # (1, HIDP)
    var = jnp.maximum(sumsq_ref[...] * inv_n - mean * mean, 0.0)
    bn = (h2 - mean) * lax.rsqrt(var + eps) * g_ref[...] + beta_ref[...]

    # fc2
    z2 = jnp.dot(bn.astype(jnp.bfloat16), w2_ref[...],
                 preferred_element_type=jnp.float32) + b2_ref[...]

    # fc3 over relu(cat([z1a, z2, z1])) decomposed into 3 MXU calls so the
    # 816-wide concat never hits HBM or VMEM.
    r1a = jnp.maximum(z1a, 0.0).astype(jnp.bfloat16)
    r2 = jnp.maximum(z2, 0.0).astype(jnp.bfloat16)
    r1 = jnp.maximum(z1_ref[...], 0)              # already bf16
    z3 = (jnp.dot(r1, w3c_ref[...], preferred_element_type=jnp.float32)
          + jnp.dot(r1a, w3a_ref[...], preferred_element_type=jnp.float32)
          + jnp.dot(r2, w3b_ref[...], preferred_element_type=jnp.float32)
          + b3_ref[...])

    # log_softmax over the real class lanes only (padded lanes masked out).
    lane = lax.broadcasted_iota(jnp.int32, z3.shape, 1)
    valid = lane < n_classes
    z3m = jnp.where(valid, z3, -jnp.inf)
    m = jnp.max(z3m, axis=-1, keepdims=True)
    e = jnp.where(valid, jnp.exp(z3 - m), 0.0)
    lse = m + jnp.log(jnp.sum(e, axis=-1, keepdims=True))
    o_ref[...] = z3 - lse


# --------------------------------------------------------------------------
# Wrapper
# --------------------------------------------------------------------------
def _pad2(a, rows, cols):
    return jnp.pad(a, ((0, rows - a.shape[0]), (0, cols - a.shape[1])))


def _pad_row(v, cols):
    return jnp.pad(v, (0, cols - v.shape[0])).reshape(1, cols)


def net16_forward(x, params):
    """Pallas forward pass of Net16.  x: (B, ...) flattened to (B, 784)."""
    B = x.shape[0]
    xf = x.reshape(B, -1).astype(jnp.float32)
    assert xf.shape[1] == _D_IN, xf.shape

    # ---- batch tiling (rows) ------------------------------------------------
    tb = _round_up(B, 16) if B <= 1024 else 512
    bp = _round_up(B, tb)
    n_tiles = bp // tb

    x_p = _pad2(xf, bp, _D_INP).astype(jnp.bfloat16)

    # ---- lane-dense (128-padded), (in,out)-layout weights; bf16 for the MXU -
    w1a = _pad2(params["w1a"], _D_INP, _D_INP).astype(jnp.bfloat16)
    b1a = _pad_row(params["b1a"], _D_INP)
    w1 = _pad2(params["w1"], _D_INP, _HIDP).astype(jnp.bfloat16)
    b1 = _pad_row(params["b1"], _HIDP)
    gamma = _pad_row(params["gamma"], _HIDP)
    beta = _pad_row(params["beta"], _HIDP)
    w2 = _pad2(params["w2"], _HIDP, _HIDP).astype(jnp.bfloat16)
    b2 = _pad_row(params["b2"], _HIDP)
    w3 = params["w3"]                              # (816, 10): [z1a | z2 | z1]
    w3a = _pad2(w3[:_HID], _HIDP, _CLSP).astype(jnp.bfloat16)
    w3b = _pad2(w3[_HID:2 * _HID], _HIDP, _CLSP).astype(jnp.bfloat16)
    w3c = _pad2(w3[2 * _HID:], _D_INP, _CLSP).astype(jnp.bfloat16)
    b3 = _pad_row(params["b3"], _CLSP)

    const = lambda i: (0, 0)
    tiled = lambda i: (i, 0)

    # ---- stage 1: fc1a+ReLU+fc1, BN sum/sumsq accumulated across tiles ------
    z1_p, z1a_p, bn_sum, bn_sumsq = pl.pallas_call(
        functools.partial(_stage1_kernel, rows_valid=B, tile_rows=tb),
        grid=(n_tiles,),
        in_specs=[
            pl.BlockSpec((tb, _D_INP), tiled),        # x
            pl.BlockSpec((_D_INP, _D_INP), const),    # W1a
            pl.BlockSpec((1, _D_INP), const),         # b1a
            pl.BlockSpec((_D_INP, _HIDP), const),     # W1
            pl.BlockSpec((1, _HIDP), const),          # b1
        ],
        out_specs=[
            pl.BlockSpec((tb, _D_INP), tiled),        # z1 (bf16)
            pl.BlockSpec((tb, _HIDP), tiled),         # z1a (f32)
            pl.BlockSpec((1, _HIDP), const),          # BN sum   (accumulator)
            pl.BlockSpec((1, _HIDP), const),          # BN sumsq (accumulator)
        ],
        out_shape=[
            jax.ShapeDtypeStruct((bp, _D_INP), jnp.bfloat16),
            jax.ShapeDtypeStruct((bp, _HIDP), jnp.float32),
            jax.ShapeDtypeStruct((1, _HIDP), jnp.float32),
            jax.ShapeDtypeStruct((1, _HIDP), jnp.float32),
        ],
        compiler_params=pltpu.CompilerParams(
            dimension_semantics=("arbitrary",),       # stats carried over tiles
            vmem_limit_bytes=_VMEM_LIMIT),
        cost_estimate=pl.CostEstimate(
            flops=2 * bp * _D_INP * (_D_INP + _HIDP),
            transcendentals=0,
            bytes_accessed=(2 * _D_INP * _D_INP + 2 * bp * _D_INP * 2
                            + 4 * bp * _HIDP)),
    )(x_p, w1a, b1a, w1, b1)

    # ---- stage 2: BN + fc2 + decomposed fc3 + log_softmax -------------------
    out_p = pl.pallas_call(
        functools.partial(_stage2_kernel, rows_valid=B, eps=_EPS,
                          n_classes=_CLS),
        grid=(n_tiles,),
        in_specs=[
            pl.BlockSpec((tb, _D_INP), tiled),        # z1 (bf16)
            pl.BlockSpec((tb, _HIDP), tiled),         # z1a
            pl.BlockSpec((1, _HIDP), const),          # BN sum
            pl.BlockSpec((1, _HIDP), const),          # BN sumsq
            pl.BlockSpec((1, _HIDP), const),          # gamma
            pl.BlockSpec((1, _HIDP), const),          # beta
            pl.BlockSpec((_HIDP, _HIDP), const),      # W2
            pl.BlockSpec((1, _HIDP), const),          # b2
            pl.BlockSpec((_HIDP, _CLSP), const),      # W3a (z1a rows)
            pl.BlockSpec((_HIDP, _CLSP), const),      # W3b (z2 rows)
            pl.BlockSpec((_D_INP, _CLSP), const),     # W3c (z1 rows)
            pl.BlockSpec((1, _CLSP), const),          # b3
        ],
        out_specs=pl.BlockSpec((tb, _CLSP), tiled),
        out_shape=jax.ShapeDtypeStruct((bp, _CLSP), jnp.float32),
        compiler_params=pltpu.CompilerParams(
            dimension_semantics=("parallel",),
            vmem_limit_bytes=_VMEM_LIMIT),
        cost_estimate=pl.CostEstimate(
            flops=2 * bp * _CLSP * (_D_INP + 3 * _HIDP),
            transcendentals=bp * _CLSP,
            bytes_accessed=(2 * bp * _D_INP + 4 * bp * (_HIDP + _CLSP)
                            + 2 * _D_INP * _CLSP)),
    )(z1_p, z1a_p, bn_sum, bn_sumsq, gamma, beta, w2, b2, w3a, w3b, w3c, b3)

    return out_p[:B, :_CLS]


# --------------------------------------------------------------------------
# Parameters (deterministic; PyTorch Linear-style uniform init, (in,out) layout)
# --------------------------------------------------------------------------
def init_params(key):
    ks = jax.random.split(key, 8)

    def lin(kw, kb, fan_in, fan_out):
        lim = 1.0 / (fan_in ** 0.5)
        w = jax.random.uniform(kw, (fan_in, fan_out), jnp.float32, -lim, lim)
        b = jax.random.uniform(kb, (fan_out,), jnp.float32, -lim, lim)
        return w, b

    w1a, b1a = lin(ks[0], ks[1], _D_IN, _D_IN)       # fc1a: 784 -> 784
    w1, b1 = lin(ks[2], ks[3], _D_IN, _HID)          # fc1 : 784 -> 16
    w2, b2 = lin(ks[4], ks[5], _HID, _HID)           # fc2 : 16  -> 16
    w3, b3 = lin(ks[6], ks[7], _D_IN + 2 * _HID, _CLS)  # fc3: 816 -> 10
    return {
        "w1a": w1a, "b1a": b1a,
        "w1": w1, "b1": b1,
        "w2": w2, "b2": b2,
        "w3": w3, "b3": b3,
        "gamma": jnp.ones((_HID,), jnp.float32),
        "beta": jnp.zeros((_HID,), jnp.float32),
    }


# --------------------------------------------------------------------------
# Pure-JAX reference (same bf16 MXU dot precision, f32 elsewhere)
# --------------------------------------------------------------------------
def net16_reference(x, params):
    xf = x.reshape(x.shape[0], -1).astype(jnp.float32)

    def dot(a, b):
        return jnp.dot(a.astype(jnp.bfloat16), b.astype(jnp.bfloat16),
                       preferred_element_type=jnp.float32)

    z1 = dot(xf, params["w1a"]) + params["b1a"]
    z1a = dot(jax.nn.relu(z1), params["w1"]) + params["b1"]
    h = jax.nn.relu(z1a)
    mean = jnp.mean(h, axis=0, keepdims=True)
    var = jnp.mean(jnp.square(h - mean), axis=0, keepdims=True)
    bn = (h - mean) * lax.rsqrt(var + _EPS) * params["gamma"] + params["beta"]
    z2 = dot(bn, params["w2"]) + params["b2"]
    z4 = jnp.concatenate([z1a, z2, z1], axis=1)
    z3 = dot(jax.nn.relu(z4), params["w3"]) + params["b3"]
    return jax.nn.log_softmax(z3, axis=1)


# --------------------------------------------------------------------------
if __name__ == "__main__":
    key = jax.random.PRNGKey(0)
    k_x, k_p = jax.random.split(key)

    B = 8
    x = jax.random.normal(k_x, (B, 1, 28, 28), jnp.float32)   # flatten -> 784
    params = init_params(k_p)

    out = net16_forward(x, params)
    out = jax.block_until_ready(out)

    ref = net16_reference(x, params)
    assert out.shape == (B, _CLS), out.shape
    max_err = float(jnp.max(jnp.abs(out - ref)))
    assert jnp.allclose(out, ref, atol=1e-2, rtol=1e-2), max_err

    print("KERNEL_OK")
</pallas_src>

<mosaic_0001>
module attributes {stable_mosaic.version = 11 : i64} {
  func.func @_stage1_kernel(%arg0: i32, %arg1: memref<16x896xbf16, #tpu.memory_space<vmem>>, %arg2: memref<896x896xbf16, #tpu.memory_space<vmem>>, %arg3: memref<1x896xf32, #tpu.memory_space<vmem>>, %arg4: memref<896x128xbf16, #tpu.memory_space<vmem>>, %arg5: memref<1x128xf32, #tpu.memory_space<vmem>>, %arg6: memref<16x896xbf16, #tpu.memory_space<vmem>>, %arg7: memref<16x128xf32, #tpu.memory_space<vmem>>, %arg8: memref<1x128xf32, #tpu.memory_space<vmem>>, %arg9: memref<1x128xf32, #tpu.memory_space<vmem>>) attributes {dimension_semantics = [#tpu.dimension_semantics<arbitrary>], iteration_bounds = array<i64: 1>, scalar_prefetch = 0 : i64, scratch_operands = 0 : i64, tpu.core_type = #tpu.core_type<tc>, window_params = [{transform_indices = @transform_0, window_bounds = array<i64: 16, 896>}, {pipeline_mode = #tpu.pipeline_mode<synchronous>, transform_indices = @transform_1, window_bounds = array<i64: 896, 896>}, {pipeline_mode = #tpu.pipeline_mode<synchronous>, transform_indices = @transform_2, window_bounds = array<i64: 1, 896>}, {pipeline_mode = #tpu.pipeline_mode<synchronous>, transform_indices = @transform_3, window_bounds = array<i64: 896, 128>}, {pipeline_mode = #tpu.pipeline_mode<synchronous>, transform_indices = @transform_4, window_bounds = array<i64: 1, 128>}, {transform_indices = @transform_5, window_bounds = array<i64: 16, 896>}, {transform_indices = @transform_6, window_bounds = array<i64: 16, 128>}, {pipeline_mode = #tpu.pipeline_mode<synchronous>, transform_indices = @transform_7, window_bounds = array<i64: 1, 128>}, {pipeline_mode = #tpu.pipeline_mode<synchronous>, transform_indices = @transform_8, window_bounds = array<i64: 1, 128>}]} {
    %c0_i32 = arith.constant 0 : i32
    %0 = arith.cmpi eq, %arg0, %c0_i32 : i32
    %1 = arith.extui %0 : i1 to i32
    %c0_i32_0 = arith.constant 0 : i32
    %2 = arith.cmpi ne, %1, %c0_i32_0 : i32
    scf.if %2 {
      %cst_28 = arith.constant 0.000000e+00 : f32
      %43 = vector.broadcast %cst_28 : f32 to vector<1x128xf32>
      %c0_29 = arith.constant 0 : index
      %c0_30 = arith.constant 0 : index
      %44 = vector.load %arg8[%c0_29, %c0_30] : memref<1x128xf32, #tpu.memory_space<vmem>>, vector<1x128xf32>
      tpu.vector_store %arg8[%c0_29, %c0_30], %43 {strides = array<i32>} : memref<1x128xf32, #tpu.memory_space<vmem>>, vector<1x128xf32>,
      %cst_31 = arith.constant 0.000000e+00 : f32
      %45 = vector.broadcast %cst_31 : f32 to vector<1x128xf32>
      %c0_32 = arith.constant 0 : index
      %c0_33 = arith.constant 0 : index
      %46 = vector.load %arg9[%c0_32, %c0_33] : memref<1x128xf32, #tpu.memory_space<vmem>>, vector<1x128xf32>
      tpu.vector_store %arg9[%c0_32, %c0_33], %45 {strides = array<i32>} : memref<1x128xf32, #tpu.memory_space<vmem>>, vector<1x128xf32>,
    } else {
    }
    %c0 = arith.constant 0 : index
    %c0_1 = arith.constant 0 : index
    %3 = vector.load %arg1[%c0, %c0_1] : memref<16x896xbf16, #tpu.memory_space<vmem>>, vector<16x896xbf16>
    %c0_2 = arith.constant 0 : index
    %c0_3 = arith.constant 0 : index
    %4 = vector.load %arg2[%c0_2, %c0_3] : memref<896x896xbf16, #tpu.memory_space<vmem>>, vector<896x896xbf16>
    %cst = arith.constant dense<0.000000e+00> : vector<16x896xf32>
    %5 = tpu.matmul %3, %4, %cst {dimension_numbers = #tpu.dot_dimension_numbers<[1], [0], [0], [1], [0, 0, 1, 1], [], []>} : vector<16x896xbf16>, vector<896x896xbf16>, vector<16x896xf32> -> vector<16x896xf32>
    %c0_4 = arith.constant 0 : index
    %c0_5 = arith.constant 0 : index
    %6 = vector.load %arg3[%c0_4, %c0_5] : memref<1x896xf32, #tpu.memory_space<vmem>>, vector<1x896xf32>
    %7 = vector.broadcast %6 : vector<1x896xf32> to vector<16x896xf32>
    %8 = arith.addf %5, %7 : vector<16x896xf32>
    %cst_6 = arith.constant 0.000000e+00 : f32
    %9 = vector.broadcast %cst_6 : f32 to vector<16x896xf32>
    %10 = arith.maximumf %8, %9 : vector<16x896xf32>
    %11 = arith.truncf %10 : vector<16x896xf32> to vector<16x896xbf16>
    %c0_7 = arith.constant 0 : index
    %c0_8 = arith.constant 0 : index
    %12 = vector.load %arg4[%c0_7, %c0_8] : memref<896x128xbf16, #tpu.memory_space<vmem>>, vector<896x128xbf16>
    %cst_9 = arith.constant dense<0.000000e+00> : vector<16x128xf32>
    %13 = tpu.matmul %11, %12, %cst_9 {dimension_numbers = #tpu.dot_dimension_numbers<[1], [0], [0], [1], [0, 0, 1, 1], [], []>} : vector<16x896xbf16>, vector<896x128xbf16>, vector<16x128xf32> -> vector<16x128xf32>
    %c0_10 = arith.constant 0 : index
    %c0_11 = arith.constant 0 : index
    %14 = vector.load %arg5[%c0_10, %c0_11] : memref<1x128xf32, #tpu.memory_space<vmem>>, vector<1x128xf32>
    %15 = vector.broadcast %14 : vector<1x128xf32> to vector<16x128xf32>
    %16 = arith.addf %13, %15 : vector<16x128xf32>
    %17 = arith.truncf %8 : vector<16x896xf32> to vector<16x896xbf16>
    %c0_12 = arith.constant 0 : index
    %c0_13 = arith.constant 0 : index
    %18 = vector.load %arg6[%c0_12, %c0_13] : memref<16x896xbf16, #tpu.memory_space<vmem>>, vector<16x896xbf16>
    tpu.vector_store %arg6[%c0_12, %c0_13], %17 {strides = array<i32>} : memref<16x896xbf16, #tpu.memory_space<vmem>>, vector<16x896xbf16>,
    %c0_14 = arith.constant 0 : index
    %c0_15 = arith.constant 0 : index
    %19 = vector.load %arg7[%c0_14, %c0_15] : memref<16x128xf32, #tpu.memory_space<vmem>>, vector<16x128xf32>
    tpu.vector_store %arg7[%c0_14, %c0_15], %16 {strides = array<i32>} : memref<16x128xf32, #tpu.memory_space<vmem>>, vector<16x128xf32>,
    %cst_16 = arith.constant 0.000000e+00 : f32
    %20 = vector.broadcast %cst_16 : f32 to vector<16x128xf32>
    %21 = arith.maximumf %16, %20 : vector<16x128xf32>
    %22 = tpu.iota {dimensions = array<i32: 0>} : vector<16x1xi32>
    %c16_i32 = arith.constant 16 : i32
    %23 = arith.muli %arg0, %c16_i32 : i32
    %24 = vector.broadcast %23 : i32 to vector<16x1xi32>
    %25 = arith.addi %22, %24 : vector<16x1xi32>
    %c8_i32 = arith.constant 8 : i32
    %26 = vector.broadcast %c8_i32 : i32 to vector<16x1xi32>
    %27 = arith.cmpi slt, %25, %26 : vector<16x1xi32>
    %cst_17 = arith.constant 0.000000e+00 : f32
    %28 = vector.shape_cast %27 : vector<16x1xi1> to vector<16x1xi1>
    %29 = vector.broadcast %28 : vector<16x1xi1> to vector<16x128xi1>
    %30 = vector.broadcast %cst_17 : f32 to vector<16x128xf32>
    %31 = arith.select %29, %21, %30 : vector<16x128xi1>, vector<16x128xf32>
    %c0_18 = arith.constant 0 : index
    %c0_19 = arith.constant 0 : index
    %32 = vector.load %arg8[%c0_18, %c0_19] : memref<1x128xf32, #tpu.memory_space<vmem>>, vector<1x128xf32>
    %cst_20 = arith.constant dense<0.000000e+00> : vector<128xf32>
    %33 = vector.multi_reduction <add>, %31, %cst_20 [0] : vector<16x128xf32> to vector<128xf32>
    %34 = vector.shape_cast %33 : vector<128xf32> to vector<1x128xf32>
    %35 = arith.addf %32, %34 : vector<1x128xf32>
    %c0_21 = arith.constant 0 : index
    %c0_22 = arith.constant 0 : index
    %36 = vector.load %arg8[%c0_21, %c0_22] : memref<1x128xf32, #tpu.memory_space<vmem>>, vector<1x128xf32>
    tpu.vector_store %arg8[%c0_21, %c0_22], %35 {strides = array<i32>} : memref<1x128xf32, #tpu.memory_space<vmem>>, vector<1x128xf32>,
    %c0_23 = arith.constant 0 : index
    %c0_24 = arith.constant 0 : index
    %37 = vector.load %arg9[%c0_23, %c0_24] : memref<1x128xf32, #tpu.memory_space<vmem>>, vector<1x128xf32>
    %38 = arith.mulf %31, %31 : vector<16x128xf32>
    %cst_25 = arith.constant dense<0.000000e+00> : vector<128xf32>
    %39 = vector.multi_reduction <add>, %38, %cst_25 [0] : vector<16x128xf32> to vector<128xf32>
    %40 = vector.shape_cast %39 : vector<128xf32> to vector<1x128xf32>
    %41 = arith.addf %37, %40 : vector<1x128xf32>
    %c0_26 = arith.constant 0 : index
    %c0_27 = arith.constant 0 : index
    %42 = vector.load %arg9[%c0_26, %c0_27] : memref<1x128xf32, #tpu.memory_space<vmem>>, vector<1x128xf32>
    tpu.vector_store %arg9[%c0_26, %c0_27], %41 {strides = array<i32>} : memref<1x128xf32, #tpu.memory_space<vmem>>, vector<1x128xf32>,
    return
  }
  func.func @transform_0(%arg0: i32) -> (i32, i32) {
    %c0_i32 = arith.constant 0 : i32
    %c0_i32_0 = arith.constant 0 : i32
    return %arg0, %c0_i32 : i32, i32
  }
  func.func @transform_1(%arg0: i32) -> (i32, i32) {
    %c0_i32 = arith.constant 0 : i32
    %c0_i32_0 = arith.constant 0 : i32
    %c0_i32_1 = arith.constant 0 : i32
    return %c0_i32, %c0_i32_0 : i32, i32
  }
  func.func @transform_2(%arg0: i32) -> (i32, i32) {
    %c0_i32 = arith.constant 0 : i32
    %c0_i32_0 = arith.constant 0 : i32
    %c0_i32_1 = arith.constant 0 : i32
    return %c0_i32, %c0_i32_0 : i32, i32
  }
  func.func @transform_3(%arg0: i32) -> (i32, i32) {
    %c0_i32 = arith.constant 0 : i32
    %c0_i32_0 = arith.constant 0 : i32
    %c0_i32_1 = arith.constant 0 : i32
    return %c0_i32, %c0_i32_0 : i32, i32
  }
  func.func @transform_4(%arg0: i32) -> (i32, i32) {
    %c0_i32 = arith.constant 0 : i32
    %c0_i32_0 = arith.constant 0 : i32
    %c0_i32_1 = arith.constant 0 : i32
    return %c0_i32, %c0_i32_0 : i32, i32
  }
  func.func @transform_5(%arg0: i32) -> (i32, i32) {
    %c0_i32 = arith.constant 0 : i32
    %c0_i32_0 = arith.constant 0 : i32
    return %arg0, %c0_i32 : i32, i32
  }
  func.func @transform_6(%arg0: i32) -> (i32, i32) {
    %c0_i32 = arith.constant 0 : i32
    %c0_i32_0 = arith.constant 0 : i32
    return %arg0, %c0_i32 : i32, i32
  }
  func.func @transform_7(%arg0: i32) -> (i32, i32) {
    %c0_i32 = arith.constant 0 : i32
    %c0_i32_0 = arith.constant 0 : i32
    %c0_i32_1 = arith.constant 0 : i32
    return %c0_i32, %c0_i32_0 : i32, i32
  }
  func.func @transform_8(%arg0: i32) -> (i32, i32) {
    %c0_i32 = arith.constant 0 : i32
    %c0_i32_0 = arith.constant 0 : i32
    %c0_i32_1 = arith.constant 0 : i32
    return %c0_i32, %c0_i32_0 : i32, i32
  }
}

</mosaic_0001>

<llo_original>
// kernel: tpu_custom_call.1
$region0: #{tpu_custom_call.1}
  #allocation0 [shape = 'u32[]', space=smem, size = 0x4, offset = 0x4, fixed_abs, tag = 'smem constant byte address 0x4 - core index']
  #allocation1 [shape = 'u32[144,128]{1,0:T(1,128)}', space=vmem, size = 0x12000, scoped, tag = 'internal scratch']
  %s0 = inlined_call_operand.hbm [shape: bf16[16,896], index: 0, kind: input, shape index: {}]
  %s1 = inlined_call_operand.hbm [shape: bf16[896,896], index: 1, kind: input, shape index: {}]
  %s2 = inlined_call_operand.hbm [shape: f32[1,896], index: 2, kind: input, shape index: {}]
  %s3 = inlined_call_operand.hbm [shape: bf16[896,128], index: 3, kind: input, shape index: {}]
  %s4 = inlined_call_operand.hbm [shape: f32[1,128], index: 4, kind: input, shape index: {}]
  %s5 = inlined_call_operand.hbm [shape: bf16[16,896], index: 5, kind: output, shape index: {0}]
  %s6 = inlined_call_operand.hbm [shape: f32[16,128], index: 6, kind: output, shape index: {1}]
  %s7 = inlined_call_operand.hbm [shape: f32[1,128], index: 7, kind: output, shape index: {2}]
  %s8 = inlined_call_operand.hbm [shape: f32[1,128], index: 8, kind: output, shape index: {3}]
  %9 = xla_tuple %s5, %s6, %s7, %s8
  %s10 = sld [smem:[#allocation0]]
  $region78: #{tpu_custom_call.1} parent=0
    _
  %s12 = ssub.s32 1, %s10
  %s13 = scalar_select 0, %s12, %s10
  $region1: #{tpu_custom_call.1} parent=0
    #allocation2 [shape = 'u8[28672]{0}', space=vmem, size = 0x7000, scoped, tag = 'input window, operand 0, single buffered']
    #allocation3 [shape = 's32[1]{0}', space=sflag, size = 0x4, scoped, tag = 'scoped memory for tpu_custom_call.1']
    #allocation4 [shape = 's32[1]{0}', space=sflag, size = 0x4, scoped, tag = 'scoped memory for tpu_custom_call.1']
    #allocation5 [shape = 'u8[1605632]{0}', space=vmem, size = 0x188000, scoped, tag = 'input window, operand 1, single buffered']
    #allocation6 [shape = 's32[1]{0}', space=sflag, size = 0x4, scoped, tag = 'scoped memory for tpu_custom_call.1']
    #allocation7 [shape = 'u8[3584]{0}', space=vmem, size = 0x1000, scoped, tag = 'input window, operand 2, single buffered']
    #allocation8 [shape = 'u8[229376]{0}', space=vmem, size = 0x38000, scoped, tag = 'input window, operand 3, single buffered']
    #allocation9 [shape = 's32[1]{0}', space=sflag, size = 0x4, scoped, tag = 'scoped memory for tpu_custom_call.1']
    #allocation10 [shape = 'u8[512]{0}', space=vmem, size = 0x400, scoped, tag = 'input window, operand 4, single buffered']
    #allocation11 [shape = 'u8[28672]{0}', space=vmem, size = 0x7000, scoped, tag = 'output window, operand 0, single buffered']
    #allocation12 [shape = 'u8[8192]{0}', space=vmem, size = 0x2000, scoped, tag = 'output window, operand 1, single buffered']
    #allocation13 [shape = 's32[1]{0}', space=sflag, size = 0x4, scoped, tag = 'scoped memory for tpu_custom_call.1']
    #allocation14 [shape = 'u8[512]{0}', space=vmem, size = 0x400, scoped, tag = 'output window, operand 2, single buffered']
    #allocation15 [shape = 'u8[512]{0}', space=vmem, size = 0x400, scoped, tag = 'output window, operand 3, single buffered']
    #allocation16 [shape = 's32[1]{0}', space=sflag, size = 0x4, scoped, tag = 'scoped memory for tpu_custom_call.1']
    %14 = vsyncpa [#allocation3], 0
    %15 = vsyncpa [#allocation6], 0
    %16 = vsyncpa [#allocation9], 0
    %17 = vsyncpa [#allocation4], 0
    %18 = vsyncpa [#allocation13], 0
    %19 = vsyncpa [#allocation16], 0
    // Predicated region
    $region2: #{tpu_custom_call.1} parent=1 // pred_check
      _
    $region3: #{tpu_custom_call.1} parent=1 // pred_check_branch
      %21 = sbr.rel (0) target = $region5
    $region4: #{tpu_custom_call.1} parent=1 // pred_region
      %s23 = ssub.s32 896, 896
      %24 = vsyncadd [#allocation3], %s23
      %s25 = sshll.u32 [#allocation2], 4
      %s26 = int_to_ptr.vmem [resolvable:$true] %s25
      %31 = dma.hbm_to_vmem [thread:$0]  %s0, 896, %s26, [#allocation3], 448, 448, 28
    $region5: #{tpu_custom_call.1} parent=1 // pred_fallthru
      _
    // Predicated region
    $region6: #{tpu_custom_call.1} parent=1 // pred_check
      _
    $region7: #{tpu_custom_call.1} parent=1 // pred_check_branch
      %33 = sbr.rel (0) target = $region9
    $region8: #{tpu_custom_call.1} parent=1 // pred_region
      %s35 = ssub.s32 50176, 50176
      %36 = vsyncadd [#allocation6], %s35
      %s37 = sshll.u32 [#allocation5], 4
      %s38 = int_to_ptr.vmem [resolvable:$true] %s37
      %43 = dma.hbm_to_vmem [thread:$0]  %s1, 50176, %s38, [#allocation6], 448, 448, 28
    $region9: #{tpu_custom_call.1} parent=1 // pred_fallthru
      _
    // Predicated region
    $region10: #{tpu_custom_call.1} parent=1 // pred_check
      _
    $region11: #{tpu_custom_call.1} parent=1 // pred_check_branch
      %45 = sbr.rel (0) target = $region13
    $region12: #{tpu_custom_call.1} parent=1 // pred_region
      %s47 = ssub.s32 112, 112
      %48 = vsyncadd [#allocation6], %s47
      %s50 = sshll.u32 [#allocation7], 4
      %s51 = int_to_ptr.vmem [resolvable:$true] %s50
      %53 = dma.hbm_to_vmem [thread:$0]  %s2, 112, %s51, [#allocation6]
    $region13: #{tpu_custom_call.1} parent=1 // pred_fallthru
      _
    // Predicated region
    $region14: #{tpu_custom_call.1} parent=1 // pred_check
      _
    $region15: #{tpu_custom_call.1} parent=1 // pred_check_branch
      %55 = sbr.rel (0) target = $region17
    $region16: #{tpu_custom_call.1} parent=1 // pred_region
      %s57 = ssub.s32 7168, 7168
      %58 = vsyncadd [#allocation9], %s57
      %s59 = sshll.u32 [#allocation8], 4
      %s60 = int_to_ptr.vmem [resolvable:$true] %s59
      %65 = dma.hbm_to_vmem [thread:$0]  %s3, 7168, %s60, [#allocation9], 64, 64, 4
    $region17: #{tpu_custom_call.1} parent=1 // pred_fallthru
      _
    // Predicated region
    $region18: #{tpu_custom_call.1} parent=1 // pred_check
      _
    $region19: #{tpu_custom_call.1} parent=1 // pred_check_branch
      %67 = sbr.rel (0) target = $region21
    $region20: #{tpu_custom_call.1} parent=1 // pred_region
      %s69 = ssub.s32 16, 16
      %70 = vsyncadd [#allocation9], %s69
      %s72 = sshll.u32 [#allocation10], 4
      %s73 = int_to_ptr.vmem [resolvable:$true] %s72
      %75 = dma.hbm_to_vmem [thread:$0]  %s4, 16, %s73, [#allocation9]
    $region21: #{tpu_custom_call.1} parent=1 // pred_fallthru
      _
    // Predicated region
    $region22: #{tpu_custom_call.1} parent=1 // pred_check
      _
    $region23: #{tpu_custom_call.1} parent=1 // pred_check_branch
      %77 = sbr.rel (0) target = $region25
    $region24: #{tpu_custom_call.1} parent=1 // pred_region
      %78 = dma.done [#allocation3], 896
    $region25: #{tpu_custom_call.1} parent=1 // pred_fallthru
      _
    // Predicated region
    $region26: #{tpu_custom_call.1} parent=1 // pred_check
      _
    $region27: #{tpu_custom_call.1} parent=1 // pred_check_branch
      %80 = sbr.rel (0) target = $region29
    $region28: #{tpu_custom_call.1} parent=1 // pred_region
      %81 = dma.done [#allocation6], 50176
    $region29: #{tpu_custom_call.1} parent=1 // pred_fallthru
      _
    // Predicated region
    $region30: #{tpu_custom_call.1} parent=1 // pred_check
      _
    $region31: #{tpu_custom_call.1} parent=1 // pred_check_branch
      %83 = sbr.rel (0) target = $region33
    $region32: #{tpu_custom_call.1} parent=1 // pred_region
      %84 = dma.done [#allocation6], 112
    $region33: #{tpu_custom_call.1} parent=1 // pred_fallthru
      _
    // Predicated region
    $region34: #{tpu_custom_call.1} parent=1 // pred_check
      _
    $region35: #{tpu_custom_call.1} parent=1 // pred_check_branch
      %86 = sbr.rel (0) target = $region37
    $region36: #{tpu_custom_call.1} parent=1 // pred_region
      %87 = dma.done [#allocation9], 7168
    $region37: #{tpu_custom_call.1} parent=1 // pred_fallthru
      _
    // Predicated region
    $region38: #{tpu_custom_call.1} parent=1 // pred_check
      _
    $region39: #{tpu_custom_call.1} parent=1 // pred_check_branch
      %89 = sbr.rel (0) target = $region41
    $region40: #{tpu_custom_call.1} parent=1 // pred_region
      %90 = dma.done [#allocation9], 16
    $region41: #{tpu_custom_call.1} parent=1 // pred_fallthru
      _
    %p92 = scmp.eq.s32.totalorder 0, 0
    // Predicated region
    $region42: #{tpu_custom_call.1} parent=1 // pred_check
      %p93 = pneg %p92
    $region43: #{tpu_custom_call.1} parent=1 // pred_check_branch
      %95 = sbr.rel (%p93) target = $region45
    $region44: #{tpu_custom_call.1} parent=1 // pred_region
      %96 = vst [vmem:[#allocation14] sm:$0x1] 0.0
      %97 = vst [vmem:[#allocation15] sm:$0x1] 0.0
    $region45: #{tpu_custom_call.1} parent=1 // pred_fallthru
      _
    %v98 = vld [vmem:[#allocation2] sm:$0xff]
    %v99 = vld [vmem:[#allocation2 + $0x8] sm:$0xff]
    %v100 = vld [vmem:[#allocation2 + $0x10] sm:$0xff]
    %v101 = vld [vmem:[#allocation2 + $0x18] sm:$0xf]
    %v102 = vld [vmem:[#allocation2 + $0x1c] sm:$0xff]
    %v103 = vld [vmem:[#allocation2 + $0x24] sm:$0xff]
    %v104 = vld [vmem:[#allocation2 + $0x2c] sm:$0xff]
    %v105 = vld [vmem:[#allocation2 + $0x34] sm:$0xf]
    %v106 = vld [vmem:[#allocation5] sm:$0xff]
    %v107 = vld [vmem:[#allocation5 + $0x8] sm:$0xff]
    %v108 = vld [vmem:[#allocation5 + $0x10] sm:$0xff]
    %v109 = vld [vmem:[#allocation5 + $0x18] sm:$0xf]
    %v110 = vld [vmem:[#allocation5 + $0x1c] sm:$0xff]
    %v111 = vld [vmem:[#allocation5 + $0x24] sm:$0xff]
    %v112 = vld [vmem:[#allocation5 + $0x2c] sm:$0xff]
    %v113 = vld [vmem:[#allocation5 + $0x34] sm:$0xf]
    %v114 = vld [vmem:[#allocation5 + $0x38] sm:$0xff]
    %v115 = vld [vmem:[#allocation5 + $0x40] sm:$0xff]
    %v116 = vld [vmem:[#allocation5 + $0x48] sm:$0xff]
    %v117 = vld [vmem:[#allocation5 + $0x50] sm:$0xf]
    %v118 = vld [vmem:[#allocation5 + $0x54] sm:$0xff]
    %v119 = vld [vmem:[#allocation5 + $0x5c] sm:$0xff]
    %v120 = vld [vmem:[#allocation5 + $0x64] sm:$0xff]
    %v121 = vld [vmem:[#allocation5 + $0x6c] sm:$0xf]
    %v122 = vld [vmem:[#allocation5 + $0x70] sm:$0xff]
    %v123 = vld [vmem:[#allocation5 + $0x78] sm:$0xff]
    %v124 = vld [vmem:[#allocation5 + $0x80] sm:$0xff]
    %v125 = vld [vmem:[#allocation5 + $0x88] sm:$0xf]
    %v126 = vld [vmem:[#allocation5 + $0x8c] sm:$0xff]
    %v127 = vld [vmem:[#allocation5 + $0x94] sm:$0xff]
    %v128 = vld [vmem:[#allocation5 + $0x9c] sm:$0xff]
    %v129 = vld [vmem:[#allocation5 + $0xa4] sm:$0xf]
    %v130 = vld [vmem:[#allocation5 + $0xa8] sm:$0xff]
    %v131 = vld [vmem:[#allocation5 + $0xb0] sm:$0xff]
    %v132 = vld [vmem:[#allocation5 + $0xb8] sm:$0xff]
    %v133 = vld [vmem:[#allocation5 + $0xc0] sm:$0xf]
    %v134 = vld [vmem:[#allocation5 + $0xc4] sm:$0xff]
    %v135 = vld [vmem:[#allocation5 + $0xcc] sm:$0xff]
    %v136 = vld [vmem:[#allocation5 + $0xd4] sm:$0xff]
    %v137 = vld [vmem:[#allocation5 + $0xdc] sm:$0xf]
    %v138 = vld [vmem:[#allocation5 + $0xe0] sm:$0xff]
    %v139 = vld [vmem:[#allocation5 + $0xe8] sm:$0xff]
    %v140 = vld [vmem:[#allocation5 + $0xf0] sm:$0xff]
    %v141 = vld [vmem:[#allocation5 + $0xf8] sm:$0xf]
    %v142 = vld [vmem:[#allocation5 + $0xfc] sm:$0xff]
    %v143 = vld [vmem:[#allocation5 + $0x104] sm:$0xff]
    %v144 = vld [vmem:[#allocation5 + $0x10c] sm:$0xff]
    %v145 = vld [vmem:[#allocation5 + $0x114] sm:$0xf]
    %v146 = vld [vmem:[#allocation5 + $0x118] sm:$0xff]
    %v147 = vld [vmem:[#allocation5 + $0x120] sm:$0xff]
    %v148 = vld [vmem:[#allocation5 + $0x128] sm:$0xff]
    %v149 = vld [vmem:[#allocation5 + $0x130] sm:$0xf]
    %v150 = vld [vmem:[#allocation5 + $0x134] sm:$0xff]
    %v151 = vld [vmem:[#allocation5 + $0x13c] sm:$0xff]
    %v152 = vld [vmem:[#allocation5 + $0x144] sm:$0xff]
    %v153 = vld [vmem:[#allocation5 + $0x14c] sm:$0xf]
    %v154 = vld [vmem:[#allocation5 + $0x150] sm:$0xff]
    %v155 = vld [vmem:[#allocation5 + $0x158] sm:$0xff]
    %v156 = vld [vmem:[#allocation5 + $0x160] sm:$0xff]
    %v157 = vld [vmem:[#allocation5 + $0x168] sm:$0xf]
    %v158 = vld [vmem:[#allocation5 + $0x16c] sm:$0xff]
    %v159 = vld [vmem:[#allocation5 + $0x174] sm:$0xff]
    %v160 = vld [vmem:[#allocation5 + $0x17c] sm:$0xff]
    %v161 = vld [vmem:[#allocation5 + $0x184] sm:$0xf]
    %v162 = vld [vmem:[#allocation5 + $0x188] sm:$0xff]
    %v163 = vld [vmem:[#allocation5 + $0x190] sm:$0xff]
    %v164 = vld [vmem:[#allocation5 + $0x198] sm:$0xff]
    %v165 = vld [vmem:[#allocation5 + $0x1a0] sm:$0xf]
    %v166 = vld [vmem:[#allocation5 + $0x1a4] sm:$0xff]
    %v167 = vld [vmem:[#allocation5 + $0x1ac] sm:$0xff]
    %v168 = vld [vmem:[#allocation5 + $0x1b4] sm:$0xff]
    %v169 = vld [vmem:[#allocation5 + $0x1bc] sm:$0xf]
    %v170 = vld [vmem:[#allocation5 + $0x1c0] sm:$0xff]
    %v171 = vld [vmem:[#allocation5 + $0x1c8] sm:$0xff]
    %v172 = vld [vmem:[#allocation5 + $0x1d0] sm:$0xff]
    %v173 = vld [vmem:[#allocation5 + $0x1d8] sm:$0xf]
    %v174 = vld [vmem:[#allocation5 + $0x1dc] sm:$0xff]
    %v175 = vld [vmem:[#allocation5 + $0x1e4] sm:$0xff]
    %v176 = vld [vmem:[#allocation5 + $0x1ec] sm:$0xff]
    %v177 = vld [vmem:[#allocation5 + $0x1f4] sm:$0xf]
    %v178 = vld [vmem:[#allocation5 + $0x1f8] sm:$0xff]
    %v179 = vld [vmem:[#allocation5 + $0x200] sm:$0xff]
    %v180 = vld [vmem:[#allocation5 + $0x208] sm:$0xff]
    %v181 = vld [vmem:[#allocation5 + $0x210] sm:$0xf]
    %v182 = vld [vmem:[#allocation5 + $0x214] sm:$0xff]
    %v183 = vld [vmem:[#allocation5 + $0x21c] sm:$0xff]
    %v184 = vld [vmem:[#allocation5 + $0x224] sm:$0xff]
    %v185 = vld [vmem:[#allocation5 + $0x22c] sm:$0xf]
    %v186 = vld [vmem:[#allocation5 + $0x230] sm:$0xff]
    %v187 = vld [vmem:[#allocation5 + $0x238] sm:$0xff]
    %v188 = vld [vmem:[#allocation5 + $0x240] sm:$0xff]
    %v189 = vld [vmem:[#allocation5 + $0x248] sm:$0xf]
    %v190 = vld [vmem:[#allocation5 + $0x24c] sm:$0xff]
    %v191 = vld [vmem:[#allocation5 + $0x254] sm:$0xff]
    %v192 = vld [vmem:[#allocation5 + $0x25c] sm:$0xff]
    %v193 = vld [vmem:[#allocation5 + $0x264] sm:$0xf]
    %v194 = vld [vmem:[#allocation5 + $0x268] sm:$0xff]
    %v195 = vld [vmem:[#allocation5 + $0x270] sm:$0xff]
    %v196 = vld [vmem:[#allocation5 + $0x278] sm:$0xff]
    %v197 = vld [vmem:[#allocation5 + $0x280] sm:$0xf]
    %v198 = vld [vmem:[#allocation5 + $0x284] sm:$0xff]
    %v199 = vld [vmem:[#allocation5 + $0x28c] sm:$0xff]
    %v200 = vld [vmem:[#allocation5 + $0x294] sm:$0xff]
    %v201 = vld [vmem:[#allocation5 + $0x29c] sm:$0xf]
    %v202 = vld [vmem:[#allocation5 + $0x2a0] sm:$0xff]
    %v203 = vld [vmem:[#allocation5 + $0x2a8] sm:$0xff]
    %v204 = vld [vmem:[#allocation5 + $0x2b0] sm:$0xff]
    %v205 = vld [vmem:[#allocation5 + $0x2b8] sm:$0xf]
    %v206 = vld [vmem:[#allocation5 + $0x2bc] sm:$0xff]
    %v207 = vld [vmem:[#allocation5 + $0x2c4] sm:$0xff]
    %v208 = vld [vmem:[#allocation5 + $0x2cc] sm:$0xff]
    %v209 = vld [vmem:[#allocation5 + $0x2d4] sm:$0xf]
    %v210 = vld [vmem:[#allocation5 + $0x2d8] sm:$0xff]
    %v211 = vld [vmem:[#allocation5 + $0x2e0] sm:$0xff]
    %v212 = vld [vmem:[#allocation5 + $0x2e8] sm:$0xff]
    %v213 = vld [vmem:[#allocation5 + $0x2f0] sm:$0xf]
    %v214 = vld [vmem:[#allocation5 + $0x2f4] sm:$0xff]
    %v215 = vld [vmem:[#allocation5 + $0x2fc] sm:$0xff]
    %v216 = vld [vmem:[#allocation5 + $0x304] sm:$0xff]
    %v217 = vld [vmem:[#allocation5 + $0x30c] sm:$0xf]
    %v218 = vld [vmem:[#allocation5 + $0x310] sm:$0xff]
    %v219 = vld [vmem:[#allocation5 + $0x318] sm:$0xff]
    %v220 = vld [vmem:[#allocation5 + $0x320] sm:$0xff]
    %v221 = vld [vmem:[#allocation5 + $0x328] sm:$0xf]
    %v222 = vld [vmem:[#allocation5 + $0x32c] sm:$0xff]
    %v223 = vld [vmem:[#allocation5 + $0x334] sm:$0xff]
    %v224 = vld [vmem:[#allocation5 + $0x33c] sm:$0xff]
    %v225 = vld [vmem:[#allocation5 + $0x344] sm:$0xf]
    %v226 = vld [vmem:[#allocation5 + $0x348] sm:$0xff]
    %v227 = vld [vmem:[#allocation5 + $0x350] sm:$0xff]
    %v228 = vld [vmem:[#allocation5 + $0x358] sm:$0xff]
    %v229 = vld [vmem:[#allocation5 + $0x360] sm:$0xf]
    %v230 = vld [vmem:[#allocation5 + $0x364] sm:$0xff]
    %v231 = vld [vmem:[#allocation5 + $0x36c] sm:$0xff]
    %v232 = vld [vmem:[#allocation5 + $0x374] sm:$0xff]
    %v233 = vld [vmem:[#allocation5 + $0x37c] sm:$0xf]
    %v234 = vld [vmem:[#allocation5 + $0x380] sm:$0xff]
    %v235 = vld [vmem:[#allocation5 + $0x388] sm:$0xff]
    %v236 = vld [vmem:[#allocation5 + $0x390] sm:$0xff]
    %v237 = vld [vmem:[#allocation5 + $0x398] sm:$0xf]
    %v238 = vld [vmem:[#allocation5 + $0x39c] sm:$0xff]
    %v239 = vld [vmem:[#allocation5 + $0x3a4] sm:$0xff]
    %v240 = vld [vmem:[#allocation5 + $0x3ac] sm:$0xff]
    %v241 = vld [vmem:[#allocation5 + $0x3b4] sm:$0xf]
    %v242 = vld [vmem:[#allocation5 + $0x3b8] sm:$0xff]
    %v243 = vld [vmem:[#allocation5 + $0x3c0] sm:$0xff]
    %v244 = vld [vmem:[#allocation5 + $0x3c8] sm:$0xff]
    %v245 = vld [vmem:[#allocation5 + $0x3d0] sm:$0xf]
    %v246 = vld [vmem:[#allocation5 + $0x3d4] sm:$0xff]
    %v247 = vld [vmem:[#allocation5 + $0x3dc] sm:$0xff]
    %v248 = vld [vmem:[#allocation5 + $0x3e4] sm:$0xff]
    %v249 = vld [vmem:[#allocation5 + $0x3ec] sm:$0xf]
    %v250 = vld [vmem:[#allocation5 + $0x3f0] sm:$0xff]
    %v251 = vld [vmem:[#allocation5 + $0x3f8] sm:$0xff]
    %v252 = vld [vmem:[#allocation5 + $0x400] sm:$0xff]
    %v253 = vld [vmem:[#allocation5 + $0x408] sm:$0xf]
    %v254 = vld [vmem:[#allocation5 + $0x40c] sm:$0xff]
    %v255 = vld [vmem:[#allocation5 + $0x414] sm:$0xff]
    %v256 = vld [vmem:[#allocation5 + $0x41c] sm:$0xff]
    %v257 = vld [vmem:[#allocation5 + $0x424] sm:$0xf]
    %v258 = vld [vmem:[#allocation5 + $0x428] sm:$0xff]
    %v259 = vld [vmem:[#allocation5 + $0x430] sm:$0xff]
    %v260 = vld [vmem:[#allocation5 + $0x438] sm:$0xff]
    %v261 = vld [vmem:[#allocation5 + $0x440] sm:$0xf]
    %v262 = vld [vmem:[#allocation5 + $0x444] sm:$0xff]
    %v263 = vld [vmem:[#allocation5 + $0x44c] sm:$0xff]
    %v264 = vld [vmem:[#allocation5 + $0x454] sm:$0xff]
    %v265 = vld [vmem:[#allocation5 + $0x45c] sm:$0xf]
    %v266 = vld [vmem:[#allocation5 + $0x460] sm:$0xff]
    %v267 = vld [vmem:[#allocation5 + $0x468] sm:$0xff]
    %v268 = vld [vmem:[#allocation5 + $0x470] sm:$0xff]
    %v269 = vld [vmem:[#allocation5 + $0x478] sm:$0xf]
    %v270 = vld [vmem:[#allocation5 + $0x47c] sm:$0xff]
    %v271 = vld [vmem:[#allocation5 + $0x484] sm:$0xff]
    %v272 = vld [vmem:[#allocation5 + $0x48c] sm:$0xff]
    %v273 = vld [vmem:[#allocation5 + $0x494] sm:$0xf]
    %v274 = vld [vmem:[#allocation5 + $0x498] sm:$0xff]
    %v275 = vld [vmem:[#allocation5 + $0x4a0] sm:$0xff]
    %v276 = vld [vmem:[#allocation5 + $0x4a8] sm:$0xff]
    %v277 = vld [vmem:[#allocation5 + $0x4b0] sm:$0xf]
    %v278 = vld [vmem:[#allocation5 + $0x4b4] sm:$0xff]
    %v279 = vld [vmem:[#allocation5 + $0x4bc] sm:$0xff]
    %v280 = vld [vmem:[#allocation5 + $0x4c4] sm:$0xff]
    %v281 = vld [vmem:[#allocation5 + $0x4cc] sm:$0xf]
    %v282 = vld [vmem:[#allocation5 + $0x4d0] sm:$0xff]
    %v283 = vld [vmem:[#allocation5 + $0x4d8] sm:$0xff]
    %v284 = vld [vmem:[#allocation5 + $0x4e0] sm:$0xff]
    %v285 = vld [vmem:[#allocation5 + $0x4e8] sm:$0xf]
    %v286 = vld [vmem:[#allocation5 + $0x4ec] sm:$0xff]
    %v287 = vld [vmem:[#allocation5 + $0x4f4] sm:$0xff]
    %v288 = vld [vmem:[#allocation5 + $0x4fc] sm:$0xff]
    %v289 = vld [vmem:[#allocation5 + $0x504] sm:$0xf]
    %v290 = vld [vmem:[#allocation5 + $0x508] sm:$0xff]
    %v291 = vld [vmem:[#allocation5 + $0x510] sm:$0xff]
    %v292 = vld [vmem:[#allocation5 + $0x518] sm:$0xff]
    %v293 = vld [vmem:[#allocation5 + $0x520] sm:$0xf]
    %v294 = vld [vmem:[#allocation5 + $0x524] sm:$0xff]
    %v295 = vld [vmem:[#allocation5 + $0x52c] sm:$0xff]
    %v296 = vld [vmem:[#allocation5 + $0x534] sm:$0xff]
    %v297 = vld [vmem:[#allocation5 + $0x53c] sm:$0xf]
    %v298 = vld [vmem:[#allocation5 + $0x540] sm:$0xff]
    %v299 = vld [vmem:[#allocation5 + $0x548] sm:$0xff]
    %v300 = vld [vmem:[#allocation5 + $0x550] sm:$0xff]
    %v301 = vld [vmem:[#allocation5 + $0x558] sm:$0xf]
    %v302 = vld [vmem:[#allocation5 + $0x55c] sm:$0xff]
    %v303 = vld [vmem:[#allocation5 + $0x564] sm:$0xff]
    %v304 = vld [vmem:[#allocation5 + $0x56c] sm:$0xff]
    %v305 = vld [vmem:[#allocation5 + $0x574] sm:$0xf]
    %v306 = vld [vmem:[#allocation5 + $0x578] sm:$0xff]
    %v307 = vld [vmem:[#allocation5 + $0x580] sm:$0xff]
    %v308 = vld [vmem:[#allocation5 + $0x588] sm:$0xff]
    %v309 = vld [vmem:[#allocation5 + $0x590] sm:$0xf]
    %v310 = vld [vmem:[#allocation5 + $0x594] sm:$0xff]
    %v311 = vld [vmem:[#allocation5 + $0x59c] sm:$0xff]
    %v312 = vld [vmem:[#allocation5 + $0x5a4] sm:$0xff]
    %v313 = vld [vmem:[#allocation5 + $0x5ac] sm:$0xf]
    %v314 = vld [vmem:[#allocation5 + $0x5b0] sm:$0xff]
    %v315 = vld [vmem:[#allocation5 + $0x5b8] sm:$0xff]
    %v316 = vld [vmem:[#allocation5 + $0x5c0] sm:$0xff]
    %v317 = vld [vmem:[#allocation5 + $0x5c8] sm:$0xf]
    %v318 = vld [vmem:[#allocation5 + $0x5cc] sm:$0xff]
    %v319 = vld [vmem:[#allocation5 + $0x5d4] sm:$0xff]
    %v320 = vld [vmem:[#allocation5 + $0x5dc] sm:$0xff]
    %v321 = vld [vmem:[#allocation5 + $0x5e4] sm:$0xf]
    %v322 = vld [vmem:[#allocation5 + $0x5e8] sm:$0xff]
    %v323 = vld [vmem:[#allocation5 + $0x5f0] sm:$0xff]
    %v324 = vld [vmem:[#allocation5 + $0x5f8] sm:$0xff]
    %v325 = vld [vmem:[#allocation5 + $0x600] sm:$0xf]
    %v326 = vld [vmem:[#allocation5 + $0x604] sm:$0xff]
    %v327 = vld [vmem:[#allocation5 + $0x60c] sm:$0xff]
    %v328 = vld [vmem:[#allocation5 + $0x614] sm:$0xff]
    %v329 = vld [vmem:[#allocation5 + $0x61c] sm:$0xf]
    %v330 = vld [vmem:[#allocation5 + $0x620] sm:$0xff]
    %v331 = vld [vmem:[#allocation5 + $0x628] sm:$0xff]
    %v332 = vld [vmem:[#allocation5 + $0x630] sm:$0xff]
    %v333 = vld [vmem:[#allocation5 + $0x638] sm:$0xf]
    %v334 = vld [vmem:[#allocation5 + $0x63c] sm:$0xff]
    %v335 = vld [vmem:[#allocation5 + $0x644] sm:$0xff]
    %v336 = vld [vmem:[#allocation5 + $0x64c] sm:$0xff]
    %v337 = vld [vmem:[#allocation5 + $0x654] sm:$0xf]
    %v338 = vld [vmem:[#allocation5 + $0x658] sm:$0xff]
    %v339 = vld [vmem:[#allocation5 + $0x660] sm:$0xff]
    %v340 = vld [vmem:[#allocation5 + $0x668] sm:$0xff]
    %v341 = vld [vmem:[#allocation5 + $0x670] sm:$0xf]
    %v342 = vld [vmem:[#allocation5 + $0x674] sm:$0xff]
    %v343 = vld [vmem:[#allocation5 + $0x67c] sm:$0xff]
    %v344 = vld [vmem:[#allocation5 + $0x684] sm:$0xff]
    %v345 = vld [vmem:[#allocation5 + $0x68c] sm:$0xf]
    %v346 = vld [vmem:[#allocation5 + $0x690] sm:$0xff]
    %v347 = vld [vmem:[#allocation5 + $0x698] sm:$0xff]
    %v348 = vld [vmem:[#allocation5 + $0x6a0] sm:$0xff]
    %v349 = vld [vmem:[#allocation5 + $0x6a8] sm:$0xf]
    %v350 = vld [vmem:[#allocation5 + $0x6ac] sm:$0xff]
    %v351 = vld [vmem:[#allocation5 + $0x6b4] sm:$0xff]
    %v352 = vld [vmem:[#allocation5 + $0x6bc] sm:$0xff]
    %v353 = vld [vmem:[#allocation5 + $0x6c4] sm:$0xf]
    %v354 = vld [vmem:[#allocation5 + $0x6c8] sm:$0xff]
    %v355 = vld [vmem:[#allocation5 + $0x6d0] sm:$0xff]
    %v356 = vld [vmem:[#allocation5 + $0x6d8] sm:$0xff]
    %v357 = vld [vmem:[#allocation5 + $0x6e0] sm:$0xf]
    %v358 = vld [vmem:[#allocation5 + $0x6e4] sm:$0xff]
    %v359 = vld [vmem:[#allocation5 + $0x6ec] sm:$0xff]
    %v360 = vld [vmem:[#allocation5 + $0x6f4] sm:$0xff]
    %v361 = vld [vmem:[#allocation5 + $0x6fc] sm:$0xf]
    %v362 = vld [vmem:[#allocation5 + $0x700] sm:$0xff]
    %v363 = vld [vmem:[#allocation5 + $0x708] sm:$0xff]
    %v364 = vld [vmem:[#allocation5 + $0x710] sm:$0xff]
    %v365 = vld [vmem:[#allocation5 + $0x718] sm:$0xf]
    %v366 = vld [vmem:[#allocation5 + $0x71c] sm:$0xff]
    %v367 = vld [vmem:[#allocation5 + $0x724] sm:$0xff]
    %v368 = vld [vmem:[#allocation5 + $0x72c] sm:$0xff]
    %v369 = vld [vmem:[#allocation5 + $0x734] sm:$0xf]
    %v370 = vld [vmem:[#allocation5 + $0x738] sm:$0xff]
    %v371 = vld [vmem:[#allocation5 + $0x740] sm:$0xff]
    %v372 = vld [vmem:[#allocation5 + $0x748] sm:$0xff]
    %v373 = vld [vmem:[#allocation5 + $0x750] sm:$0xf]
    %v374 = vld [vmem:[#allocation5 + $0x754] sm:$0xff]
    %v375 = vld [vmem:[#allocation5 + $0x75c] sm:$0xff]
    %v376 = vld [vmem:[#allocation5 + $0x764] sm:$0xff]
    %v377 = vld [vmem:[#allocation5 + $0x76c] sm:$0xf]
    %v378 = vld [vmem:[#allocation5 + $0x770] sm:$0xff]
    %v379 = vld [vmem:[#allocation5 + $0x778] sm:$0xff]
    %v380 = vld [vmem:[#allocation5 + $0x780] sm:$0xff]
    %v381 = vld [vmem:[#allocation5 + $0x788] sm:$0xf]
    %v382 = vld [vmem:[#allocation5 + $0x78c] sm:$0xff]
    %v383 = vld [vmem:[#allocation5 + $0x794] sm:$0xff]
    %v384 = vld [vmem:[#allocation5 + $0x79c] sm:$0xff]
    %v385 = vld [vmem:[#allocation5 + $0x7a4] sm:$0xf]
    %v386 = vld [vmem:[#allocation5 + $0x7a8] sm:$0xff]
    %v387 = vld [vmem:[#allocation5 + $0x7b0] sm:$0xff]
    %v388 = vld [vmem:[#allocation5 + $0x7b8] sm:$0xff]
    %v389 = vld [vmem:[#allocation5 + $0x7c0] sm:$0xf]
    %v390 = vld [vmem:[#allocation5 + $0x7c4] sm:$0xff]
    %v391 = vld [vmem:[#allocation5 + $0x7cc] sm:$0xff]
    %v392 = vld [vmem:[#allocation5 + $0x7d4] sm:$0xff]
    %v393 = vld [vmem:[#allocation5 + $0x7dc] sm:$0xf]
    %v394 = vld [vmem:[#allocation5 + $0x7e0] sm:$0xff]
    %v395 = vld [vmem:[#allocation5 + $0x7e8] sm:$0xff]
    %v396 = vld [vmem:[#allocation5 + $0x7f0] sm:$0xff]
    %v397 = vld [vmem:[#allocation5 + $0x7f8] sm:$0xf]
    %v398 = vld [vmem:[#allocation5 + $0x7fc] sm:$0xff]
    %v399 = vld [vmem:[#allocation5 + $0x804] sm:$0xff]
    %v400 = vld [vmem:[#allocation5 + $0x80c] sm:$0xff]
    %v401 = vld [vmem:[#allocation5 + $0x814] sm:$0xf]
    %v402 = vld [vmem:[#allocation5 + $0x818] sm:$0xff]
    %v403 = vld [vmem:[#allocation5 + $0x820] sm:$0xff]
    %v404 = vld [vmem:[#allocation5 + $0x828] sm:$0xff]
    %v405 = vld [vmem:[#allocation5 + $0x830] sm:$0xf]
    %v406 = vld [vmem:[#allocation5 + $0x834] sm:$0xff]
    %v407 = vld [vmem:[#allocation5 + $0x83c] sm:$0xff]
    %v408 = vld [vmem:[#allocation5 + $0x844] sm:$0xff]
    %v409 = vld [vmem:[#allocation5 + $0x84c] sm:$0xf]
    %v410 = vld [vmem:[#allocation5 + $0x850] sm:$0xff]
    %v411 = vld [vmem:[#allocation5 + $0x858] sm:$0xff]
    %v412 = vld [vmem:[#allocation5 + $0x860] sm:$0xff]
    %v413 = vld [vmem:[#allocation5 + $0x868] sm:$0xf]
    %v414 = vld [vmem:[#allocation5 + $0x86c] sm:$0xff]
    %v415 = vld [vmem:[#allocation5 + $0x874] sm:$0xff]
    %v416 = vld [vmem:[#allocation5 + $0x87c] sm:$0xff]
    %v417 = vld [vmem:[#allocation5 + $0x884] sm:$0xf]
    %v418 = vld [vmem:[#allocation5 + $0x888] sm:$0xff]
    %v419 = vld [vmem:[#allocation5 + $0x890] sm:$0xff]
    %v420 = vld [vmem:[#allocation5 + $0x898] sm:$0xff]
    %v421 = vld [vmem:[#allocation5 + $0x8a0] sm:$0xf]
    %v422 = vld [vmem:[#allocation5 + $0x8a4] sm:$0xff]
    %v423 = vld [vmem:[#allocation5 + $0x8ac] sm:$0xff]
    %v424 = vld [vmem:[#allocation5 + $0x8b4] sm:$0xff]
    %v425 = vld [vmem:[#allocation5 + $0x8bc] sm:$0xf]
    %v426 = vld [vmem:[#allocation5 + $0x8c0] sm:$0xff]
    %v427 = vld [vmem:[#allocation5 + $0x8c8] sm:$0xff]
    %v428 = vld [vmem:[#allocation5 + $0x8d0] sm:$0xff]
    %v429 = vld [vmem:[#allocation5 + $0x8d8] sm:$0xf]
    %v430 = vld [vmem:[#allocation5 + $0x8dc] sm:$0xff]
    %v431 = vld [vmem:[#allocation5 + $0x8e4] sm:$0xff]
    %v432 = vld [vmem:[#allocation5 + $0x8ec] sm:$0xff]
    %v433 = vld [vmem:[#allocation5 + $0x8f4] sm:$0xf]
    %v434 = vld [vmem:[#allocation5 + $0x8f8] sm:$0xff]
    %v435 = vld [vmem:[#allocation5 + $0x900] sm:$0xff]
    %v436 = vld [vmem:[#allocation5 + $0x908] sm:$0xff]
    %v437 = vld [vmem:[#allocation5 + $0x910] sm:$0xf]
    %v438 = vld [vmem:[#allocation5 + $0x914] sm:$0xff]
    %v439 = vld [vmem:[#allocation5 + $0x91c] sm:$0xff]
    %v440 = vld [vmem:[#allocation5 + $0x924] sm:$0xff]
    %v441 = vld [vmem:[#allocation5 + $0x92c] sm:$0xf]
    %v442 = vld [vmem:[#allocation5 + $0x930] sm:$0xff]
    %v443 = vld [vmem:[#allocation5 + $0x938] sm:$0xff]
    %v444 = vld [vmem:[#allocation5 + $0x940] sm:$0xff]
    %v445 = vld [vmem:[#allocation5 + $0x948] sm:$0xf]
    %v446 = vld [vmem:[#allocation5 + $0x94c] sm:$0xff]
    %v447 = vld [vmem:[#allocation5 + $0x954] sm:$0xff]
    %v448 = vld [vmem:[#allocation5 + $0x95c] sm:$0xff]
    %v449 = vld [vmem:[#allocation5 + $0x964] sm:$0xf]
    %v450 = vld [vmem:[#allocation5 + $0x968] sm:$0xff]
    %v451 = vld [vmem:[#allocation5 + $0x970] sm:$0xff]
    %v452 = vld [vmem:[#allocation5 + $0x978] sm:$0xff]
    %v453 = vld [vmem:[#allocation5 + $0x980] sm:$0xf]
    %v454 = vld [vmem:[#allocation5 + $0x984] sm:$0xff]
    %v455 = vld [vmem:[#allocation5 + $0x98c] sm:$0xff]
    %v456 = vld [vmem:[#allocation5 + $0x994] sm:$0xff]
    %v457 = vld [vmem:[#allocation5 + $0x99c] sm:$0xf]
    %v458 = vld [vmem:[#allocation5 + $0x9a0] sm:$0xff]
    %v459 = vld [vmem:[#allocation5 + $0x9a8] sm:$0xff]
    %v460 = vld [vmem:[#allocation5 + $0x9b0] sm:$0xff]
    %v461 = vld [vmem:[#allocation5 + $0x9b8] sm:$0xf]
    %v462 = vld [vmem:[#allocation5 + $0x9bc] sm:$0xff]
    %v463 = vld [vmem:[#allocation5 + $0x9c4] sm:$0xff]
    %v464 = vld [vmem:[#allocation5 + $0x9cc] sm:$0xff]
    %v465 = vld [vmem:[#allocation5 + $0x9d4] sm:$0xf]
    %v466 = vld [vmem:[#allocation5 + $0x9d8] sm:$0xff]
    %v467 = vld [vmem:[#allocation5 + $0x9e0] sm:$0xff]
    %v468 = vld [vmem:[#allocation5 + $0x9e8] sm:$0xff]
    %v469 = vld [vmem:[#allocation5 + $0x9f0] sm:$0xf]
    %v470 = vld [vmem:[#allocation5 + $0x9f4] sm:$0xff]
    %v471 = vld [vmem:[#allocation5 + $0x9fc] sm:$0xff]
    %v472 = vld [vmem:[#allocation5 + $0xa04] sm:$0xff]
    %v473 = vld [vmem:[#allocation5 + $0xa0c] sm:$0xf]
    %v474 = vld [vmem:[#allocation5 + $0xa10] sm:$0xff]
    %v475 = vld [vmem:[#allocation5 + $0xa18] sm:$0xff]
    %v476 = vld [vmem:[#allocation5 + $0xa20] sm:$0xff]
    %v477 = vld [vmem:[#allocation5 + $0xa28] sm:$0xf]
    %v478 = vld [vmem:[#allocation5 + $0xa2c] sm:$0xff]
    %v479 = vld [vmem:[#allocation5 + $0xa34] sm:$0xff]
    %v480 = vld [vmem:[#allocation5 + $0xa3c] sm:$0xff]
    %v481 = vld [vmem:[#allocation5 + $0xa44] sm:$0xf]
    %v482 = vld [vmem:[#allocation5 + $0xa48] sm:$0xff]
    %v483 = vld [vmem:[#allocation5 + $0xa50] sm:$0xff]
    %v484 = vld [vmem:[#allocation5 + $0xa58] sm:$0xff]
    %v485 = vld [vmem:[#allocation5 + $0xa60] sm:$0xf]
    %v486 = vld [vmem:[#allocation5 + $0xa64] sm:$0xff]
    %v487 = vld [vmem:[#allocation5 + $0xa6c] sm:$0xff]
    %v488 = vld [vmem:[#allocation5 + $0xa74] sm:$0xff]
    %v489 = vld [vmem:[#allocation5 + $0xa7c] sm:$0xf]
    %v490 = vld [vmem:[#allocation5 + $0xa80] sm:$0xff]
    %v491 = vld [vmem:[#allocation5 + $0xa88] sm:$0xff]
    %v492 = vld [vmem:[#allocation5 + $0xa90] sm:$0xff]
    %v493 = vld [vmem:[#allocation5 + $0xa98] sm:$0xf]
    %v494 = vld [vmem:[#allocation5 + $0xa9c] sm:$0xff]
    %v495 = vld [vmem:[#allocation5 + $0xaa4] sm:$0xff]
    %v496 = vld [vmem:[#allocation5 + $0xaac] sm:$0xff]
    %v497 = vld [vmem:[#allocation5 + $0xab4] sm:$0xf]
    %v498 = vld [vmem:[#allocation5 + $0xab8] sm:$0xff]
    %v499 = vld [vmem:[#allocation5 + $0xac0] sm:$0xff]
    %v500 = vld [vmem:[#allocation5 + $0xac8] sm:$0xff]
    %v501 = vld [vmem:[#allocation5 + $0xad0] sm:$0xf]
    %v502 = vld [vmem:[#allocation5 + $0xad4] sm:$0xff]
    %v503 = vld [vmem:[#allocation5 + $0xadc] sm:$0xff]
    %v504 = vld [vmem:[#allocation5 + $0xae4] sm:$0xff]
    %v505 = vld [vmem:[#allocation5 + $0xaec] sm:$0xf]
    %v506 = vld [vmem:[#allocation5 + $0xaf0] sm:$0xff]
    %v507 = vld [vmem:[#allocation5 + $0xaf8] sm:$0xff]
    %v508 = vld [vmem:[#allocation5 + $0xb00] sm:$0xff]
    %v509 = vld [vmem:[#allocation5 + $0xb08] sm:$0xf]
    %v510 = vld [vmem:[#allocation5 + $0xb0c] sm:$0xff]
    %v511 = vld [vmem:[#allocation5 + $0xb14] sm:$0xff]
    %v512 = vld [vmem:[#allocation5 + $0xb1c] sm:$0xff]
    %v513 = vld [vmem:[#allocation5 + $0xb24] sm:$0xf]
    %v514 = vld [vmem:[#allocation5 + $0xb28] sm:$0xff]
    %v515 = vld [vmem:[#allocation5 + $0xb30] sm:$0xff]
    %v516 = vld [vmem:[#allocation5 + $0xb38] sm:$0xff]
    %v517 = vld [vmem:[#allocation5 + $0xb40] sm:$0xf]
    %v518 = vld [vmem:[#allocation5 + $0xb44] sm:$0xff]
    %v519 = vld [vmem:[#allocation5 + $0xb4c] sm:$0xff]
    %v520 = vld [vmem:[#allocation5 + $0xb54] sm:$0xff]
    %v521 = vld [vmem:[#allocation5 + $0xb5c] sm:$0xf]
    %v522 = vld [vmem:[#allocation5 + $0xb60] sm:$0xff]
    %v523 = vld [vmem:[#allocation5 + $0xb68] sm:$0xff]
    %v524 = vld [vmem:[#allocation5 + $0xb70] sm:$0xff]
    %v525 = vld [vmem:[#allocation5 + $0xb78] sm:$0xf]
    %v526 = vld [vmem:[#allocation5 + $0xb7c] sm:$0xff]
    %v527 = vld [vmem:[#allocation5 + $0xb84] sm:$0xff]
    %v528 = vld [vmem:[#allocation5 + $0xb8c] sm:$0xff]
    %v529 = vld [vmem:[#allocation5 + $0xb94] sm:$0xf]
    %v530 = vld [vmem:[#allocation5 + $0xb98] sm:$0xff]
    %v531 = vld [vmem:[#allocation5 + $0xba0] sm:$0xff]
    %v532 = vld [vmem:[#allocation5 + $0xba8] sm:$0xff]
    %v533 = vld [vmem:[#allocation5 + $0xbb0] sm:$0xf]
    %v534 = vld [vmem:[#allocation5 + $0xbb4] sm:$0xff]
    %v535 = vld [vmem:[#allocation5 + $0xbbc] sm:$0xff]
    %v536 = vld [vmem:[#allocation5 + $0xbc4] sm:$0xff]
    %v537 = vld [vmem:[#allocation5 + $0xbcc] sm:$0xf]
    %v538 = vld [vmem:[#allocation5 + $0xbd0] sm:$0xff]
    %v539 = vld [vmem:[#allocation5 + $0xbd8] sm:$0xff]
    %v540 = vld [vmem:[#allocation5 + $0xbe0] sm:$0xff]
    %v541 = vld [vmem:[#allocation5 + $0xbe8] sm:$0xf]
    %v542 = vld [vmem:[#allocation5 + $0xbec] sm:$0xff]
    %v543 = vld [vmem:[#allocation5 + $0xbf4] sm:$0xff]
    %v544 = vld [vmem:[#allocation5 + $0xbfc] sm:$0xff]
    %v545 = vld [vmem:[#allocation5 + $0xc04] sm:$0xf]
    %v546 = vld [vmem:[#allocation5 + $0xc08] sm:$0xff]
    %v547 = vld [vmem:[#allocation5 + $0xc10] sm:$0xff]
    %v548 = vld [vmem:[#allocation5 + $0xc18] sm:$0xff]
    %v549 = vld [vmem:[#allocation5 + $0xc20] sm:$0xf]
    %v550 = vld [vmem:[#allocation5 + $0xc24] sm:$0xff]
    %v551 = vld [vmem:[#allocation5 + $0xc2c] sm:$0xff]
    %v552 = vld [vmem:[#allocation5 + $0xc34] sm:$0xff]
    %v553 = vld [vmem:[#allocation5 + $0xc3c] sm:$0xf]
    %v554 = vld [vmem:[#allocation7] sm:$0xff]
    %v556 = vlaneseq
    %v557 = vshrl.u32 %v556, 7
    %v558 = vsub.s32 0, %v557
    %v559 = vrot.slane %v554, %v558
    %v560 = vlaneseq
    %v561 = vshrl.u32 %v560, 7
    %v562 = vsub.s32 1, %v561
    %v563 = vrot.slane %v554, %v562
    %v564 = vlaneseq
    %v565 = vshrl.u32 %v564, 7
    %v566 = vsub.s32 2, %v565
    %v567 = vrot.slane %v554, %v566
    %v568 = vlaneseq
    %v569 = vshrl.u32 %v568, 7
    %v570 = vsub.s32 3, %v569
    %v571 = vrot.slane %v554, %v570
    %v572 = vlaneseq
    %v573 = vshrl.u32 %v572, 7
    %v574 = vsub.s32 4, %v573
    %v575 = vrot.slane %v554, %v574
    %v576 = vlaneseq
    %v577 = vshrl.u32 %v576, 7
    %v578 = vsub.s32 5, %v577
    %v579 = vrot.slane %v554, %v578
    %v580 = vlaneseq
    %v581 = vshrl.u32 %v580, 7
    %v582 = vsub.s32 6, %v581
    %v583 = vrot.slane %v554, %v582
    %v599 = vunpack.c.l.b16 %v98
    %v600 = vunpack.c.h.b16 %v98
    %v601 = vunpack.c.l.b16 %v99
    %v602 = vunpack.c.h.b16 %v99
    %v603 = vunpack.c.l.b16 %v100
    %v604 = vunpack.c.h.b16 %v100
    %v605 = vunpack.c.l.b16 %v101
    %v606 = vunpack.c.l.b16 %v102
    %v607 = vunpack.c.h.b16 %v102
    %v608 = vunpack.c.l.b16 %v103
    %v609 = vunpack.c.h.b16 %v103
    %v610 = vunpack.c.l.b16 %v104
    %v611 = vunpack.c.h.b16 %v104
    %v612 = vunpack.c.l.b16 %v105
    %v613 = vpack.c.b16 %v606, %v599
    %v614 = vpack.c.b16 %v607, %v600
    %v615 = vpack.c.b16 %v608, %v601
    %v616 = vpack.c.b16 %v609, %v602
    %v617 = vpack.c.b16 %v610, %v603
    %v618 = vpack.c.b16 %v611, %v604
    %v619 = vpack.c.b16 %v612, %v605
    %v1075 = vunpack.c.l.b16 %v106
    %v1076 = vunpack.c.h.b16 %v106
    %v1077 = vunpack.c.l.b16 %v107
    %v1078 = vunpack.c.h.b16 %v107
    %v1079 = vunpack.c.l.b16 %v108
    %v1080 = vunpack.c.h.b16 %v108
    %v1081 = vunpack.c.l.b16 %v109
    %v1082 = vunpack.c.l.b16 %v110
    %v1083 = vunpack.c.h.b16 %v110
    %v1084 = vunpack.c.l.b16 %v111
    %v1085 = vunpack.c.h.b16 %v111
    %v1086 = vunpack.c.l.b16 %v112
    %v1087 = vunpack.c.h.b16 %v112
    %v1088 = vunpack.c.l.b16 %v113
    %v1089 = vunpack.c.l.b16 %v114
    %v1090 = vunpack.c.h.b16 %v114
    %v1091 = vunpack.c.l.b16 %v115
    %v1092 = vunpack.c.h.b16 %v115
    %v1093 = vunpack.c.l.b16 %v116
    %v1094 = vunpack.c.h.b16 %v116
    %v1095 = vunpack.c.l.b16 %v117
    %v1096 = vunpack.c.l.b16 %v118
    %v1097 = vunpack.c.h.b16 %v118
    %v1098 = vunpack.c.l.b16 %v119
    %v1099 = vunpack.c.h.b16 %v119
    %v1100 = vunpack.c.l.b16 %v120
    %v1101 = vunpack.c.h.b16 %v120
    %v1102 = vunpack.c.l.b16 %v121
    %v1103 = vunpack.c.l.b16 %v122
    %v1104 = vunpack.c.h.b16 %v122
    %v1105 = vunpack.c.l.b16 %v123
    %v1106 = vunpack.c.h.b16 %v123
    %v1107 = vunpack.c.l.b16 %v124
    %v1108 = vunpack.c.h.b16 %v124
    %v1109 = vunpack.c.l.b16 %v125
    %v1110 = vunpack.c.l.b16 %v126
    %v1111 = vunpack.c.h.b16 %v126
    %v1112 = vunpack.c.l.b16 %v127
    %v1113 = vunpack.c.h.b16 %v127
    %v1114 = vunpack.c.l.b16 %v128
    %v1115 = vunpack.c.h.b16 %v128
    %v1116 = vunpack.c.l.b16 %v129
    %v1117 = vunpack.c.l.b16 %v130
    %v1118 = vunpack.c.h.b16 %v130
    %v1119 = vunpack.c.l.b16 %v131
    %v1120 = vunpack.c.h.b16 %v131
    %v1121 = vunpack.c.l.b16 %v132
    %v1122 = vunpack.c.h.b16 %v132
    %v1123 = vunpack.c.l.b16 %v133
    %v1124 = vunpack.c.l.b16 %v134
    %v1125 = vunpack.c.h.b16 %v134
    %v1126 = vunpack.c.l.b16 %v135
    %v1127 = vunpack.c.h.b16 %v135
    %v1128 = vunpack.c.l.b16 %v136
    %v1129 = vunpack.c.h.b16 %v136
    %v1130 = vunpack.c.l.b16 %v137
    %v1131 = vunpack.c.l.b16 %v138
    %v1132 = vunpack.c.h.b16 %v138
    %v1133 = vunpack.c.l.b16 %v139
    %v1134 = vunpack.c.h.b16 %v139
    %v1135 = vunpack.c.l.b16 %v140
    %v1136 = vunpack.c.h.b16 %v140
    %v1137 = vunpack.c.l.b16 %v141
    %v1138 = vunpack.c.l.b16 %v142
    %v1139 = vunpack.c.h.b16 %v142
    %v1140 = vunpack.c.l.b16 %v143
    %v1141 = vunpack.c.h.b16 %v143
    %v1142 = vunpack.c.l.b16 %v144
    %v1143 = vunpack.c.h.b16 %v144
    %v1144 = vunpack.c.l.b16 %v145
    %v1145 = vunpack.c.l.b16 %v146
    %v1146 = vunpack.c.h.b16 %v146
    %v1147 = vunpack.c.l.b16 %v147
    %v1148 = vunpack.c.h.b16 %v147
    %v1149 = vunpack.c.l.b16 %v148
    %v1150 = vunpack.c.h.b16 %v148
    %v1151 = vunpack.c.l.b16 %v149
    %v1152 = vunpack.c.l.b16 %v150
    %v1153 = vunpack.c.h.b16 %v150
    %v1154 = vunpack.c.l.b16 %v151
    %v1155 = vunpack.c.h.b16 %v151
    %v1156 = vunpack.c.l.b16 %v152
    %v1157 = vunpack.c.h.b16 %v152
    %v1158 = vunpack.c.l.b16 %v153
    %v1159 = vunpack.c.l.b16 %v154
    %v1160 = vunpack.c.h.b16 %v154
    %v1161 = vunpack.c.l.b16 %v155
    %v1162 = vunpack.c.h.b16 %v155
    %v1163 = vunpack.c.l.b16 %v156
    %v1164 = vunpack.c.h.b16 %v156
    %v1165 = vunpack.c.l.b16 %v157
    %v1166 = vunpack.c.l.b16 %v158
    %v1167 = vunpack.c.h.b16 %v158
    %v1168 = vunpack.c.l.b16 %v159
    %v1169 = vunpack.c.h.b16 %v159
    %v1170 = vunpack.c.l.b16 %v160
    %v1171 = vunpack.c.h.b16 %v160
    %v1172 = vunpack.c.l.b16 %v161
    %v1173 = vunpack.c.l.b16 %v162
    %v1174 = vunpack.c.h.b16 %v162
    %v1175 = vunpack.c.l.b16 %v163
    %v1176 = vunpack.c.h.b16 %v163
    %v1177 = vunpack.c.l.b16 %v164
    %v1178 = vunpack.c.h.b16 %v164
    %v1179 = vunpack.c.l.b16 %v165
    %v1180 = vunpack.c.l.b16 %v166
    %v1181 = vunpack.c.h.b16 %v166
    %v1182 = vunpack.c.l.b16 %v167
    %v1183 = vunpack.c.h.b16 %v167
    %v1184 = vunpack.c.l.b16 %v168
    %v1185 = vunpack.c.h.b16 %v168
    %v1186 = vunpack.c.l.b16 %v169
    %v1187 = vunpack.c.l.b16 %v170
    %v1188 = vunpack.c.h.b16 %v170
    %v1189 = vunpack.c.l.b16 %v171
    %v1190 = vunpack.c.h.b16 %v171
    %v1191 = vunpack.c.l.b16 %v172
    %v1192 = vunpack.c.h.b16 %v172
    %v1193 = vunpack.c.l.b16 %v173
    %v1194 = vunpack.c.l.b16 %v174
    %v1195 = vunpack.c.h.b16 %v174
    %v1196 = vunpack.c.l.b16 %v175
    %v1197 = vunpack.c.h.b16 %v175
    %v1198 = vunpack.c.l.b16 %v176
    %v1199 = vunpack.c.h.b16 %v176
    %v1200 = vunpack.c.l.b16 %v177
    %v1201 = vunpack.c.l.b16 %v178
    %v1202 = vunpack.c.h.b16 %v178
    %v1203 = vunpack.c.l.b16 %v179
    %v1204 = vunpack.c.h.b16 %v179
    %v1205 = vunpack.c.l.b16 %v180
    %v1206 = vunpack.c.h.b16 %v180
    %v1207 = vunpack.c.l.b16 %v181
    %v1208 = vunpack.c.l.b16 %v182
    %v1209 = vunpack.c.h.b16 %v182
    %v1210 = vunpack.c.l.b16 %v183
    %v1211 = vunpack.c.h.b16 %v183
    %v1212 = vunpack.c.l.b16 %v184
    %v1213 = vunpack.c.h.b16 %v184
    %v1214 = vunpack.c.l.b16 %v185
    %v1215 = vunpack.c.l.b16 %v186
    %v1216 = vunpack.c.h.b16 %v186
    %v1217 = vunpack.c.l.b16 %v187
    %v1218 = vunpack.c.h.b16 %v187
    %v1219 = vunpack.c.l.b16 %v188
    %v1220 = vunpack.c.h.b16 %v188
    %v1221 = vunpack.c.l.b16 %v189
    %v1222 = vunpack.c.l.b16 %v190
    %v1223 = vunpack.c.h.b16 %v190
    %v1224 = vunpack.c.l.b16 %v191
    %v1225 = vunpack.c.h.b16 %v191
    %v1226 = vunpack.c.l.b16 %v192
    %v1227 = vunpack.c.h.b16 %v192
    %v1228 = vunpack.c.l.b16 %v193
    %v1229 = vunpack.c.l.b16 %v194
    %v1230 = vunpack.c.h.b16 %v194
    %v1231 = vunpack.c.l.b16 %v195
    %v1232 = vunpack.c.h.b16 %v195
    %v1233 = vunpack.c.l.b16 %v196
    %v1234 = vunpack.c.h.b16 %v196
    %v1235 = vunpack.c.l.b16 %v197
    %v1236 = vunpack.c.l.b16 %v198
    %v1237 = vunpack.c.h.b16 %v198
    %v1238 = vunpack.c.l.b16 %v199
    %v1239 = vunpack.c.h.b16 %v199
    %v1240 = vunpack.c.l.b16 %v200
    %v1241 = vunpack.c.h.b16 %v200
    %v1242 = vunpack.c.l.b16 %v201
    %v1243 = vunpack.c.l.b16 %v202
    %v1244 = vunpack.c.h.b16 %v202
    %v1245 = vunpack.c.l.b16 %v203
    %v1246 = vunpack.c.h.b16 %v203
    %v1247 = vunpack.c.l.b16 %v204
    %v1248 = vunpack.c.h.b16 %v204
    %v1249 = vunpack.c.l.b16 %v205
    %v1250 = vunpack.c.l.b16 %v206
    %v1251 = vunpack.c.h.b16 %v206
    %v1252 = vunpack.c.l.b16 %v207
    %v1253 = vunpack.c.h.b16 %v207
    %v1254 = vunpack.c.l.b16 %v208
    %v1255 = vunpack.c.h.b16 %v208
    %v1256 = vunpack.c.l.b16 %v209
    %v1257 = vunpack.c.l.b16 %v210
    %v1258 = vunpack.c.h.b16 %v210
    %v1259 = vunpack.c.l.b16 %v211
    %v1260 = vunpack.c.h.b16 %v211
    %v1261 = vunpack.c.l.b16 %v212
    %v1262 = vunpack.c.h.b16 %v212
    %v1263 = vunpack.c.l.b16 %v213
    %v1264 = vunpack.c.l.b16 %v214
    %v1265 = vunpack.c.h.b16 %v214
    %v1266 = vunpack.c.l.b16 %v215
    %v1267 = vunpack.c.h.b16 %v215
    %v1268 = vunpack.c.l.b16 %v216
    %v1269 = vunpack.c.h.b16 %v216
    %v1270 = vunpack.c.l.b16 %v217
    %v1271 = vunpack.c.l.b16 %v218
    %v1272 = vunpack.c.h.b16 %v218
    %v1273 = vunpack.c.l.b16 %v219
    %v1274 = vunpack.c.h.b16 %v219
    %v1275 = vunpack.c.l.b16 %v220
    %v1276 = vunpack.c.h.b16 %v220
    %v1277 = vunpack.c.l.b16 %v221
    %v1278 = vunpack.c.l.b16 %v222
    %v1279 = vunpack.c.h.b16 %v222
    %v1280 = vunpack.c.l.b16 %v223
    %v1281 = vunpack.c.h.b16 %v223
    %v1282 = vunpack.c.l.b16 %v224
    %v1283 = vunpack.c.h.b16 %v224
    %v1284 = vunpack.c.l.b16 %v225
    %v1285 = vunpack.c.l.b16 %v226
    %v1286 = vunpack.c.h.b16 %v226
    %v1287 = vunpack.c.l.b16 %v227
    %v1288 = vunpack.c.h.b16 %v227
    %v1289 = vunpack.c.l.b16 %v228
    %v1290 = vunpack.c.h.b16 %v228
    %v1291 = vunpack.c.l.b16 %v229
    %v1292 = vunpack.c.l.b16 %v230
    %v1293 = vunpack.c.h.b16 %v230
    %v1294 = vunpack.c.l.b16 %v231
    %v1295 = vunpack.c.h.b16 %v231
    %v1296 = vunpack.c.l.b16 %v232
    %v1297 = vunpack.c.h.b16 %v232
    %v1298 = vunpack.c.l.b16 %v233
    %v1299 = vunpack.c.l.b16 %v234
    %v1300 = vunpack.c.h.b16 %v234
    %v1301 = vunpack.c.l.b16 %v235
    %v1302 = vunpack.c.h.b16 %v235
    %v1303 = vunpack.c.l.b16 %v236
    %v1304 = vunpack.c.h.b16 %v236
    %v1305 = vunpack.c.l.b16 %v237
    %v1306 = vunpack.c.l.b16 %v238
    %v1307 = vunpack.c.h.b16 %v238
    %v1308 = vunpack.c.l.b16 %v239
    %v1309 = vunpack.c.h.b16 %v239
    %v1310 = vunpack.c.l.b16 %v240
    %v1311 = vunpack.c.h.b16 %v240
    %v1312 = vunpack.c.l.b16 %v241
    %v1313 = vunpack.c.l.b16 %v242
    %v1314 = vunpack.c.h.b16 %v242
    %v1315 = vunpack.c.l.b16 %v243
    %v1316 = vunpack.c.h.b16 %v243
    %v1317 = vunpack.c.l.b16 %v244
    %v1318 = vunpack.c.h.b16 %v244
    %v1319 = vunpack.c.l.b16 %v245
    %v1320 = vunpack.c.l.b16 %v246
    %v1321 = vunpack.c.h.b16 %v246
    %v1322 = vunpack.c.l.b16 %v247
    %v1323 = vunpack.c.h.b16 %v247
    %v1324 = vunpack.c.l.b16 %v248
    %v1325 = vunpack.c.h.b16 %v248
    %v1326 = vunpack.c.l.b16 %v249
    %v1327 = vunpack.c.l.b16 %v250
    %v1328 = vunpack.c.h.b16 %v250
    %v1329 = vunpack.c.l.b16 %v251
    %v1330 = vunpack.c.h.b16 %v251
    %v1331 = vunpack.c.l.b16 %v252
    %v1332 = vunpack.c.h.b16 %v252
    %v1333 = vunpack.c.l.b16 %v253
    %v1334 = vunpack.c.l.b16 %v254
    %v1335 = vunpack.c.h.b16 %v254
    %v1336 = vunpack.c.l.b16 %v255
    %v1337 = vunpack.c.h.b16 %v255
    %v1338 = vunpack.c.l.b16 %v256
    %v1339 = vunpack.c.h.b16 %v256
    %v1340 = vunpack.c.l.b16 %v257
    %v1341 = vunpack.c.l.b16 %v258
    %v1342 = vunpack.c.h.b16 %v258
    %v1343 = vunpack.c.l.b16 %v259
    %v1344 = vunpack.c.h.b16 %v259
    %v1345 = vunpack.c.l.b16 %v260
    %v1346 = vunpack.c.h.b16 %v260
    %v1347 = vunpack.c.l.b16 %v261
    %v1348 = vunpack.c.l.b16 %v262
    %v1349 = vunpack.c.h.b16 %v262
    %v1350 = vunpack.c.l.b16 %v263
    %v1351 = vunpack.c.h.b16 %v263
    %v1352 = vunpack.c.l.b16 %v264
    %v1353 = vunpack.c.h.b16 %v264
    %v1354 = vunpack.c.l.b16 %v265
    %v1355 = vunpack.c.l.b16 %v266
    %v1356 = vunpack.c.h.b16 %v266
    %v1357 = vunpack.c.l.b16 %v267
    %v1358 = vunpack.c.h.b16 %v267
    %v1359 = vunpack.c.l.b16 %v268
    %v1360 = vunpack.c.h.b16 %v268
    %v1361 = vunpack.c.l.b16 %v269
    %v1362 = vunpack.c.l.b16 %v270
    %v1363 = vunpack.c.h.b16 %v270
    %v1364 = vunpack.c.l.b16 %v271
    %v1365 = vunpack.c.h.b16 %v271
    %v1366 = vunpack.c.l.b16 %v272
    %v1367 = vunpack.c.h.b16 %v272
    %v1368 = vunpack.c.l.b16 %v273
    %v1369 = vunpack.c.l.b16 %v274
    %v1370 = vunpack.c.h.b16 %v274
    %v1371 = vunpack.c.l.b16 %v275
    %v1372 = vunpack.c.h.b16 %v275
    %v1373 = vunpack.c.l.b16 %v276
    %v1374 = vunpack.c.h.b16 %v276
    %v1375 = vunpack.c.l.b16 %v277
    %v1376 = vunpack.c.l.b16 %v278
    %v1377 = vunpack.c.h.b16 %v278
    %v1378 = vunpack.c.l.b16 %v279
    %v1379 = vunpack.c.h.b16 %v279
    %v1380 = vunpack.c.l.b16 %v280
    %v1381 = vunpack.c.h.b16 %v280
    %v1382 = vunpack.c.l.b16 %v281
    %v1383 = vunpack.c.l.b16 %v282
    %v1384 = vunpack.c.h.b16 %v282
    %v1385 = vunpack.c.l.b16 %v283
    %v1386 = vunpack.c.h.b16 %v283
    %v1387 = vunpack.c.l.b16 %v284
    %v1388 = vunpack.c.h.b16 %v284
    %v1389 = vunpack.c.l.b16 %v285
    %v1390 = vunpack.c.l.b16 %v286
    %v1391 = vunpack.c.h.b16 %v286
    %v1392 = vunpack.c.l.b16 %v287
    %v1393 = vunpack.c.h.b16 %v287
    %v1394 = vunpack.c.l.b16 %v288
    %v1395 = vunpack.c.h.b16 %v288
    %v1396 = vunpack.c.l.b16 %v289
    %v1397 = vunpack.c.l.b16 %v290
    %v1398 = vunpack.c.h.b16 %v290
    %v1399 = vunpack.c.l.b16 %v291
    %v1400 = vunpack.c.h.b16 %v291
    %v1401 = vunpack.c.l.b16 %v292
    %v1402 = vunpack.c.h.b16 %v292
    %v1403 = vunpack.c.l.b16 %v293
    %v1404 = vunpack.c.l.b16 %v294
    %v1405 = vunpack.c.h.b16 %v294
    %v1406 = vunpack.c.l.b16 %v295
    %v1407 = vunpack.c.h.b16 %v295
    %v1408 = vunpack.c.l.b16 %v296
    %v1409 = vunpack.c.h.b16 %v296
    %v1410 = vunpack.c.l.b16 %v297
    %v1411 = vunpack.c.l.b16 %v298
    %v1412 = vunpack.c.h.b16 %v298
    %v1413 = vunpack.c.l.b16 %v299
    %v1414 = vunpack.c.h.b16 %v299
    %v1415 = vunpack.c.l.b16 %v300
    %v1416 = vunpack.c.h.b16 %v300
    %v1417 = vunpack.c.l.b16 %v301
    %v1418 = vunpack.c.l.b16 %v302
    %v1419 = vunpack.c.h.b16 %v302
    %v1420 = vunpack.c.l.b16 %v303
    %v1421 = vunpack.c.h.b16 %v303
    %v1422 = vunpack.c.l.b16 %v304
    %v1423 = vunpack.c.h.b16 %v304
    %v1424 = vunpack.c.l.b16 %v305
    %v1425 = vunpack.c.l.b16 %v306
    %v1426 = vunpack.c.h.b16 %v306
    %v1427 = vunpack.c.l.b16 %v307
    %v1428 = vunpack.c.h.b16 %v307
    %v1429 = vunpack.c.l.b16 %v308
    %v1430 = vunpack.c.h.b16 %v308
    %v1431 = vunpack.c.l.b16 %v309
    %v1432 = vunpack.c.l.b16 %v310
    %v1433 = vunpack.c.h.b16 %v310
    %v1434 = vunpack.c.l.b16 %v311
    %v1435 = vunpack.c.h.b16 %v311
    %v1436 = vunpack.c.l.b16 %v312
    %v1437 = vunpack.c.h.b16 %v312
    %v1438 = vunpack.c.l.b16 %v313
    %v1439 = vunpack.c.l.b16 %v314
    %v1440 = vunpack.c.h.b16 %v314
    %v1441 = vunpack.c.l.b16 %v315
    %v1442 = vunpack.c.h.b16 %v315
    %v1443 = vunpack.c.l.b16 %v316
    %v1444 = vunpack.c.h.b16 %v316
    %v1445 = vunpack.c.l.b16 %v317
    %v1446 = vunpack.c.l.b16 %v318
    %v1447 = vunpack.c.h.b16 %v318
    %v1448 = vunpack.c.l.b16 %v319
    %v1449 = vunpack.c.h.b16 %v319
    %v1450 = vunpack.c.l.b16 %v320
    %v1451 = vunpack.c.h.b16 %v320
    %v1452 = vunpack.c.l.b16 %v321
    %v1453 = vunpack.c.l.b16 %v322
    %v1454 = vunpack.c.h.b16 %v322
    %v1455 = vunpack.c.l.b16 %v323
    %v1456 = vunpack.c.h.b16 %v323
    %v1457 = vunpack.c.l.b16 %v324
    %v1458 = vunpack.c.h.b16 %v324
    %v1459 = vunpack.c.l.b16 %v325
    %v1460 = vunpack.c.l.b16 %v326
    %v1461 = vunpack.c.h.b16 %v326
    %v1462 = vunpack.c.l.b16 %v327
    %v1463 = vunpack.c.h.b16 %v327
    %v1464 = vunpack.c.l.b16 %v328
    %v1465 = vunpack.c.h.b16 %v328
    %v1466 = vunpack.c.l.b16 %v329
    %v1467 = vunpack.c.l.b16 %v330
    %v1468 = vunpack.c.h.b16 %v330
    %v1469 = vunpack.c.l.b16 %v331
    %v1470 = vunpack.c.h.b16 %v331
    %v1471 = vunpack.c.l.b16 %v332
    %v1472 = vunpack.c.h.b16 %v332
    %v1473 = vunpack.c.l.b16 %v333
    %v1474 = vunpack.c.l.b16 %v334
    %v1475 = vunpack.c.h.b16 %v334
    %v1476 = vunpack.c.l.b16 %v335
    %v1477 = vunpack.c.h.b16 %v335
    %v1478 = vunpack.c.l.b16 %v336
    %v1479 = vunpack.c.h.b16 %v336
    %v1480 = vunpack.c.l.b16 %v337
    %v1481 = vunpack.c.l.b16 %v338
    %v1482 = vunpack.c.h.b16 %v338
    %v1483 = vunpack.c.l.b16 %v339
    %v1484 = vunpack.c.h.b16 %v339
    %v1485 = vunpack.c.l.b16 %v340
    %v1486 = vunpack.c.h.b16 %v340
    %v1487 = vunpack.c.l.b16 %v341
    %v1488 = vunpack.c.l.b16 %v342
    %v1489 = vunpack.c.h.b16 %v342
    %v1490 = vunpack.c.l.b16 %v343
    %v1491 = vunpack.c.h.b16 %v343
    %v1492 = vunpack.c.l.b16 %v344
    %v1493 = vunpack.c.h.b16 %v344
    %v1494 = vunpack.c.l.b16 %v345
    %v1495 = vunpack.c.l.b16 %v346
    %v1496 = vunpack.c.h.b16 %v346
    %v1497 = vunpack.c.l.b16 %v347
    %v1498 = vunpack.c.h.b16 %v347
    %v1499 = vunpack.c.l.b16 %v348
    %v1500 = vunpack.c.h.b16 %v348
    %v1501 = vunpack.c.l.b16 %v349
    %v1502 = vunpack.c.l.b16 %v350
    %v1503 = vunpack.c.h.b16 %v350
    %v1504 = vunpack.c.l.b16 %v351
    %v1505 = vunpack.c.h.b16 %v351
    %v1506 = vunpack.c.l.b16 %v352
    %v1507 = vunpack.c.h.b16 %v352
    %v1508 = vunpack.c.l.b16 %v353
    %v1509 = vunpack.c.l.b16 %v354
    %v1510 = vunpack.c.h.b16 %v354
    %v1511 = vunpack.c.l.b16 %v355
    %v1512 = vunpack.c.h.b16 %v355
    %v1513 = vunpack.c.l.b16 %v356
    %v1514 = vunpack.c.h.b16 %v356
    %v1515 = vunpack.c.l.b16 %v357
    %v1516 = vunpack.c.l.b16 %v358
    %v1517 = vunpack.c.h.b16 %v358
    %v1518 = vunpack.c.l.b16 %v359
    %v1519 = vunpack.c.h.b16 %v359
    %v1520 = vunpack.c.l.b16 %v360
    %v1521 = vunpack.c.h.b16 %v360
    %v1522 = vunpack.c.l.b16 %v361
    %v1523 = vunpack.c.l.b16 %v362
    %v1524 = vunpack.c.h.b16 %v362
    %v1525 = vunpack.c.l.b16 %v363
    %v1526 = vunpack.c.h.b16 %v363
    %v1527 = vunpack.c.l.b16 %v364
    %v1528 = vunpack.c.h.b16 %v364
    %v1529 = vunpack.c.l.b16 %v365
    %v1530 = vunpack.c.l.b16 %v366
    %v1531 = vunpack.c.h.b16 %v366
    %v1532 = vunpack.c.l.b16 %v367
    %v1533 = vunpack.c.h.b16 %v367
    %v1534 = vunpack.c.l.b16 %v368
    %v1535 = vunpack.c.h.b16 %v368
    %v1536 = vunpack.c.l.b16 %v369
    %v1537 = vunpack.c.l.b16 %v370
    %v1538 = vunpack.c.h.b16 %v370
    %v1539 = vunpack.c.l.b16 %v371
    %v1540 = vunpack.c.h.b16 %v371
    %v1541 = vunpack.c.l.b16 %v372
    %v1542 = vunpack.c.h.b16 %v372
    %v1543 = vunpack.c.l.b16 %v373
    %v1544 = vunpack.c.l.b16 %v374
    %v1545 = vunpack.c.h.b16 %v374
    %v1546 = vunpack.c.l.b16 %v375
    %v1547 = vunpack.c.h.b16 %v375
    %v1548 = vunpack.c.l.b16 %v376
    %v1549 = vunpack.c.h.b16 %v376
    %v1550 = vunpack.c.l.b16 %v377
    %v1551 = vunpack.c.l.b16 %v378
    %v1552 = vunpack.c.h.b16 %v378
    %v1553 = vunpack.c.l.b16 %v379
    %v1554 = vunpack.c.h.b16 %v379
    %v1555 = vunpack.c.l.b16 %v380
    %v1556 = vunpack.c.h.b16 %v380
    %v1557 = vunpack.c.l.b16 %v381
    %v1558 = vunpack.c.l.b16 %v382
    %v1559 = vunpack.c.h.b16 %v382
    %v1560 = vunpack.c.l.b16 %v383
    %v1561 = vunpack.c.h.b16 %v383
    %v1562 = vunpack.c.l.b16 %v384
    %v1563 = vunpack.c.h.b16 %v384
    %v1564 = vunpack.c.l.b16 %v385
    %v1565 = vunpack.c.l.b16 %v386
    %v1566 = vunpack.c.h.b16 %v386
    %v1567 = vunpack.c.l.b16 %v387
    %v1568 = vunpack.c.h.b16 %v387
    %v1569 = vunpack.c.l.b16 %v388
    %v1570 = vunpack.c.h.b16 %v388
    %v1571 = vunpack.c.l.b16 %v389
    %v1572 = vunpack.c.l.b16 %v390
    %v1573 = vunpack.c.h.b16 %v390
    %v1574 = vunpack.c.l.b16 %v391
    %v1575 = vunpack.c.h.b16 %v391
    %v1576 = vunpack.c.l.b16 %v392
    %v1577 = vunpack.c.h.b16 %v392
    %v1578 = vunpack.c.l.b16 %v393
    %v1579 = vunpack.c.l.b16 %v394
    %v1580 = vunpack.c.h.b16 %v394
    %v1581 = vunpack.c.l.b16 %v395
    %v1582 = vunpack.c.h.b16 %v395
    %v1583 = vunpack.c.l.b16 %v396
    %v1584 = vunpack.c.h.b16 %v396
    %v1585 = vunpack.c.l.b16 %v397
    %v1586 = vunpack.c.l.b16 %v398
    %v1587 = vunpack.c.h.b16 %v398
    %v1588 = vunpack.c.l.b16 %v399
    %v1589 = vunpack.c.h.b16 %v399
    %v1590 = vunpack.c.l.b16 %v400
    %v1591 = vunpack.c.h.b16 %v400
    %v1592 = vunpack.c.l.b16 %v401
    %v1593 = vunpack.c.l.b16 %v402
    %v1594 = vunpack.c.h.b16 %v402
    %v1595 = vunpack.c.l.b16 %v403
    %v1596 = vunpack.c.h.b16 %v403
    %v1597 = vunpack.c.l.b16 %v404
    %v1598 = vunpack.c.h.b16 %v404
    %v1599 = vunpack.c.l.b16 %v405
    %v1600 = vunpack.c.l.b16 %v406
    %v1601 = vunpack.c.h.b16 %v406
    %v1602 = vunpack.c.l.b16 %v407
    %v1603 = vunpack.c.h.b16 %v407
    %v1604 = vunpack.c.l.b16 %v408
    %v1605 = vunpack.c.h.b16 %v408
    %v1606 = vunpack.c.l.b16 %v409
    %v1607 = vunpack.c.l.b16 %v410
    %v1608 = vunpack.c.h.b16 %v410
    %v1609 = vunpack.c.l.b16 %v411
    %v1610 = vunpack.c.h.b16 %v411
    %v1611 = vunpack.c.l.b16 %v412
    %v1612 = vunpack.c.h.b16 %v412
    %v1613 = vunpack.c.l.b16 %v413
    %v1614 = vunpack.c.l.b16 %v414
    %v1615 = vunpack.c.h.b16 %v414
    %v1616 = vunpack.c.l.b16 %v415
    %v1617 = vunpack.c.h.b16 %v415
    %v1618 = vunpack.c.l.b16 %v416
    %v1619 = vunpack.c.h.b16 %v416
    %v1620 = vunpack.c.l.b16 %v417
    %v1621 = vunpack.c.l.b16 %v418
    %v1622 = vunpack.c.h.b16 %v418
    %v1623 = vunpack.c.l.b16 %v419
    %v1624 = vunpack.c.h.b16 %v419
    %v1625 = vunpack.c.l.b16 %v420
    %v1626 = vunpack.c.h.b16 %v420
    %v1627 = vunpack.c.l.b16 %v421
    %v1628 = vunpack.c.l.b16 %v422
    %v1629 = vunpack.c.h.b16 %v422
    %v1630 = vunpack.c.l.b16 %v423
    %v1631 = vunpack.c.h.b16 %v423
    %v1632 = vunpack.c.l.b16 %v424
    %v1633 = vunpack.c.h.b16 %v424
    %v1634 = vunpack.c.l.b16 %v425
    %v1635 = vunpack.c.l.b16 %v426
    %v1636 = vunpack.c.h.b16 %v426
    %v1637 = vunpack.c.l.b16 %v427
    %v1638 = vunpack.c.h.b16 %v427
    %v1639 = vunpack.c.l.b16 %v428
    %v1640 = vunpack.c.h.b16 %v428
    %v1641 = vunpack.c.l.b16 %v429
    %v1642 = vunpack.c.l.b16 %v430
    %v1643 = vunpack.c.h.b16 %v430
    %v1644 = vunpack.c.l.b16 %v431
    %v1645 = vunpack.c.h.b16 %v431
    %v1646 = vunpack.c.l.b16 %v432
    %v1647 = vunpack.c.h.b16 %v432
    %v1648 = vunpack.c.l.b16 %v433
    %v1649 = vunpack.c.l.b16 %v434
    %v1650 = vunpack.c.h.b16 %v434
    %v1651 = vunpack.c.l.b16 %v435
    %v1652 = vunpack.c.h.b16 %v435
    %v1653 = vunpack.c.l.b16 %v436
    %v1654 = vunpack.c.h.b16 %v436
    %v1655 = vunpack.c.l.b16 %v437
    %v1656 = vunpack.c.l.b16 %v438
    %v1657 = vunpack.c.h.b16 %v438
    %v1658 = vunpack.c.l.b16 %v439
    %v1659 = vunpack.c.h.b16 %v439
    %v1660 = vunpack.c.l.b16 %v440
    %v1661 = vunpack.c.h.b16 %v440
    %v1662 = vunpack.c.l.b16 %v441
    %v1663 = vunpack.c.l.b16 %v442
    %v1664 = vunpack.c.h.b16 %v442
    %v1665 = vunpack.c.l.b16 %v443
    %v1666 = vunpack.c.h.b16 %v443
    %v1667 = vunpack.c.l.b16 %v444
    %v1668 = vunpack.c.h.b16 %v444
    %v1669 = vunpack.c.l.b16 %v445
    %v1670 = vunpack.c.l.b16 %v446
    %v1671 = vunpack.c.h.b16 %v446
    %v1672 = vunpack.c.l.b16 %v447
    %v1673 = vunpack.c.h.b16 %v447
    %v1674 = vunpack.c.l.b16 %v448
    %v1675 = vunpack.c.h.b16 %v448
    %v1676 = vunpack.c.l.b16 %v449
    %v1677 = vunpack.c.l.b16 %v450
    %v1678 = vunpack.c.h.b16 %v450
    %v1679 = vunpack.c.l.b16 %v451
    %v1680 = vunpack.c.h.b16 %v451
    %v1681 = vunpack.c.l.b16 %v452
    %v1682 = vunpack.c.h.b16 %v452
    %v1683 = vunpack.c.l.b16 %v453
    %v1684 = vunpack.c.l.b16 %v454
    %v1685 = vunpack.c.h.b16 %v454
    %v1686 = vunpack.c.l.b16 %v455
    %v1687 = vunpack.c.h.b16 %v455
    %v1688 = vunpack.c.l.b16 %v456
    %v1689 = vunpack.c.h.b16 %v456
    %v1690 = vunpack.c.l.b16 %v457
    %v1691 = vunpack.c.l.b16 %v458
    %v1692 = vunpack.c.h.b16 %v458
    %v1693 = vunpack.c.l.b16 %v459
    %v1694 = vunpack.c.h.b16 %v459
    %v1695 = vunpack.c.l.b16 %v460
    %v1696 = vunpack.c.h.b16 %v460
    %v1697 = vunpack.c.l.b16 %v461
    %v1698 = vunpack.c.l.b16 %v462
    %v1699 = vunpack.c.h.b16 %v462
    %v1700 = vunpack.c.l.b16 %v463
    %v1701 = vunpack.c.h.b16 %v463
    %v1702 = vunpack.c.l.b16 %v464
    %v1703 = vunpack.c.h.b16 %v464
    %v1704 = vunpack.c.l.b16 %v465
    %v1705 = vunpack.c.l.b16 %v466
    %v1706 = vunpack.c.h.b16 %v466
    %v1707 = vunpack.c.l.b16 %v467
    %v1708 = vunpack.c.h.b16 %v467
    %v1709 = vunpack.c.l.b16 %v468
    %v1710 = vunpack.c.h.b16 %v468
    %v1711 = vunpack.c.l.b16 %v469
    %v1712 = vunpack.c.l.b16 %v470
    %v1713 = vunpack.c.h.b16 %v470
    %v1714 = vunpack.c.l.b16 %v471
    %v1715 = vunpack.c.h.b16 %v471
    %v1716 = vunpack.c.l.b16 %v472
    %v1717 = vunpack.c.h.b16 %v472
    %v1718 = vunpack.c.l.b16 %v473
    %v1719 = vunpack.c.l.b16 %v474
    %v1720 = vunpack.c.h.b16 %v474
    %v1721 = vunpack.c.l.b16 %v475
    %v1722 = vunpack.c.h.b16 %v475
    %v1723 = vunpack.c.l.b16 %v476
    %v1724 = vunpack.c.h.b16 %v476
    %v1725 = vunpack.c.l.b16 %v477
    %v1726 = vunpack.c.l.b16 %v478
    %v1727 = vunpack.c.h.b16 %v478
    %v1728 = vunpack.c.l.b16 %v479
    %v1729 = vunpack.c.h.b16 %v479
    %v1730 = vunpack.c.l.b16 %v480
    %v1731 = vunpack.c.h.b16 %v480
    %v1732 = vunpack.c.l.b16 %v481
    %v1733 = vunpack.c.l.b16 %v482
    %v1734 = vunpack.c.h.b16 %v482
    %v1735 = vunpack.c.l.b16 %v483
    %v1736 = vunpack.c.h.b16 %v483
    %v1737 = vunpack.c.l.b16 %v484
    %v1738 = vunpack.c.h.b16 %v484
    %v1739 = vunpack.c.l.b16 %v485
    %v1740 = vunpack.c.l.b16 %v486
    %v1741 = vunpack.c.h.b16 %v486
    %v1742 = vunpack.c.l.b16 %v487
    %v1743 = vunpack.c.h.b16 %v487
    %v1744 = vunpack.c.l.b16 %v488
    %v1745 = vunpack.c.h.b16 %v488
    %v1746 = vunpack.c.l.b16 %v489
    %v1747 = vunpack.c.l.b16 %v490
    %v1748 = vunpack.c.h.b16 %v490
    %v1749 = vunpack.c.l.b16 %v491
    %v1750 = vunpack.c.h.b16 %v491
    %v1751 = vunpack.c.l.b16 %v492
    %v1752 = vunpack.c.h.b16 %v492
    %v1753 = vunpack.c.l.b16 %v493
    %v1754 = vunpack.c.l.b16 %v494
    %v1755 = vunpack.c.h.b16 %v494
    %v1756 = vunpack.c.l.b16 %v495
    %v1757 = vunpack.c.h.b16 %v495
    %v1758 = vunpack.c.l.b16 %v496
    %v1759 = vunpack.c.h.b16 %v496
    %v1760 = vunpack.c.l.b16 %v497
    %v1761 = vunpack.c.l.b16 %v498
    %v1762 = vunpack.c.h.b16 %v498
    %v1763 = vunpack.c.l.b16 %v499
    %v1764 = vunpack.c.h.b16 %v499
    %v1765 = vunpack.c.l.b16 %v500
    %v1766 = vunpack.c.h.b16 %v500
    %v1767 = vunpack.c.l.b16 %v501
    %v1768 = vunpack.c.l.b16 %v502
    %v1769 = vunpack.c.h.b16 %v502
    %v1770 = vunpack.c.l.b16 %v503
    %v1771 = vunpack.c.h.b16 %v503
    %v1772 = vunpack.c.l.b16 %v504
    %v1773 = vunpack.c.h.b16 %v504
    %v1774 = vunpack.c.l.b16 %v505
    %v1775 = vunpack.c.l.b16 %v506
    %v1776 = vunpack.c.h.b16 %v506
    %v1777 = vunpack.c.l.b16 %v507
    %v1778 = vunpack.c.h.b16 %v507
    %v1779 = vunpack.c.l.b16 %v508
    %v1780 = vunpack.c.h.b16 %v508
    %v1781 = vunpack.c.l.b16 %v509
    %v1782 = vunpack.c.l.b16 %v510
    %v1783 = vunpack.c.h.b16 %v510
    %v1784 = vunpack.c.l.b16 %v511
    %v1785 = vunpack.c.h.b16 %v511
    %v1786 = vunpack.c.l.b16 %v512
    %v1787 = vunpack.c.h.b16 %v512
    %v1788 = vunpack.c.l.b16 %v513
    %v1789 = vunpack.c.l.b16 %v514
    %v1790 = vunpack.c.h.b16 %v514
    %v1791 = vunpack.c.l.b16 %v515
    %v1792 = vunpack.c.h.b16 %v515
    %v1793 = vunpack.c.l.b16 %v516
    %v1794 = vunpack.c.h.b16 %v516
    %v1795 = vunpack.c.l.b16 %v517
    %v1796 = vunpack.c.l.b16 %v518
    %v1797 = vunpack.c.h.b16 %v518
    %v1798 = vunpack.c.l.b16 %v519
    %v1799 = vunpack.c.h.b16 %v519
    %v1800 = vunpack.c.l.b16 %v520
    %v1801 = vunpack.c.h.b16 %v520
    %v1802 = vunpack.c.l.b16 %v521
    %v1803 = vunpack.c.l.b16 %v522
    %v1804 = vunpack.c.h.b16 %v522
    %v1805 = vunpack.c.l.b16 %v523
    %v1806 = vunpack.c.h.b16 %v523
    %v1807 = vunpack.c.l.b16 %v524
    %v1808 = vunpack.c.h.b16 %v524
    %v1809 = vunpack.c.l.b16 %v525
    %v1810 = vunpack.c.l.b16 %v526
    %v1811 = vunpack.c.h.b16 %v526
    %v1812 = vunpack.c.l.b16 %v527
    %v1813 = vunpack.c.h.b16 %v527
    %v1814 = vunpack.c.l.b16 %v528
    %v1815 = vunpack.c.h.b16 %v528
    %v1816 = vunpack.c.l.b16 %v529
    %v1817 = vunpack.c.l.b16 %v530
    %v1818 = vunpack.c.h.b16 %v530
    %v1819 = vunpack.c.l.b16 %v531
    %v1820 = vunpack.c.h.b16 %v531
    %v1821 = vunpack.c.l.b16 %v532
    %v1822 = vunpack.c.h.b16 %v532
    %v1823 = vunpack.c.l.b16 %v533
    %v1824 = vunpack.c.l.b16 %v534
    %v1825 = vunpack.c.h.b16 %v534
    %v1826 = vunpack.c.l.b16 %v535
    %v1827 = vunpack.c.h.b16 %v535
    %v1828 = vunpack.c.l.b16 %v536
    %v1829 = vunpack.c.h.b16 %v536
    %v1830 = vunpack.c.l.b16 %v537
    %v1831 = vunpack.c.l.b16 %v538
    %v1832 = vunpack.c.h.b16 %v538
    %v1833 = vunpack.c.l.b16 %v539
    %v1834 = vunpack.c.h.b16 %v539
    %v1835 = vunpack.c.l.b16 %v540
    %v1836 = vunpack.c.h.b16 %v540
    %v1837 = vunpack.c.l.b16 %v541
    %v1838 = vunpack.c.l.b16 %v542
    %v1839 = vunpack.c.h.b16 %v542
    %v1840 = vunpack.c.l.b16 %v543
    %v1841 = vunpack.c.h.b16 %v543
    %v1842 = vunpack.c.l.b16 %v544
    %v1843 = vunpack.c.h.b16 %v544
    %v1844 = vunpack.c.l.b16 %v545
    %v1845 = vunpack.c.l.b16 %v546
    %v1846 = vunpack.c.h.b16 %v546
    %v1847 = vunpack.c.l.b16 %v547
    %v1848 = vunpack.c.h.b16 %v547
    %v1849 = vunpack.c.l.b16 %v548
    %v1850 = vunpack.c.h.b16 %v548
    %v1851 = vunpack.c.l.b16 %v549
    %v1852 = vunpack.c.l.b16 %v550
    %v1853 = vunpack.c.h.b16 %v550
    %v1854 = vunpack.c.l.b16 %v551
    %v1855 = vunpack.c.h.b16 %v551
    %v1856 = vunpack.c.l.b16 %v552
    %v1857 = vunpack.c.h.b16 %v552
    %v1858 = vunpack.c.l.b16 %v553
    %v1859 = vpack.c.b16 %v1082, %v1075
    %v1860 = vpack.c.b16 %v1083, %v1076
    %v1861 = vpack.c.b16 %v1084, %v1077
    %v1862 = vpack.c.b16 %v1085, %v1078
    %v1863 = vpack.c.b16 %v1086, %v1079
    %v1864 = vpack.c.b16 %v1087, %v1080
    %v1865 = vpack.c.b16 %v1088, %v1081
    %v1866 = vpack.c.b16 %v1096, %v1089
    %v1867 = vpack.c.b16 %v1097, %v1090
    %v1868 = vpack.c.b16 %v1098, %v1091
    %v1869 = vpack.c.b16 %v1099, %v1092
    %v1870 = vpack.c.b16 %v1100, %v1093
    %v1871 = vpack.c.b16 %v1101, %v1094
    %v1872 = vpack.c.b16 %v1102, %v1095
    %v1873 = vpack.c.b16 %v1110, %v1103
    %v1874 = vpack.c.b16 %v1111, %v1104
    %v1875 = vpack.c.b16 %v1112, %v1105
    %v1876 = vpack.c.b16 %v1113, %v1106
    %v1877 = vpack.c.b16 %v1114, %v1107
    %v1878 = vpack.c.b16 %v1115, %v1108
    %v1879 = vpack.c.b16 %v1116, %v1109
    %v1880 = vpack.c.b16 %v1124, %v1117
    %v1881 = vpack.c.b16 %v1125, %v1118
    %v1882 = vpack.c.b16 %v1126, %v1119
    %v1883 = vpack.c.b16 %v1127, %v1120
    %v1884 = vpack.c.b16 %v1128, %v1121
    %v1885 = vpack.c.b16 %v1129, %v1122
    %v1886 = vpack.c.b16 %v1130, %v1123
    %v1887 = vpack.c.b16 %v1138, %v1131
    %v1888 = vpack.c.b16 %v1139, %v1132
    %v1889 = vpack.c.b16 %v1140, %v1133
    %v1890 = vpack.c.b16 %v1141, %v1134
    %v1891 = vpack.c.b16 %v1142, %v1135
    %v1892 = vpack.c.b16 %v1143, %v1136
    %v1893 = vpack.c.b16 %v1144, %v1137
    %v1894 = vpack.c.b16 %v1152, %v1145
    %v1895 = vpack.c.b16 %v1153, %v1146
    %v1896 = vpack.c.b16 %v1154, %v1147
    %v1897 = vpack.c.b16 %v1155, %v1148
    %v1898 = vpack.c.b16 %v1156, %v1149
    %v1899 = vpack.c.b16 %v1157, %v1150
    %v1900 = vpack.c.b16 %v1158, %v1151
    %v1901 = vpack.c.b16 %v1166, %v1159
    %v1902 = vpack.c.b16 %v1167, %v1160
    %v1903 = vpack.c.b16 %v1168, %v1161
    %v1904 = vpack.c.b16 %v1169, %v1162
    %v1905 = vpack.c.b16 %v1170, %v1163
    %v1906 = vpack.c.b16 %v1171, %v1164
    %v1907 = vpack.c.b16 %v1172, %v1165
    %v1908 = vpack.c.b16 %v1180, %v1173
    %v1909 = vpack.c.b16 %v1181, %v1174
    %v1910 = vpack.c.b16 %v1182, %v1175
    %v1911 = vpack.c.b16 %v1183, %v1176
    %v1912 = vpack.c.b16 %v1184, %v1177
    %v1913 = vpack.c.b16 %v1185, %v1178
    %v1914 = vpack.c.b16 %v1186, %v1179
    %v1915 = vpack.c.b16 %v1194, %v1187
    %v1916 = vpack.c.b16 %v1195, %v1188
    %v1917 = vpack.c.b16 %v1196, %v1189
    %v1918 = vpack.c.b16 %v1197, %v1190
    %v1919 = vpack.c.b16 %v1198, %v1191
    %v1920 = vpack.c.b16 %v1199, %v1192
    %v1921 = vpack.c.b16 %v1200, %v1193
    %v1922 = vpack.c.b16 %v1208, %v1201
    %v1923 = vpack.c.b16 %v1209, %v1202
    %v1924 = vpack.c.b16 %v1210, %v1203
    %v1925 = vpack.c.b16 %v1211, %v1204
    %v1926 = vpack.c.b16 %v1212, %v1205
    %v1927 = vpack.c.b16 %v1213, %v1206
    %v1928 = vpack.c.b16 %v1214, %v1207
    %v1929 = vpack.c.b16 %v1222, %v1215
    %v1930 = vpack.c.b16 %v1223, %v1216
    %v1931 = vpack.c.b16 %v1224, %v1217
    %v1932 = vpack.c.b16 %v1225, %v1218
    %v1933 = vpack.c.b16 %v1226, %v1219
    %v1934 = vpack.c.b16 %v1227, %v1220
    %v1935 = vpack.c.b16 %v1228, %v1221
    %v1936 = vpack.c.b16 %v1236, %v1229
    %v1937 = vpack.c.b16 %v1237, %v1230
    %v1938 = vpack.c.b16 %v1238, %v1231
    %v1939 = vpack.c.b16 %v1239, %v1232
    %v1940 = vpack.c.b16 %v1240, %v1233
    %v1941 = vpack.c.b16 %v1241, %v1234
    %v1942 = vpack.c.b16 %v1242, %v1235
    %v1943 = vpack.c.b16 %v1250, %v1243
    %v1944 = vpack.c.b16 %v1251, %v1244
    %v1945 = vpack.c.b16 %v1252, %v1245
    %v1946 = vpack.c.b16 %v1253, %v1246
    %v1947 = vpack.c.b16 %v1254, %v1247
    %v1948 = vpack.c.b16 %v1255, %v1248
    %v1949 = vpack.c.b16 %v1256, %v1249
    %v1950 = vpack.c.b16 %v1264, %v1257
    %v1951 = vpack.c.b16 %v1265, %v1258
    %v1952 = vpack.c.b16 %v1266, %v1259
    %v1953 = vpack.c.b16 %v1267, %v1260
    %v1954 = vpack.c.b16 %v1268, %v1261
    %v1955 = vpack.c.b16 %v1269, %v1262
    %v1956 = vpack.c.b16 %v1270, %v1263
    %v1957 = vpack.c.b16 %v1278, %v1271
    %v1958 = vpack.c.b16 %v1279, %v1272
    %v1959 = vpack.c.b16 %v1280, %v1273
    %v1960 = vpack.c.b16 %v1281, %v1274
    %v1961 = vpack.c.b16 %v1282, %v1275
    %v1962 = vpack.c.b16 %v1283, %v1276
    %v1963 = vpack.c.b16 %v1284, %v1277
    %v1964 = vpack.c.b16 %v1292, %v1285
    %v1965 = vpack.c.b16 %v1293, %v1286
    %v1966 = vpack.c.b16 %v1294, %v1287
    %v1967 = vpack.c.b16 %v1295, %v1288
    %v1968 = vpack.c.b16 %v1296, %v1289
    %v1969 = vpack.c.b16 %v1297, %v1290
    %v1970 = vpack.c.b16 %v1298, %v1291
    %v1971 = vpack.c.b16 %v1306, %v1299
    %v1972 = vpack.c.b16 %v1307, %v1300
    %v1973 = vpack.c.b16 %v1308, %v1301
    %v1974 = vpack.c.b16 %v1309, %v1302
    %v1975 = vpack.c.b16 %v1310, %v1303
    %v1976 = vpack.c.b16 %v1311, %v1304
    %v1977 = vpack.c.b16 %v1312, %v1305
    %v1978 = vpack.c.b16 %v1320, %v1313
    %v1979 = vpack.c.b16 %v1321, %v1314
    %v1980 = vpack.c.b16 %v1322, %v1315
    %v1981 = vpack.c.b16 %v1323, %v1316
    %v1982 = vpack.c.b16 %v1324, %v1317
    %v1983 = vpack.c.b16 %v1325, %v1318
    %v1984 = vpack.c.b16 %v1326, %v1319
    %v1985 = vpack.c.b16 %v1334, %v1327
    %v1986 = vpack.c.b16 %v1335, %v1328
    %v1987 = vpack.c.b16 %v1336, %v1329
    %v1988 = vpack.c.b16 %v1337, %v1330
    %v1989 = vpack.c.b16 %v1338, %v1331
    %v1990 = vpack.c.b16 %v1339, %v1332
    %v1991 = vpack.c.b16 %v1340, %v1333
    %v1992 = vpack.c.b16 %v1348, %v1341
    %v1993 = vpack.c.b16 %v1349, %v1342
    %v1994 = vpack.c.b16 %v1350, %v1343
    %v1995 = vpack.c.b16 %v1351, %v1344
    %v1996 = vpack.c.b16 %v1352, %v1345
    %v1997 = vpack.c.b16 %v1353, %v1346
    %v1998 = vpack.c.b16 %v1354, %v1347
    %v1999 = vpack.c.b16 %v1362, %v1355
    %v2000 = vpack.c.b16 %v1363, %v1356
    %v2001 = vpack.c.b16 %v1364, %v1357
    %v2002 = vpack.c.b16 %v1365, %v1358
    %v2003 = vpack.c.b16 %v1366, %v1359
    %v2004 = vpack.c.b16 %v1367, %v1360
    %v2005 = vpack.c.b16 %v1368, %v1361
    %v2006 = vpack.c.b16 %v1376, %v1369
    %v2007 = vpack.c.b16 %v1377, %v1370
    %v2008 = vpack.c.b16 %v1378, %v1371
    %v2009 = vpack.c.b16 %v1379, %v1372
    %v2010 = vpack.c.b16 %v1380, %v1373
    %v2011 = vpack.c.b16 %v1381, %v1374
    %v2012 = vpack.c.b16 %v1382, %v1375
    %v2013 = vpack.c.b16 %v1390, %v1383
    %v2014 = vpack.c.b16 %v1391, %v1384
    %v2015 = vpack.c.b16 %v1392, %v1385
    %v2016 = vpack.c.b16 %v1393, %v1386
    %v2017 = vpack.c.b16 %v1394, %v1387
    %v2018 = vpack.c.b16 %v1395, %v1388
    %v2019 = vpack.c.b16 %v1396, %v1389
    %v2020 = vpack.c.b16 %v1404, %v1397
    %v2021 = vpack.c.b16 %v1405, %v1398
    %v2022 = vpack.c.b16 %v1406, %v1399
    %v2023 = vpack.c.b16 %v1407, %v1400
    %v2024 = vpack.c.b16 %v1408, %v1401
    %v2025 = vpack.c.b16 %v1409, %v1402
    %v2026 = vpack.c.b16 %v1410, %v1403
    %v2027 = vpack.c.b16 %v1418, %v1411
    %v2028 = vpack.c.b16 %v1419, %v1412
    %v2029 = vpack.c.b16 %v1420, %v1413
    %v2030 = vpack.c.b16 %v1421, %v1414
    %v2031 = vpack.c.b16 %v1422, %v1415
    %v2032 = vpack.c.b16 %v1423, %v1416
    %v2033 = vpack.c.b16 %v1424, %v1417
    %v2034 = vpack.c.b16 %v1432, %v1425
    %v2035 = vpack.c.b16 %v1433, %v1426
    %v2036 = vpack.c.b16 %v1434, %v1427
    %v2037 = vpack.c.b16 %v1435, %v1428
    %v2038 = vpack.c.b16 %v1436, %v1429
    %v2039 = vpack.c.b16 %v1437, %v1430
    %v2040 = vpack.c.b16 %v1438, %v1431
    %v2041 = vpack.c.b16 %v1446, %v1439
    %v2042 = vpack.c.b16 %v1447, %v1440
    %v2043 = vpack.c.b16 %v1448, %v1441
    %v2044 = vpack.c.b16 %v1449, %v1442
    %v2045 = vpack.c.b16 %v1450, %v1443
    %v2046 = vpack.c.b16 %v1451, %v1444
    %v2047 = vpack.c.b16 %v1452, %v1445
    %v2048 = vpack.c.b16 %v1460, %v1453
    %v2049 = vpack.c.b16 %v1461, %v1454
    %v2050 = vpack.c.b16 %v1462, %v1455
    %v2051 = vpack.c.b16 %v1463, %v1456
    %v2052 = vpack.c.b16 %v1464, %v1457
    %v2053 = vpack.c.b16 %v1465, %v1458
    %v2054 = vpack.c.b16 %v1466, %v1459
    %v2055 = vpack.c.b16 %v1474, %v1467
    %v2056 = vpack.c.b16 %v1475, %v1468
    %v2057 = vpack.c.b16 %v1476, %v1469
    %v2058 = vpack.c.b16 %v1477, %v1470
    %v2059 = vpack.c.b16 %v1478, %v1471
    %v2060 = vpack.c.b16 %v1479, %v1472
    %v2061 = vpack.c.b16 %v1480, %v1473
    %v2062 = vpack.c.b16 %v1488, %v1481
    %v2063 = vpack.c.b16 %v1489, %v1482
    %v2064 = vpack.c.b16 %v1490, %v1483
    %v2065 = vpack.c.b16 %v1491, %v1484
    %v2066 = vpack.c.b16 %v1492, %v1485
    %v2067 = vpack.c.b16 %v1493, %v1486
    %v2068 = vpack.c.b16 %v1494, %v1487
    %v2069 = vpack.c.b16 %v1502, %v1495
    %v2070 = vpack.c.b16 %v1503, %v1496
    %v2071 = vpack.c.b16 %v1504, %v1497
    %v2072 = vpack.c.b16 %v1505, %v1498
    %v2073 = vpack.c.b16 %v1506, %v1499
    %v2074 = vpack.c.b16 %v1507, %v1500
    %v2075 = vpack.c.b16 %v1508, %v1501
    %v2076 = vpack.c.b16 %v1516, %v1509
    %v2077 = vpack.c.b16 %v1517, %v1510
    %v2078 = vpack.c.b16 %v1518, %v1511
    %v2079 = vpack.c.b16 %v1519, %v1512
    %v2080 = vpack.c.b16 %v1520, %v1513
    %v2081 = vpack.c.b16 %v1521, %v1514
    %v2082 = vpack.c.b16 %v1522, %v1515
    %v2083 = vpack.c.b16 %v1530, %v1523
    %v2084 = vpack.c.b16 %v1531, %v1524
    %v2085 = vpack.c.b16 %v1532, %v1525
    %v2086 = vpack.c.b16 %v1533, %v1526
    %v2087 = vpack.c.b16 %v1534, %v1527
    %v2088 = vpack.c.b16 %v1535, %v1528
    %v2089 = vpack.c.b16 %v1536, %v1529
    %v2090 = vpack.c.b16 %v1544, %v1537
    %v2091 = vpack.c.b16 %v1545, %v1538
    %v2092 = vpack.c.b16 %v1546, %v1539
    %v2093 = vpack.c.b16 %v1547, %v1540
    %v2094 = vpack.c.b16 %v1548, %v1541
    %v2095 = vpack.c.b16 %v1549, %v1542
    %v2096 = vpack.c.b16 %v1550, %v1543
    %v2097 = vpack.c.b16 %v1558, %v1551
    %v2098 = vpack.c.b16 %v1559, %v1552
    %v2099 = vpack.c.b16 %v1560, %v1553
    %v2100 = vpack.c.b16 %v1561, %v1554
    %v2101 = vpack.c.b16 %v1562, %v1555
    %v2102 = vpack.c.b16 %v1563, %v1556
    %v2103 = vpack.c.b16 %v1564, %v1557
    %v2104 = vpack.c.b16 %v1572, %v1565
    %v2105 = vpack.c.b16 %v1573, %v1566
    %v2106 = vpack.c.b16 %v1574, %v1567
    %v2107 = vpack.c.b16 %v1575, %v1568
    %v2108 = vpack.c.b16 %v1576, %v1569
    %v2109 = vpack.c.b16 %v1577, %v1570
    %v2110 = vpack.c.b16 %v1578, %v1571
    %v2111 = vpack.c.b16 %v1586, %v1579
    %v2112 = vpack.c.b16 %v1587, %v1580
    %v2113 = vpack.c.b16 %v1588, %v1581
    %v2114 = vpack.c.b16 %v1589, %v1582
    %v2115 = vpack.c.b16 %v1590, %v1583
    %v2116 = vpack.c.b16 %v1591, %v1584
    %v2117 = vpack.c.b16 %v1592, %v1585
    %v2118 = vpack.c.b16 %v1600, %v1593
    %v2119 = vpack.c.b16 %v1601, %v1594
    %v2120 = vpack.c.b16 %v1602, %v1595
    %v2121 = vpack.c.b16 %v1603, %v1596
    %v2122 = vpack.c.b16 %v1604, %v1597
    %v2123 = vpack.c.b16 %v1605, %v1598
    %v2124 = vpack.c.b16 %v1606, %v1599
    %v2125 = vpack.c.b16 %v1614, %v1607
    %v2126 = vpack.c.b16 %v1615, %v1608
    %v2127 = vpack.c.b16 %v1616, %v1609
    %v2128 = vpack.c.b16 %v1617, %v1610
    %v2129 = vpack.c.b16 %v1618, %v1611
    %v2130 = vpack.c.b16 %v1619, %v1612
    %v2131 = vpack.c.b16 %v1620, %v1613
    %v2132 = vpack.c.b16 %v1628, %v1621
    %v2133 = vpack.c.b16 %v1629, %v1622
    %v2134 = vpack.c.b16 %v1630, %v1623
    %v2135 = vpack.c.b16 %v1631, %v1624
    %v2136 = vpack.c.b16 %v1632, %v1625
    %v2137 = vpack.c.b16 %v1633, %v1626
    %v2138 = vpack.c.b16 %v1634, %v1627
    %v2139 = vpack.c.b16 %v1642, %v1635
    %v2140 = vpack.c.b16 %v1643, %v1636
    %v2141 = vpack.c.b16 %v1644, %v1637
    %v2142 = vpack.c.b16 %v1645, %v1638
    %v2143 = vpack.c.b16 %v1646, %v1639
    %v2144 = vpack.c.b16 %v1647, %v1640
    %v2145 = vpack.c.b16 %v1648, %v1641
    %v2146 = vpack.c.b16 %v1656, %v1649
    %v2147 = vpack.c.b16 %v1657, %v1650
    %v2148 = vpack.c.b16 %v1658, %v1651
    %v2149 = vpack.c.b16 %v1659, %v1652
    %v2150 = vpack.c.b16 %v1660, %v1653
    %v2151 = vpack.c.b16 %v1661, %v1654
    %v2152 = vpack.c.b16 %v1662, %v1655
    %v2153 = vpack.c.b16 %v1670, %v1663
    %v2154 = vpack.c.b16 %v1671, %v1664
    %v2155 = vpack.c.b16 %v1672, %v1665
    %v2156 = vpack.c.b16 %v1673, %v1666
    %v2157 = vpack.c.b16 %v1674, %v1667
    %v2158 = vpack.c.b16 %v1675, %v1668
    %v2159 = vpack.c.b16 %v1676, %v1669
    %v2160 = vpack.c.b16 %v1684, %v1677
    %v2161 = vpack.c.b16 %v1685, %v1678
    %v2162 = vpack.c.b16 %v1686, %v1679
    %v2163 = vpack.c.b16 %v1687, %v1680
    %v2164 = vpack.c.b16 %v1688, %v1681
    %v2165 = vpack.c.b16 %v1689, %v1682
    %v2166 = vpack.c.b16 %v1690, %v1683
    %v2167 = vpack.c.b16 %v1698, %v1691
    %v2168 = vpack.c.b16 %v1699, %v1692
    %v2169 = vpack.c.b16 %v1700, %v1693
    %v2170 = vpack.c.b16 %v1701, %v1694
    %v2171 = vpack.c.b16 %v1702, %v1695
    %v2172 = vpack.c.b16 %v1703, %v1696
    %v2173 = vpack.c.b16 %v1704, %v1697
    %v2174 = vpack.c.b16 %v1712, %v1705
    %v2175 = vpack.c.b16 %v1713, %v1706
    %v2176 = vpack.c.b16 %v1714, %v1707
    %v2177 = vpack.c.b16 %v1715, %v1708
    %v2178 = vpack.c.b16 %v1716, %v1709
    %v2179 = vpack.c.b16 %v1717, %v1710
    %v2180 = vpack.c.b16 %v1718, %v1711
    %v2181 = vpack.c.b16 %v1726, %v1719
    %v2182 = vpack.c.b16 %v1727, %v1720
    %v2183 = vpack.c.b16 %v1728, %v1721
    %v2184 = vpack.c.b16 %v1729, %v1722
    %v2185 = vpack.c.b16 %v1730, %v1723
    %v2186 = vpack.c.b16 %v1731, %v1724
    %v2187 = vpack.c.b16 %v1732, %v1725
    %v2188 = vpack.c.b16 %v1740, %v1733
    %v2189 = vpack.c.b16 %v1741, %v1734
    %v2190 = vpack.c.b16 %v1742, %v1735
    %v2191 = vpack.c.b16 %v1743, %v1736
    %v2192 = vpack.c.b16 %v1744, %v1737
    %v2193 = vpack.c.b16 %v1745, %v1738
    %v2194 = vpack.c.b16 %v1746, %v1739
    %v2195 = vpack.c.b16 %v1754, %v1747
    %v2196 = vpack.c.b16 %v1755, %v1748
    %v2197 = vpack.c.b16 %v1756, %v1749
    %v2198 = vpack.c.b16 %v1757, %v1750
    %v2199 = vpack.c.b16 %v1758, %v1751
    %v2200 = vpack.c.b16 %v1759, %v1752
    %v2201 = vpack.c.b16 %v1760, %v1753
    %v2202 = vpack.c.b16 %v1768, %v1761
    %v2203 = vpack.c.b16 %v1769, %v1762
    %v2204 = vpack.c.b16 %v1770, %v1763
    %v2205 = vpack.c.b16 %v1771, %v1764
    %v2206 = vpack.c.b16 %v1772, %v1765
    %v2207 = vpack.c.b16 %v1773, %v1766
    %v2208 = vpack.c.b16 %v1774, %v1767
    %v2209 = vpack.c.b16 %v1782, %v1775
    %v2210 = vpack.c.b16 %v1783, %v1776
    %v2211 = vpack.c.b16 %v1784, %v1777
    %v2212 = vpack.c.b16 %v1785, %v1778
    %v2213 = vpack.c.b16 %v1786, %v1779
    %v2214 = vpack.c.b16 %v1787, %v1780
    %v2215 = vpack.c.b16 %v1788, %v1781
    %v2216 = vpack.c.b16 %v1796, %v1789
    %v2217 = vpack.c.b16 %v1797, %v1790
    %v2218 = vpack.c.b16 %v1798, %v1791
    %v2219 = vpack.c.b16 %v1799, %v1792
    %v2220 = vpack.c.b16 %v1800, %v1793
    %v2221 = vpack.c.b16 %v1801, %v1794
    %v2222 = vpack.c.b16 %v1802, %v1795
    %v2223 = vpack.c.b16 %v1810, %v1803
    %v2224 = vpack.c.b16 %v1811, %v1804
    %v2225 = vpack.c.b16 %v1812, %v1805
    %v2226 = vpack.c.b16 %v1813, %v1806
    %v2227 = vpack.c.b16 %v1814, %v1807
    %v2228 = vpack.c.b16 %v1815, %v1808
    %v2229 = vpack.c.b16 %v1816, %v1809
    %v2230 = vpack.c.b16 %v1824, %v1817
    %v2231 = vpack.c.b16 %v1825, %v1818
    %v2232 = vpack.c.b16 %v1826, %v1819
    %v2233 = vpack.c.b16 %v1827, %v1820
    %v2234 = vpack.c.b16 %v1828, %v1821
    %v2235 = vpack.c.b16 %v1829, %v1822
    %v2236 = vpack.c.b16 %v1830, %v1823
    %v2237 = vpack.c.b16 %v1838, %v1831
    %v2238 = vpack.c.b16 %v1839, %v1832
    %v2239 = vpack.c.b16 %v1840, %v1833
    %v2240 = vpack.c.b16 %v1841, %v1834
    %v2241 = vpack.c.b16 %v1842, %v1835
    %v2242 = vpack.c.b16 %v1843, %v1836
    %v2243 = vpack.c.b16 %v1844, %v1837
    %v2244 = vpack.c.b16 %v1852, %v1845
    %v2245 = vpack.c.b16 %v1853, %v1846
    %v2246 = vpack.c.b16 %v1854, %v1847
    %v2247 = vpack.c.b16 %v1855, %v1848
    %v2248 = vpack.c.b16 %v1856, %v1849
    %v2249 = vpack.c.b16 %v1857, %v1850
    %v2250 = vpack.c.b16 %v1858, %v1851
    %2643 = vmatprep.subr.bf16.mxu0 %v1860
    %2644 = vmatpush1.bf16.msra.mxu0 %v1859
    %2645 = vmatprep.subr.bf16.mxu0 %v1867
    %2646 = vmatpush1.bf16.msra.mxu0 %v1866
    %2647 = vmatprep.subr.bf16.mxu0 %v1874
    %2648 = vmatpush1.bf16.msra.mxu0 %v1873
    %2649 = vmatprep.subr.bf16.mxu0 %v1881
    %2650 = vmatpush1.bf16.msra.mxu0 %v1880
    %2651 = vmatprep.subr.bf16.mxu0 %v1888
    %2652 = vmatpush1.bf16.msra.mxu0 %v1887
    %2653 = vmatprep.subr.bf16.mxu0 %v1895
    %2654 = vmatpush1.bf16.msra.mxu0 %v1894
    %2655 = vmatprep.subr.bf16.mxu0 %v1902
    %2656 = vmatpush1.bf16.msra.mxu0 %v1901
    %2657 = vmatprep.subr.bf16.mxu0 %v1909
    %2658 = vmatpush1.bf16.msra.mxu0 %v1908
    %2659 = vmatprep.subr.bf16.mxu0 %v1916
    %2660 = vmatpush1.bf16.msra.mxu0 %v1915
    %2661 = vmatprep.subr.bf16.mxu0 %v1923
    %2662 = vmatpush1.bf16.msra.mxu0 %v1922
    %2663 = vmatprep.subr.bf16.mxu0 %v1930
    %2664 = vmatpush1.bf16.msra.mxu0 %v1929
    %2665 = vmatprep.subr.bf16.mxu0 %v1937
    %2666 = vmatpush1.bf16.msra.mxu0 %v1936
    %2667 = vmatprep.subr.bf16.mxu0 %v1944
    %2668 = vmatpush1.bf16.msra.mxu0 %v1943
    %2669 = vmatprep.subr.bf16.mxu0 %v1951
    %2670 = vmatpush1.bf16.msra.mxu0 %v1950
    %2671 = vmatprep.subr.bf16.mxu0 %v1958
    %2672 = vmatpush1.bf16.msra.mxu0 %v1957
    %2673 = vmatprep.subr.bf16.mxu0 %v1965
    %2674 = vmatpush1.bf16.msra.mxu0 %v1964
    %2675 = vmatprep.mubr.bf16.mxu0 %v614
    %2676 = vmatmul.mubr.bf16.gmra.mrb[0].mxu0 %v613
    %v2677 = vpop.f32.mrb[0].mxu0
    %v2678 = vadd.f32 %v559, %v2677
    %v2679 = vpop.f32.mrb[0].mxu0
    %v2680 = vadd.f32 %v563, %v2679
    %v2681 = vpop.f32.mrb[0].mxu0
    %v2682 = vadd.f32 %v559, %v2681
    %v2683 = vpop.f32.mrb[0].mxu0
    %v2684 = vadd.f32 %v563, %v2683
    %2685 = vdwg.mxu0
    %2686 = vmatprep.subr.bf16.mxu0 %v1972
    %2687 = vmatpush1.bf16.msra.mxu0 %v1971
    %2688 = vmatprep.subr.bf16.mxu0 %v1979
    %2689 = vmatpush1.bf16.msra.mxu0 %v1978
    %2690 = vmatprep.subr.bf16.mxu0 %v1986
    %2691 = vmatpush1.bf16.msra.mxu0 %v1985
    %2692 = vmatprep.subr.bf16.mxu0 %v1993
    %2693 = vmatpush1.bf16.msra.mxu0 %v1992
    %2694 = vmatprep.subr.bf16.mxu0 %v2000
    %2695 = vmatpush1.bf16.msra.mxu0 %v1999
    %2696 = vmatprep.subr.bf16.mxu0 %v2007
    %2697 = vmatpush1.bf16.msra.mxu0 %v2006
    %2698 = vmatprep.subr.bf16.mxu0 %v2014
    %2699 = vmatpush1.bf16.msra.mxu0 %v2013
    %2700 = vmatprep.subr.bf16.mxu0 %v2021
    %2701 = vmatpush1.bf16.msra.mxu0 %v2020
    %2702 = vmatprep.subr.bf16.mxu0 %v2028
    %2703 = vmatpush1.bf16.msra.mxu0 %v2027
    %2704 = vmatprep.subr.bf16.mxu0 %v2035
    %2705 = vmatpush1.bf16.msra.mxu0 %v2034
    %2706 = vmatprep.subr.bf16.mxu0 %v2042
    %2707 = vmatpush1.bf16.msra.mxu0 %v2041
    %2708 = vmatprep.subr.bf16.mxu0 %v2049
    %2709 = vmatpush1.bf16.msra.mxu0 %v2048
    %2710 = vmatprep.subr.bf16.mxu0 %v2056
    %2711 = vmatpush1.bf16.msra.mxu0 %v2055
    %2712 = vmatprep.subr.bf16.mxu0 %v2063
    %2713 = vmatpush1.bf16.msra.mxu0 %v2062
    %2714 = vmatprep.subr.bf16.mxu0 %v2070
    %2715 = vmatpush1.bf16.msra.mxu0 %v2069
    %2716 = vmatprep.subr.bf16.mxu0 %v2077
    %2717 = vmatpush1.bf16.msra.mxu0 %v2076
    %2718 = vmatprep.mubr.bf16.mxu0 %v616
    %2719 = vmatmul.mubr.bf16.gmra.mrb[0].mxu0 %v615
    %v2720 = vpop.f32.mrb[0].mxu0
    %v2721 = vadd.f32 %v2678, %v2720
    %v2722 = vpop.f32.mrb[0].mxu0
    %v2723 = vadd.f32 %v2680, %v2722
    %v2724 = vpop.f32.mrb[0].mxu0
    %v2725 = vadd.f32 %v2682, %v2724
    %v2726 = vpop.f32.mrb[0].mxu0
    %v2727 = vadd.f32 %v2684, %v2726
    %2728 = vdwg.mxu0
    %2729 = vmatprep.subr.bf16.mxu0 %v2084
    %2730 = vmatpush1.bf16.msra.mxu0 %v2083
    %2731 = vmatprep.subr.bf16.mxu0 %v2091
    %2732 = vmatpush1.bf16.msra.mxu0 %v2090
    %2733 = vmatprep.subr.bf16.mxu0 %v2098
    %2734 = vmatpush1.bf16.msra.mxu0 %v2097
    %2735 = vmatprep.subr.bf16.mxu0 %v2105
    %2736 = vmatpush1.bf16.msra.mxu0 %v2104
    %2737 = vmatprep.subr.bf16.mxu0 %v2112
    %2738 = vmatpush1.bf16.msra.mxu0 %v2111
    %2739 = vmatprep.subr.bf16.mxu0 %v2119
    %2740 = vmatpush1.bf16.msra.mxu0 %v2118
    %2741 = vmatprep.subr.bf16.mxu0 %v2126
    %2742 = vmatpush1.bf16.msra.mxu0 %v2125
    %2743 = vmatprep.subr.bf16.mxu0 %v2133
    %2744 = vmatpush1.bf16.msra.mxu0 %v2132
    %2745 = vmatprep.subr.bf16.mxu0 %v2140
    %2746 = vmatpush1.bf16.msra.mxu0 %v2139
    %2747 = vmatprep.subr.bf16.mxu0 %v2147
    %2748 = vmatpush1.bf16.msra.mxu0 %v2146
    %2749 = vmatprep.subr.bf16.mxu0 %v2154
    %2750 = vmatpush1.bf16.msra.mxu0 %v2153
    %2751 = vmatprep.subr.bf16.mxu0 %v2161
    %2752 = vmatpush1.bf16.msra.mxu0 %v2160
    %2753 = vmatprep.subr.bf16.mxu0 %v2168
    %2754 = vmatpush1.bf16.msra.mxu0 %v2167
    %2755 = vmatprep.subr.bf16.mxu0 %v2175
    %2756 = vmatpush1.bf16.msra.mxu0 %v2174
    %2757 = vmatprep.subr.bf16.mxu0 %v2182
    %2758 = vmatpush1.bf16.msra.mxu0 %v2181
    %2759 = vmatprep.subr.bf16.mxu0 %v2189
    %2760 = vmatpush1.bf16.msra.mxu0 %v2188
    %2761 = vmatprep.mubr.bf16.mxu0 %v618
    %2762 = vmatmul.mubr.bf16.gmra.mrb[0].mxu0 %v617
    %v2763 = vpop.f32.mrb[0].mxu0
    %v2764 = vadd.f32 %v2721, %v2763
    %v2765 = vpop.f32.mrb[0].mxu0
    %v2766 = vadd.f32 %v2723, %v2765
    %v2767 = vpop.f32.mrb[0].mxu0
    %v2768 = vadd.f32 %v2725, %v2767
    %v2769 = vpop.f32.mrb[0].mxu0
    %v2770 = vadd.f32 %v2727, %v2769
    %2771 = vdwg.mxu0
    %2772 = vmatprep.subr.bf16.mxu0 %v2196
    %2773 = vmatpush1.bf16.msra.mxu0 %v2195
    %2774 = vmatprep.subr.bf16.mxu0 %v2203
    %2775 = vmatpush1.bf16.msra.mxu0 %v2202
    %2776 = vmatprep.subr.bf16.mxu0 %v2210
    %2777 = vmatpush1.bf16.msra.mxu0 %v2209
    %2778 = vmatprep.subr.bf16.mxu0 %v2217
    %2779 = vmatpush1.bf16.msra.mxu0 %v2216
    %2780 = vmatprep.subr.bf16.mxu0 %v2224
    %2781 = vmatpush1.bf16.msra.mxu0 %v2223
    %2782 = vmatprep.subr.bf16.mxu0 %v2231
    %2783 = vmatpush1.bf16.msra.mxu0 %v2230
    %2784 = vmatprep.subr.bf16.mxu0 %v2238
    %2785 = vmatpush1.bf16.msra.mxu0 %v2237
    %2786 = vmatprep.subr.bf16.mxu0 %v2245
    %2787 = vmatpush1.bf16.msra.mxu0 %v2244
    %2788 = vmatprep.subr.bf16.mxu0 0
    %2789 = vmatpush1.bf16.msra.mxu0 0
    %2790 = vmatprep.subr.bf16.mxu0 0
    %2791 = vmatpush1.bf16.msra.mxu0 0
    %2792 = vmatprep.subr.bf16.mxu0 0
    %2793 = vmatpush1.bf16.msra.mxu0 0
    %2794 = vmatprep.subr.bf16.mxu0 0
    %2795 = vmatpush1.bf16.msra.mxu0 0
    %2796 = vmatprep.subr.bf16.mxu0 0
    %2797 = vmatpush1.bf16.msra.mxu0 0
    %2798 = vmatprep.subr.bf16.mxu0 0
    %2799 = vmatpush1.bf16.msra.mxu0 0
    %2800 = vmatprep.subr.bf16.mxu0 0
    %2801 = vmatpush1.bf16.msra.mxu0 0
    %2802 = vmatprep.subr.bf16.mxu0 0
    %2803 = vmatpush1.bf16.msra.mxu0 0
    %2804 = vmatprep.mubr.bf16.mxu0 0
    %2805 = vmatmul.mubr.bf16.gmra.mrb[0].mxu0 %v619
    %v2806 = vpop.f32.mrb[0].mxu0
    %v2807 = vadd.f32 %v2764, %v2806
    %v2808 = vpop.f32.mrb[0].mxu0
    %v2809 = vadd.f32 %v2766, %v2808
    %v2810 = vpop.f32.mrb[0].mxu0
    %v2811 = vadd.f32 %v2768, %v2810
    %v2812 = vpop.f32.mrb[0].mxu0
    %v2813 = vadd.f32 %v2770, %v2812
    %2814 = vdwg.mxu0
    %2815 = vmatprep.subr.bf16.mxu0 %v1862
    %2816 = vmatpush1.bf16.msra.mxu0 %v1861
    %2817 = vmatprep.subr.bf16.mxu0 %v1869
    %2818 = vmatpush1.bf16.msra.mxu0 %v1868
    %2819 = vmatprep.subr.bf16.mxu0 %v1876
    %2820 = vmatpush1.bf16.msra.mxu0 %v1875
    %2821 = vmatprep.subr.bf16.mxu0 %v1883
    %2822 = vmatpush1.bf16.msra.mxu0 %v1882
    %2823 = vmatprep.subr.bf16.mxu0 %v1890
    %2824 = vmatpush1.bf16.msra.mxu0 %v1889
    %2825 = vmatprep.subr.bf16.mxu0 %v1897
    %2826 = vmatpush1.bf16.msra.mxu0 %v1896
    %2827 = vmatprep.subr.bf16.mxu0 %v1904
    %2828 = vmatpush1.bf16.msra.mxu0 %v1903
    %2829 = vmatprep.subr.bf16.mxu0 %v1911
    %2830 = vmatpush1.bf16.msra.mxu0 %v1910
    %2831 = vmatprep.subr.bf16.mxu0 %v1918
    %2832 = vmatpush1.bf16.msra.mxu0 %v1917
    %2833 = vmatprep.subr.bf16.mxu0 %v1925
    %2834 = vmatpush1.bf16.msra.mxu0 %v1924
    %2835 = vmatprep.subr.bf16.mxu0 %v1932
    %2836 = vmatpush1.bf16.msra.mxu0 %v1931
    %2837 = vmatprep.subr.bf16.mxu0 %v1939
    %2838 = vmatpush1.bf16.msra.mxu0 %v1938
    %2839 = vmatprep.subr.bf16.mxu0 %v1946
    %2840 = vmatpush1.bf16.msra.mxu0 %v1945
    %2841 = vmatprep.subr.bf16.mxu0 %v1953
    %2842 = vmatpush1.bf16.msra.mxu0 %v1952
    %2843 = vmatprep.subr.bf16.mxu0 %v1960
    %2844 = vmatpush1.bf16.msra.mxu0 %v1959
    %2845 = vmatprep.subr.bf16.mxu0 %v1967
    %2846 = vmatpush1.bf16.msra.mxu0 %v1966
    %2847 = vmatprep.mubr.bf16.mxu0 %v614
    %2848 = vmatmul.mubr.bf16.gmra.mrb[0].mxu0 %v613
    %v2849 = vpop.f32.mrb[0].mxu0
    %v2850 = vadd.f32 %v567, %v2849
    %v2851 = vpop.f32.mrb[0].mxu0
    %v2852 = vadd.f32 %v571, %v2851
    %v2853 = vpop.f32.mrb[0].mxu0
    %v2854 = vadd.f32 %v567, %v2853
    %v2855 = vpop.f32.mrb[0].mxu0
    %v2856 = vadd.f32 %v571, %v2855
    %2857 = vdwg.mxu0
    %2858 = vmatprep.subr.bf16.mxu0 %v1974
    %2859 = vmatpush1.bf16.msra.mxu0 %v1973
    %2860 = vmatprep.subr.bf16.mxu0 %v1981
    %2861 = vmatpush1.bf16.msra.mxu0 %v1980
    %2862 = vmatprep.subr.bf16.mxu0 %v1988
    %2863 = vmatpush1.bf16.msra.mxu0 %v1987
    %2864 = vmatprep.subr.bf16.mxu0 %v1995
    %2865 = vmatpush1.bf16.msra.mxu0 %v1994
    %2866 = vmatprep.subr.bf16.mxu0 %v2002
    %2867 = vmatpush1.bf16.msra.mxu0 %v2001
    %2868 = vmatprep.subr.bf16.mxu0 %v2009
    %2869 = vmatpush1.bf16.msra.mxu0 %v2008
    %2870 = vmatprep.subr.bf16.mxu0 %v2016
    %2871 = vmatpush1.bf16.msra.mxu0 %v2015
    %2872 = vmatprep.subr.bf16.mxu0 %v2023
    %2873 = vmatpush1.bf16.msra.mxu0 %v2022
    %2874 = vmatprep.subr.bf16.mxu0 %v2030
    %2875 = vmatpush1.bf16.msra.mxu0 %v2029
    %2876 = vmatprep.subr.bf16.mxu0 %v2037
    %2877 = vmatpush1.bf16.msra.mxu0 %v2036
    %2878 = vmatprep.subr.bf16.mxu0 %v2044
    %2879 = vmatpush1.bf16.msra.mxu0 %v2043
    %2880 = vmatprep.subr.bf16.mxu0 %v2051
    %2881 = vmatpush1.bf16.msra.mxu0 %v2050
    %2882 = vmatprep.subr.bf16.mxu0 %v2058
    %2883 = vmatpush1.bf16.msra.mxu0 %v2057
    %2884 = vmatprep.subr.bf16.mxu0 %v2065
    %2885 = vmatpush1.bf16.msra.mxu0 %v2064
    %2886 = vmatprep.subr.bf16.mxu0 %v2072
    %2887 = vmatpush1.bf16.msra.mxu0 %v2071
    %2888 = vmatprep.subr.bf16.mxu0 %v2079
    %2889 = vmatpush1.bf16.msra.mxu0 %v2078
    %2890 = vmatprep.mubr.bf16.mxu0 %v616
    %2891 = vmatmul.mubr.bf16.gmra.mrb[0].mxu0 %v615
    %v2892 = vpop.f32.mrb[0].mxu0
    %v2893 = vadd.f32 %v2850, %v2892
    %v2894 = vpop.f32.mrb[0].mxu0
    %v2895 = vadd.f32 %v2852, %v2894
    %v2896 = vpop.f32.mrb[0].mxu0
    %v2897 = vadd.f32 %v2854, %v2896
    %v2898 = vpop.f32.mrb[0].mxu0
    %v2899 = vadd.f32 %v2856, %v2898
    %2900 = vdwg.mxu0
    %2901 = vmatprep.subr.bf16.mxu0 %v2086
    %2902 = vmatpush1.bf16.msra.mxu0 %v2085
    %2903 = vmatprep.subr.bf16.mxu0 %v2093
    %2904 = vmatpush1.bf16.msra.mxu0 %v2092
    %2905 = vmatprep.subr.bf16.mxu0 %v2100
    %2906 = vmatpush1.bf16.msra.mxu0 %v2099
    %2907 = vmatprep.subr.bf16.mxu0 %v2107
    %2908 = vmatpush1.bf16.msra.mxu0 %v2106
    %2909 = vmatprep.subr.bf16.mxu0 %v2114
    %2910 = vmatpush1.bf16.msra.mxu0 %v2113
    %2911 = vmatprep.subr.bf16.mxu0 %v2121
    %2912 = vmatpush1.bf16.msra.mxu0 %v2120
    %2913 = vmatprep.subr.bf16.mxu0 %v2128
    %2914 = vmatpush1.bf16.msra.mxu0 %v2127
    %2915 = vmatprep.subr.bf16.mxu0 %v2135
    %2916 = vmatpush1.bf16.msra.mxu0 %v2134
    %2917 = vmatprep.subr.bf16.mxu0 %v2142
    %2918 = vmatpush1.bf16.msra.mxu0 %v2141
    %2919 = vmatprep.subr.bf16.mxu0 %v2149
    %2920 = vmatpush1.bf16.msra.mxu0 %v2148
    %2921 = vmatprep.subr.bf16.mxu0 %v2156
    %2922 = vmatpush1.bf16.msra.mxu0 %v2155
    %2923 = vmatprep.subr.bf16.mxu0 %v2163
    %2924 = vmatpush1.bf16.msra.mxu0 %v2162
    %2925 = vmatprep.subr.bf16.mxu0 %v2170
    %2926 = vmatpush1.bf16.msra.mxu0 %v2169
    %2927 = vmatprep.subr.bf16.mxu0 %v2177
    %2928 = vmatpush1.bf16.msra.mxu0 %v2176
    %2929 = vmatprep.subr.bf16.mxu0 %v2184
    %2930 = vmatpush1.bf16.msra.mxu0 %v2183
    %2931 = vmatprep.subr.bf16.mxu0 %v2191
    %2932 = vmatpush1.bf16.msra.mxu0 %v2190
    %2933 = vmatprep.mubr.bf16.mxu0 %v618
    %2934 = vmatmul.mubr.bf16.gmra.mrb[0].mxu0 %v617
    %v2935 = vpop.f32.mrb[0].mxu0
    %v2936 = vadd.f32 %v2893, %v2935
    %v2937 = vpop.f32.mrb[0].mxu0
    %v2938 = vadd.f32 %v2895, %v2937
    %v2939 = vpop.f32.mrb[0].mxu0
    %v2940 = vadd.f32 %v2897, %v2939
    %v2941 = vpop.f32.mrb[0].mxu0
    %v2942 = vadd.f32 %v2899, %v2941
    %2943 = vdwg.mxu0
    %2944 = vmatprep.subr.bf16.mxu0 %v2198
    %2945 = vmatpush1.bf16.msra.mxu0 %v2197
    %2946 = vmatprep.subr.bf16.mxu0 %v2205
    %2947 = vmatpush1.bf16.msra.mxu0 %v2204
    %2948 = vmatprep.subr.bf16.mxu0 %v2212
    %2949 = vmatpush1.bf16.msra.mxu0 %v2211
    %2950 = vmatprep.subr.bf16.mxu0 %v2219
    %2951 = vmatpush1.bf16.msra.mxu0 %v2218
    %2952 = vmatprep.subr.bf16.mxu0 %v2226
    %2953 = vmatpush1.bf16.msra.mxu0 %v2225
    %2954 = vmatprep.subr.bf16.mxu0 %v2233
    %2955 = vmatpush1.bf16.msra.mxu0 %v2232
    %2956 = vmatprep.subr.bf16.mxu0 %v2240
    %2957 = vmatpush1.bf16.msra.mxu0 %v2239
    %2958 = vmatprep.subr.bf16.mxu0 %v2247
    %2959 = vmatpush1.bf16.msra.mxu0 %v2246
    %2960 = vmatprep.subr.bf16.mxu0 0
    %2961 = vmatpush1.bf16.msra.mxu0 0
    %2962 = vmatprep.subr.bf16.mxu0 0
    %2963 = vmatpush1.bf16.msra.mxu0 0
    %2964 = vmatprep.subr.bf16.mxu0 0
    %2965 = vmatpush1.bf16.msra.mxu0 0
    %2966 = vmatprep.subr.bf16.mxu0 0
    %2967 = vmatpush1.bf16.msra.mxu0 0
    %2968 = vmatprep.subr.bf16.mxu0 0
    %2969 = vmatpush1.bf16.msra.mxu0 0
    %2970 = vmatprep.subr.bf16.mxu0 0
    %2971 = vmatpush1.bf16.msra.mxu0 0
    %2972 = vmatprep.subr.bf16.mxu0 0
    %2973 = vmatpush1.bf16.msra.mxu0 0
    %2974 = vmatprep.subr.bf16.mxu0 0
    %2975 = vmatpush1.bf16.msra.mxu0 0
    %2976 = vmatprep.mubr.bf16.mxu0 0
    %2977 = vmatmul.mubr.bf16.gmra.mrb[0].mxu0 %v619
    %v2978 = vpop.f32.mrb[0].mxu0
    %v2979 = vadd.f32 %v2936, %v2978
    %v2980 = vpop.f32.mrb[0].mxu0
    %v2981 = vadd.f32 %v2938, %v2980
    %v2982 = vpop.f32.mrb[0].mxu0
    %v2983 = vadd.f32 %v2940, %v2982
    %v2984 = vpop.f32.mrb[0].mxu0
    %v2985 = vadd.f32 %v2942, %v2984
    %2986 = vdwg.mxu0
    %2987 = vmatprep.subr.bf16.mxu0 %v1864
    %2988 = vmatpush1.bf16.msra.mxu0 %v1863
    %2989 = vmatprep.subr.bf16.mxu0 %v1871
    %2990 = vmatpush1.bf16.msra.mxu0 %v1870
    %2991 = vmatprep.subr.bf16.mxu0 %v1878
    %2992 = vmatpush1.bf16.msra.mxu0 %v1877
    %2993 = vmatprep.subr.bf16.mxu0 %v1885
    %2994 = vmatpush1.bf16.msra.mxu0 %v1884
    %2995 = vmatprep.subr.bf16.mxu0 %v1892
    %2996 = vmatpush1.bf16.msra.mxu0 %v1891
    %2997 = vmatprep.subr.bf16.mxu0 %v1899
    %2998 = vmatpush1.bf16.msra.mxu0 %v1898
    %2999 = vmatprep.subr.bf16.mxu0 %v1906
    %3000 = vmatpush1.bf16.msra.mxu0 %v1905
    %3001 = vmatprep.subr.bf16.mxu0 %v1913
    %3002 = vmatpush1.bf16.msra.mxu0 %v1912
    %3003 = vmatprep.subr.bf16.mxu0 %v1920
    %3004 = vmatpush1.bf16.msra.mxu0 %v1919
    %3005 = vmatprep.subr.bf16.mxu0 %v1927
    %3006 = vmatpush1.bf16.msra.mxu0 %v1926
    %3007 = vmatprep.subr.bf16.mxu0 %v1934
    %3008 = vmatpush1.bf16.msra.mxu0 %v1933
    %3009 = vmatprep.subr.bf16.mxu0 %v1941
    %3010 = vmatpush1.bf16.msra.mxu0 %v1940
    %3011 = vmatprep.subr.bf16.mxu0 %v1948
    %3012 = vmatpush1.bf16.msra.mxu0 %v1947
    %3013 = vmatprep.subr.bf16.mxu0 %v1955
    %3014 = vmatpush1.bf16.msra.mxu0 %v1954
    %3015 = vmatprep.subr.bf16.mxu0 %v1962
    %3016 = vmatpush1.bf16.msra.mxu0 %v1961
    %3017 = vmatprep.subr.bf16.mxu0 %v1969
    %3018 = vmatpush1.bf16.msra.mxu0 %v1968
    %3019 = vmatprep.mubr.bf16.mxu0 %v614
    %3020 = vmatmul.mubr.bf16.gmra.mrb[0].mxu0 %v613
    %v3021 = vpop.f32.mrb[0].mxu0
    %v3022 = vadd.f32 %v575, %v3021
    %v3023 = vpop.f32.mrb[0].mxu0
    %v3024 = vadd.f32 %v579, %v3023
    %v3025 = vpop.f32.mrb[0].mxu0
    %v3026 = vadd.f32 %v575, %v3025
    %v3027 = vpop.f32.mrb[0].mxu0
    %v3028 = vadd.f32 %v579, %v3027
    %3029 = vdwg.mxu0
    %3030 = vmatprep.subr.bf16.mxu0 %v1976
    %3031 = vmatpush1.bf16.msra.mxu0 %v1975
    %3032 = vmatprep.subr.bf16.mxu0 %v1983
    %3033 = vmatpush1.bf16.msra.mxu0 %v1982
    %3034 = vmatprep.subr.bf16.mxu0 %v1990
    %3035 = vmatpush1.bf16.msra.mxu0 %v1989
    %3036 = vmatprep.subr.bf16.mxu0 %v1997
    %3037 = vmatpush1.bf16.msra.mxu0 %v1996
    %3038 = vmatprep.subr.bf16.mxu0 %v2004
    %3039 = vmatpush1.bf16.msra.mxu0 %v2003
    %3040 = vmatprep.subr.bf16.mxu0 %v2011
    %3041 = vmatpush1.bf16.msra.mxu0 %v2010
    %3042 = vmatprep.subr.bf16.mxu0 %v2018
    %3043 = vmatpush1.bf16.msra.mxu0 %v2017
    %3044 = vmatprep.subr.bf16.mxu0 %v2025
    %3045 = vmatpush1.bf16.msra.mxu0 %v2024
    %3046 = vmatprep.subr.bf16.mxu0 %v2032
    %3047 = vmatpush1.bf16.msra.mxu0 %v2031
    %3048 = vmatprep.subr.bf16.mxu0 %v2039
    %3049 = vmatpush1.bf16.msra.mxu0 %v2038
    %3050 = vmatprep.subr.bf16.mxu0 %v2046
    %3051 = vmatpush1.bf16.msra.mxu0 %v2045
    %3052 = vmatprep.subr.bf16.mxu0 %v2053
    %3053 = vmatpush1.bf16.msra.mxu0 %v2052
    %3054 = vmatprep.subr.bf16.mxu0 %v2060
    %3055 = vmatpush1.bf16.msra.mxu0 %v2059
    %3056 = vmatprep.subr.bf16.mxu0 %v2067
    %3057 = vmatpush1.bf16.msra.mxu0 %v2066
    %3058 = vmatprep.subr.bf16.mxu0 %v2074
    %3059 = vmatpush1.bf16.msra.mxu0 %v2073
    %3060 = vmatprep.subr.bf16.mxu0 %v2081
    %3061 = vmatpush1.bf16.msra.mxu0 %v2080
    %3062 = vmatprep.mubr.bf16.mxu0 %v616
    %3063 = vmatmul.mubr.bf16.gmra.mrb[0].mxu0 %v615
    %v3064 = vpop.f32.mrb[0].mxu0
    %v3065 = vadd.f32 %v3022, %v3064
    %v3066 = vpop.f32.mrb[0].mxu0
    %v3067 = vadd.f32 %v3024, %v3066
    %v3068 = vpop.f32.mrb[0].mxu0
    %v3069 = vadd.f32 %v3026, %v3068
    %v3070 = vpop.f32.mrb[0].mxu0
    %v3071 = vadd.f32 %v3028, %v3070
    %3072 = vdwg.mxu0
    %3073 = vmatprep.subr.bf16.mxu0 %v2088
    %3074 = vmatpush1.bf16.msra.mxu0 %v2087
    %3075 = vmatprep.subr.bf16.mxu0 %v2095
    %3076 = vmatpush1.bf16.msra.mxu0 %v2094
    %3077 = vmatprep.subr.bf16.mxu0 %v2102
    %3078 = vmatpush1.bf16.msra.mxu0 %v2101
    %3079 = vmatprep.subr.bf16.mxu0 %v2109
    %3080 = vmatpush1.bf16.msra.mxu0 %v2108
    %3081 = vmatprep.subr.bf16.mxu0 %v2116
    %3082 = vmatpush1.bf16.msra.mxu0 %v2115
    %3083 = vmatprep.subr.bf16.mxu0 %v2123
    %3084 = vmatpush1.bf16.msra.mxu0 %v2122
    %3085 = vmatprep.subr.bf16.mxu0 %v2130
    %3086 = vmatpush1.bf16.msra.mxu0 %v2129
    %3087 = vmatprep.subr.bf16.mxu0 %v2137
    %3088 = vmatpush1.bf16.msra.mxu0 %v2136
    %3089 = vmatprep.subr.bf16.mxu0 %v2144
    %3090 = vmatpush1.bf16.msra.mxu0 %v2143
    %3091 = vmatprep.subr.bf16.mxu0 %v2151
    %3092 = vmatpush1.bf16.msra.mxu0 %v2150
    %3093 = vmatprep.subr.bf16.mxu0 %v2158
    %3094 = vmatpush1.bf16.msra.mxu0 %v2157
    %3095 = vmatprep.subr.bf16.mxu0 %v2165
    %3096 = vmatpush1.bf16.msra.mxu0 %v2164
    %3097 = vmatprep.subr.bf16.mxu0 %v2172
    %3098 = vmatpush1.bf16.msra.mxu0 %v2171
    %3099 = vmatprep.subr.bf16.mxu0 %v2179
    %3100 = vmatpush1.bf16.msra.mxu0 %v2178
    %3101 = vmatprep.subr.bf16.mxu0 %v2186
    %3102 = vmatpush1.bf16.msra.mxu0 %v2185
    %3103 = vmatprep.subr.bf16.mxu0 %v2193
    %3104 = vmatpush1.bf16.msra.mxu0 %v2192
    %3105 = vmatprep.mubr.bf16.mxu0 %v618
    %3106 = vmatmul.mubr.bf16.gmra.mrb[0].mxu0 %v617
    %v3107 = vpop.f32.mrb[0].mxu0
    %v3108 = vadd.f32 %v3065, %v3107
    %v3109 = vpop.f32.mrb[0].mxu0
    %v3110 = vadd.f32 %v3067, %v3109
    %v3111 = vpop.f32.mrb[0].mxu0
    %v3112 = vadd.f32 %v3069, %v3111
    %v3113 = vpop.f32.mrb[0].mxu0
    %v3114 = vadd.f32 %v3071, %v3113
    %3115 = vdwg.mxu0
    %3116 = vmatprep.subr.bf16.mxu0 %v2200
    %3117 = vmatpush1.bf16.msra.mxu0 %v2199
    %3118 = vmatprep.subr.bf16.mxu0 %v2207
    %3119 = vmatpush1.bf16.msra.mxu0 %v2206
    %3120 = vmatprep.subr.bf16.mxu0 %v2214
    %3121 = vmatpush1.bf16.msra.mxu0 %v2213
    %3122 = vmatprep.subr.bf16.mxu0 %v2221
    %3123 = vmatpush1.bf16.msra.mxu0 %v2220
    %3124 = vmatprep.subr.bf16.mxu0 %v2228
    %3125 = vmatpush1.bf16.msra.mxu0 %v2227
    %3126 = vmatprep.subr.bf16.mxu0 %v2235
    %3127 = vmatpush1.bf16.msra.mxu0 %v2234
    %3128 = vmatprep.subr.bf16.mxu0 %v2242
    %3129 = vmatpush1.bf16.msra.mxu0 %v2241
    %3130 = vmatprep.subr.bf16.mxu0 %v2249
    %3131 = vmatpush1.bf16.msra.mxu0 %v2248
    %3132 = vmatprep.subr.bf16.mxu0 0
    %3133 = vmatpush1.bf16.msra.mxu0 0
    %3134 = vmatprep.subr.bf16.mxu0 0
    %3135 = vmatpush1.bf16.msra.mxu0 0
    %3136 = vmatprep.subr.bf16.mxu0 0
    %3137 = vmatpush1.bf16.msra.mxu0 0
    %3138 = vmatprep.subr.bf16.mxu0 0
    %3139 = vmatpush1.bf16.msra.mxu0 0
    %3140 = vmatprep.subr.bf16.mxu0 0
    %3141 = vmatpush1.bf16.msra.mxu0 0
    %3142 = vmatprep.subr.bf16.mxu0 0
    %3143 = vmatpush1.bf16.msra.mxu0 0
    %3144 = vmatprep.subr.bf16.mxu0 0
    %3145 = vmatpush1.bf16.msra.mxu0 0
    %3146 = vmatprep.subr.bf16.mxu0 0
    %3147 = vmatpush1.bf16.msra.mxu0 0
    %3148 = vmatprep.mubr.bf16.mxu0 0
    %3149 = vmatmul.mubr.bf16.gmra.mrb[0].mxu0 %v619
    %v3150 = vpop.f32.mrb[0].mxu0
    %v3151 = vadd.f32 %v3108, %v3150
    %v3152 = vpop.f32.mrb[0].mxu0
    %v3153 = vadd.f32 %v3110, %v3152
    %v3154 = vpop.f32.mrb[0].mxu0
    %v3155 = vadd.f32 %v3112, %v3154
    %v3156 = vpop.f32.mrb[0].mxu0
    %v3157 = vadd.f32 %v3114, %v3156
    %3158 = vdwg.mxu0
    %3159 = vmatprep.subr.bf16.mxu0 0
    %3160 = vmatpush1.bf16.msra.mxu0 %v1865
    %3161 = vmatprep.subr.bf16.mxu0 0
    %3162 = vmatpush1.bf16.msra.mxu0 %v1872
    %3163 = vmatprep.subr.bf16.mxu0 0
    %3164 = vmatpush1.bf16.msra.mxu0 %v1879
    %3165 = vmatprep.subr.bf16.mxu0 0
    %3166 = vmatpush1.bf16.msra.mxu0 %v1886
    %3167 = vmatprep.subr.bf16.mxu0 0
    %3168 = vmatpush1.bf16.msra.mxu0 %v1893
    %3169 = vmatprep.subr.bf16.mxu0 0
    %3170 = vmatpush1.bf16.msra.mxu0 %v1900
    %3171 = vmatprep.subr.bf16.mxu0 0
    %3172 = vmatpush1.bf16.msra.mxu0 %v1907
    %3173 = vmatprep.subr.bf16.mxu0 0
    %3174 = vmatpush1.bf16.msra.mxu0 %v1914
    %3175 = vmatprep.subr.bf16.mxu0 0
    %3176 = vmatpush1.bf16.msra.mxu0 %v1921
    %3177 = vmatprep.subr.bf16.mxu0 0
    %3178 = vmatpush1.bf16.msra.mxu0 %v1928
    %3179 = vmatprep.subr.bf16.mxu0 0
    %3180 = vmatpush1.bf16.msra.mxu0 %v1935
    %3181 = vmatprep.subr.bf16.mxu0 0
    %3182 = vmatpush1.bf16.msra.mxu0 %v1942
    %3183 = vmatprep.subr.bf16.mxu0 0
    %3184 = vmatpush1.bf16.msra.mxu0 %v1949
    %3185 = vmatprep.subr.bf16.mxu0 0
    %3186 = vmatpush1.bf16.msra.mxu0 %v1956
    %3187 = vmatprep.subr.bf16.mxu0 0
    %3188 = vmatpush1.bf16.msra.mxu0 %v1963
    %3189 = vmatprep.subr.bf16.mxu0 0
    %3190 = vmatpush1.bf16.msra.mxu0 %v1970
    %3191 = vmatprep.mubr.bf16.mxu0 %v614
    %3192 = vmatmul.mubr.bf16.gmra.mrb[0].mxu0 %v613
    %v3193 = vpop.f32.mrb[0].mxu0
    %v3194 = vadd.f32 %v583, %v3193
    %v3195 = vpop.f32.mrb[0].mxu0
    %v3196 = vpop.f32.mrb[0].mxu0
    %v3197 = vadd.f32 %v583, %v3196
    %v3198 = vpop.f32.mrb[0].mxu0
    %3199 = vdwg.mxu0
    %3200 = vmatprep.subr.bf16.mxu0 0
    %3201 = vmatpush1.bf16.msra.mxu0 %v1977
    %3202 = vmatprep.subr.bf16.mxu0 0
    %3203 = vmatpush1.bf16.msra.mxu0 %v1984
    %3204 = vmatprep.subr.bf16.mxu0 0
    %3205 = vmatpush1.bf16.msra.mxu0 %v1991
    %3206 = vmatprep.subr.bf16.mxu0 0
    %3207 = vmatpush1.bf16.msra.mxu0 %v1998
    %3208 = vmatprep.subr.bf16.mxu0 0
    %3209 = vmatpush1.bf16.msra.mxu0 %v2005
    %3210 = vmatprep.subr.bf16.mxu0 0
    %3211 = vmatpush1.bf16.msra.mxu0 %v2012
    %3212 = vmatprep.subr.bf16.mxu0 0
    %3213 = vmatpush1.bf16.msra.mxu0 %v2019
    %3214 = vmatprep.subr.bf16.mxu0 0
    %3215 = vmatpush1.bf16.msra.mxu0 %v2026
    %3216 = vmatprep.subr.bf16.mxu0 0
    %3217 = vmatpush1.bf16.msra.mxu0 %v2033
    %3218 = vmatprep.subr.bf16.mxu0 0
    %3219 = vmatpush1.bf16.msra.mxu0 %v2040
    %3220 = vmatprep.subr.bf16.mxu0 0
    %3221 = vmatpush1.bf16.msra.mxu0 %v2047
    %3222 = vmatprep.subr.bf16.mxu0 0
    %3223 = vmatpush1.bf16.msra.mxu0 %v2054
    %3224 = vmatprep.subr.bf16.mxu0 0
    %3225 = vmatpush1.bf16.msra.mxu0 %v2061
    %3226 = vmatprep.subr.bf16.mxu0 0
    %3227 = vmatpush1.bf16.msra.mxu0 %v2068
    %3228 = vmatprep.subr.bf16.mxu0 0
    %3229 = vmatpush1.bf16.msra.mxu0 %v2075
    %3230 = vmatprep.subr.bf16.mxu0 0
    %3231 = vmatpush1.bf16.msra.mxu0 %v2082
    %3232 = vmatprep.mubr.bf16.mxu0 %v616
    %3233 = vmatmul.mubr.bf16.gmra.mrb[0].mxu0 %v615
    %v3234 = vpop.f32.mrb[0].mxu0
    %v3235 = vadd.f32 %v3194, %v3234
    %v3236 = vpop.f32.mrb[0].mxu0
    %v3237 = vpop.f32.mrb[0].mxu0
    %v3238 = vadd.f32 %v3197, %v3237
    %v3239 = vpop.f32.mrb[0].mxu0
    %3240 = vdwg.mxu0
    %3241 = vmatprep.subr.bf16.mxu0 0
    %3242 = vmatpush1.bf16.msra.mxu0 %v2089
    %3243 = vmatprep.subr.bf16.mxu0 0
    %3244 = vmatpush1.bf16.msra.mxu0 %v2096
    %3245 = vmatprep.subr.bf16.mxu0 0
    %3246 = vmatpush1.bf16.msra.mxu0 %v2103
    %3247 = vmatprep.subr.bf16.mxu0 0
    %3248 = vmatpush1.bf16.msra.mxu0 %v2110
    %3249 = vmatprep.subr.bf16.mxu0 0
    %3250 = vmatpush1.bf16.msra.mxu0 %v2117
    %3251 = vmatprep.subr.bf16.mxu0 0
    %3252 = vmatpush1.bf16.msra.mxu0 %v2124
    %3253 = vmatprep.subr.bf16.mxu0 0
    %3254 = vmatpush1.bf16.msra.mxu0 %v2131
    %3255 = vmatprep.subr.bf16.mxu0 0
    %3256 = vmatpush1.bf16.msra.mxu0 %v2138
    %3257 = vmatprep.subr.bf16.mxu0 0
    %3258 = vmatpush1.bf16.msra.mxu0 %v2145
    %3259 = vmatprep.subr.bf16.mxu0 0
    %3260 = vmatpush1.bf16.msra.mxu0 %v2152
    %3261 = vmatprep.subr.bf16.mxu0 0
    %3262 = vmatpush1.bf16.msra.mxu0 %v2159
    %3263 = vmatprep.subr.bf16.mxu0 0
    %3264 = vmatpush1.bf16.msra.mxu0 %v2166
    %3265 = vmatprep.subr.bf16.mxu0 0
    %3266 = vmatpush1.bf16.msra.mxu0 %v2173
    %3267 = vmatprep.subr.bf16.mxu0 0
    %3268 = vmatpush1.bf16.msra.mxu0 %v2180
    %3269 = vmatprep.subr.bf16.mxu0 0
    %3270 = vmatpush1.bf16.msra.mxu0 %v2187
    %3271 = vmatprep.subr.bf16.mxu0 0
    %3272 = vmatpush1.bf16.msra.mxu0 %v2194
    %3273 = vmatprep.mubr.bf16.mxu0 %v618
    %3274 = vmatmul.mubr.bf16.gmra.mrb[0].mxu0 %v617
    %v3275 = vpop.f32.mrb[0].mxu0
    %v3276 = vadd.f32 %v3235, %v3275
    %v3277 = vpop.f32.mrb[0].mxu0
    %v3278 = vpop.f32.mrb[0].mxu0
    %v3279 = vadd.f32 %v3238, %v3278
    %v3280 = vpop.f32.mrb[0].mxu0
    %3281 = vdwg.mxu0
    %3282 = vmatprep.subr.bf16.mxu0 0
    %3283 = vmatpush1.bf16.msra.mxu0 %v2201
    %3284 = vmatprep.subr.bf16.mxu0 0
    %3285 = vmatpush1.bf16.msra.mxu0 %v2208
    %3286 = vmatprep.subr.bf16.mxu0 0
    %3287 = vmatpush1.bf16.msra.mxu0 %v2215
    %3288 = vmatprep.subr.bf16.mxu0 0
    %3289 = vmatpush1.bf16.msra.mxu0 %v2222
    %3290 = vmatprep.subr.bf16.mxu0 0
    %3291 = vmatpush1.bf16.msra.mxu0 %v2229
    %3292 = vmatprep.subr.bf16.mxu0 0
    %3293 = vmatpush1.bf16.msra.mxu0 %v2236
    %3294 = vmatprep.subr.bf16.mxu0 0
    %3295 = vmatpush1.bf16.msra.mxu0 %v2243
    %3296 = vmatprep.subr.bf16.mxu0 0
    %3297 = vmatpush1.bf16.msra.mxu0 %v2250
    %3298 = vmatprep.subr.bf16.mxu0 0
    %3299 = vmatpush1.bf16.msra.mxu0 0
    %3300 = vmatprep.subr.bf16.mxu0 0
    %3301 = vmatpush1.bf16.msra.mxu0 0
    %3302 = vmatprep.subr.bf16.mxu0 0
    %3303 = vmatpush1.bf16.msra.mxu0 0
    %3304 = vmatprep.subr.bf16.mxu0 0
    %3305 = vmatpush1.bf16.msra.mxu0 0
    %3306 = vmatprep.subr.bf16.mxu0 0
    %3307 = vmatpush1.bf16.msra.mxu0 0
    %3308 = vmatprep.subr.bf16.mxu0 0
    %3309 = vmatpush1.bf16.msra.mxu0 0
    %3310 = vmatprep.subr.bf16.mxu0 0
    %3311 = vmatpush1.bf16.msra.mxu0 0
    %3312 = vmatprep.subr.bf16.mxu0 0
    %3313 = vmatpush1.bf16.msra.mxu0 0
    %3314 = vmatprep.mubr.bf16.mxu0 0
    %3315 = vmatmul.mubr.bf16.gmra.mrb[0].mxu0 %v619
    %v3316 = vpop.f32.mrb[0].mxu0
    %v3317 = vadd.f32 %v3276, %v3316
    %v3318 = vpop.f32.mrb[0].mxu0
    %v3319 = vpop.f32.mrb[0].mxu0
    %v3320 = vadd.f32 %v3279, %v3319
    %v3321 = vpop.f32.mrb[0].mxu0
    %3322 = vdwg.mxu0
    %v3323 = vmax.f32 %v2807, 0.0
    %v3324 = vmax.f32 %v2809, 0.0
    %v3325 = vmax.f32 %v2979, 0.0
    %v3326 = vmax.f32 %v2981, 0.0
    %v3327 = vmax.f32 %v3151, 0.0
    %v3328 = vmax.f32 %v3153, 0.0
    %v3329 = vmax.f32 %v3317, 0.0
    %v3330 = vmax.f32 %v2811, 0.0
    %v3331 = vmax.f32 %v2813, 0.0
    %v3332 = vmax.f32 %v2983, 0.0
    %v3333 = vmax.f32 %v2985, 0.0
    %v3334 = vmax.f32 %v3155, 0.0
    %v3335 = vmax.f32 %v3157, 0.0
    %v3336 = vmax.f32 %v3320, 0.0
    %v3337 = vpack.c.bf16 %v3330, %v3323
    %v3338 = vpack.c.bf16 %v3331, %v3324
    %v3339 = vpack.c.bf16 %v3332, %v3325
    %v3340 = vpack.c.bf16 %v3333, %v3326
    %v3341 = vpack.c.bf16 %v3334, %v3327
    %v3342 = vpack.c.bf16 %v3335, %v3328
    %v3343 = vpack.c.bf16 %v3336, %v3329
    %v3344 = vld [vmem:[#allocation8] sm:$0xf]
    %v3345 = vld [vmem:[#allocation8 + $0x4] sm:$0xf]
    %v3346 = vld [vmem:[#allocation8 + $0x8] sm:$0xf]
    %v3347 = vld [vmem:[#allocation8 + $0xc] sm:$0xf]
    %v3348 = vld [vmem:[#allocation8 + $0x10] sm:$0xf]
    %v3349 = vld [vmem:[#allocation8 + $0x14] sm:$0xf]
    %v3350 = vld [vmem:[#allocation8 + $0x18] sm:$0xf]
    %v3351 = vld [vmem:[#allocation8 + $0x1c] sm:$0xf]
    %v3352 = vld [vmem:[#allocation8 + $0x20] sm:$0xf]
    %v3353 = vld [vmem:[#allocation8 + $0x24] sm:$0xf]
    %v3354 = vld [vmem:[#allocation8 + $0x28] sm:$0xf]
    %v3355 = vld [vmem:[#allocation8 + $0x2c] sm:$0xf]
    %v3356 = vld [vmem:[#allocation8 + $0x30] sm:$0xf]
    %v3357 = vld [vmem:[#allocation8 + $0x34] sm:$0xf]
    %v3358 = vld [vmem:[#allocation8 + $0x38] sm:$0xf]
    %v3359 = vld [vmem:[#allocation8 + $0x3c] sm:$0xf]
    %v3360 = vld [vmem:[#allocation8 + $0x40] sm:$0xf]
    %v3361 = vld [vmem:[#allocation8 + $0x44] sm:$0xf]
    %v3362 = vld [vmem:[#allocation8 + $0x48] sm:$0xf]
    %v3363 = vld [vmem:[#allocation8 + $0x4c] sm:$0xf]
    %v3364 = vld [vmem:[#allocation8 + $0x50] sm:$0xf]
    %v3365 = vld [vmem:[#allocation8 + $0x54] sm:$0xf]
    %v3366 = vld [vmem:[#allocation8 + $0x58] sm:$0xf]
    %v3367 = vld [vmem:[#allocation8 + $0x5c] sm:$0xf]
    %v3368 = vld [vmem:[#allocation8 + $0x60] sm:$0xf]
    %v3369 = vld [vmem:[#allocation8 + $0x64] sm:$0xf]
    %v3370 = vld [vmem:[#allocation8 + $0x68] sm:$0xf]
    %v3371 = vld [vmem:[#allocation8 + $0x6c] sm:$0xf]
    %v3372 = vld [vmem:[#allocation8 + $0x70] sm:$0xf]
    %v3373 = vld [vmem:[#allocation8 + $0x74] sm:$0xf]
    %v3374 = vld [vmem:[#allocation8 + $0x78] sm:$0xf]
    %v3375 = vld [vmem:[#allocation8 + $0x7c] sm:$0xf]
    %v3376 = vld [vmem:[#allocation8 + $0x80] sm:$0xf]
    %v3377 = vld [vmem:[#allocation8 + $0x84] sm:$0xf]
    %v3378 = vld [vmem:[#allocation8 + $0x88] sm:$0xf]
    %v3379 = vld [vmem:[#allocation8 + $0x8c] sm:$0xf]
    %v3380 = vld [vmem:[#allocation8 + $0x90] sm:$0xf]
    %v3381 = vld [vmem:[#allocation8 + $0x94] sm:$0xf]
    %v3382 = vld [vmem:[#allocation8 + $0x98] sm:$0xf]
    %v3383 = vld [vmem:[#allocation8 + $0x9c] sm:$0xf]
    %v3384 = vld [vmem:[#allocation8 + $0xa0] sm:$0xf]
    %v3385 = vld [vmem:[#allocation8 + $0xa4] sm:$0xf]
    %v3386 = vld [vmem:[#allocation8 + $0xa8] sm:$0xf]
    %v3387 = vld [vmem:[#allocation8 + $0xac] sm:$0xf]
    %v3388 = vld [vmem:[#allocation8 + $0xb0] sm:$0xf]
    %v3389 = vld [vmem:[#allocation8 + $0xb4] sm:$0xf]
    %v3390 = vld [vmem:[#allocation8 + $0xb8] sm:$0xf]
    %v3391 = vld [vmem:[#allocation8 + $0xbc] sm:$0xf]
    %v3392 = vld [vmem:[#allocation8 + $0xc0] sm:$0xf]
    %v3393 = vld [vmem:[#allocation8 + $0xc4] sm:$0xf]
    %v3394 = vld [vmem:[#allocation8 + $0xc8] sm:$0xf]
    %v3395 = vld [vmem:[#allocation8 + $0xcc] sm:$0xf]
    %v3396 = vld [vmem:[#allocation8 + $0xd0] sm:$0xf]
    %v3397 = vld [vmem:[#allocation8 + $0xd4] sm:$0xf]
    %v3398 = vld [vmem:[#allocation8 + $0xd8] sm:$0xf]
    %v3399 = vld [vmem:[#allocation8 + $0xdc] sm:$0xf]
    %v3400 = vld [vmem:[#allocation8 + $0xe0] sm:$0xf]
    %v3401 = vld [vmem:[#allocation8 + $0xe4] sm:$0xf]
    %v3402 = vld [vmem:[#allocation8 + $0xe8] sm:$0xf]
    %v3403 = vld [vmem:[#allocation8 + $0xec] sm:$0xf]
    %v3404 = vld [vmem:[#allocation8 + $0xf0] sm:$0xf]
    %v3405 = vld [vmem:[#allocation8 + $0xf4] sm:$0xf]
    %v3406 = vld [vmem:[#allocation8 + $0xf8] sm:$0xf]
    %v3407 = vld [vmem:[#allocation8 + $0xfc] sm:$0xf]
    %v3408 = vld [vmem:[#allocation8 + $0x100] sm:$0xf]
    %v3409 = vld [vmem:[#allocation8 + $0x104] sm:$0xf]
    %v3410 = vld [vmem:[#allocation8 + $0x108] sm:$0xf]
    %v3411 = vld [vmem:[#allocation8 + $0x10c] sm:$0xf]
    %v3412 = vld [vmem:[#allocation8 + $0x110] sm:$0xf]
    %v3413 = vld [vmem:[#allocation8 + $0x114] sm:$0xf]
    %v3414 = vld [vmem:[#allocation8 + $0x118] sm:$0xf]
    %v3415 = vld [vmem:[#allocation8 + $0x11c] sm:$0xf]
    %v3416 = vld [vmem:[#allocation8 + $0x120] sm:$0xf]
    %v3417 = vld [vmem:[#allocation8 + $0x124] sm:$0xf]
    %v3418 = vld [vmem:[#allocation8 + $0x128] sm:$0xf]
    %v3419 = vld [vmem:[#allocation8 + $0x12c] sm:$0xf]
    %v3420 = vld [vmem:[#allocation8 + $0x130] sm:$0xf]
    %v3421 = vld [vmem:[#allocation8 + $0x134] sm:$0xf]
    %v3422 = vld [vmem:[#allocation8 + $0x138] sm:$0xf]
    %v3423 = vld [vmem:[#allocation8 + $0x13c] sm:$0xf]
    %v3424 = vld [vmem:[#allocation8 + $0x140] sm:$0xf]
    %v3425 = vld [vmem:[#allocation8 + $0x144] sm:$0xf]
    %v3426 = vld [vmem:[#allocation8 + $0x148] sm:$0xf]
    %v3427 = vld [vmem:[#allocation8 + $0x14c] sm:$0xf]
    %v3428 = vld [vmem:[#allocation8 + $0x150] sm:$0xf]
    %v3429 = vld [vmem:[#allocation8 + $0x154] sm:$0xf]
    %v3430 = vld [vmem:[#allocation8 + $0x158] sm:$0xf]
    %v3431 = vld [vmem:[#allocation8 + $0x15c] sm:$0xf]
    %v3432 = vld [vmem:[#allocation8 + $0x160] sm:$0xf]
    %v3433 = vld [vmem:[#allocation8 + $0x164] sm:$0xf]
    %v3434 = vld [vmem:[#allocation8 + $0x168] sm:$0xf]
    %v3435 = vld [vmem:[#allocation8 + $0x16c] sm:$0xf]
    %v3436 = vld [vmem:[#allocation8 + $0x170] sm:$0xf]
    %v3437 = vld [vmem:[#allocation8 + $0x174] sm:$0xf]
    %v3438 = vld [vmem:[#allocation8 + $0x178] sm:$0xf]
    %v3439 = vld [vmem:[#allocation8 + $0x17c] sm:$0xf]
    %v3440 = vld [vmem:[#allocation8 + $0x180] sm:$0xf]
    %v3441 = vld [vmem:[#allocation8 + $0x184] sm:$0xf]
    %v3442 = vld [vmem:[#allocation8 + $0x188] sm:$0xf]
    %v3443 = vld [vmem:[#allocation8 + $0x18c] sm:$0xf]
    %v3444 = vld [vmem:[#allocation8 + $0x190] sm:$0xf]
    %v3445 = vld [vmem:[#allocation8 + $0x194] sm:$0xf]
    %v3446 = vld [vmem:[#allocation8 + $0x198] sm:$0xf]
    %v3447 = vld [vmem:[#allocation8 + $0x19c] sm:$0xf]
    %v3448 = vld [vmem:[#allocation8 + $0x1a0] sm:$0xf]
    %v3449 = vld [vmem:[#allocation8 + $0x1a4] sm:$0xf]
    %v3450 = vld [vmem:[#allocation8 + $0x1a8] sm:$0xf]
    %v3451 = vld [vmem:[#allocation8 + $0x1ac] sm:$0xf]
    %v3452 = vld [vmem:[#allocation8 + $0x1b0] sm:$0xf]
    %v3453 = vld [vmem:[#allocation8 + $0x1b4] sm:$0xf]
    %v3454 = vld [vmem:[#allocation8 + $0x1b8] sm:$0xf]
    %v3455 = vld [vmem:[#allocation8 + $0x1bc] sm:$0xf]
    %v3456 = vld [vmem:[#allocation10] sm:$0x1]
    %v3458 = vlaneseq
    %v3459 = vshrl.u32 %v3458, 7
    %v3460 = vsub.s32 0, %v3459
    %v3461 = vrot.slane %v3456, %v3460
    %v3575 = vunpack.c.l.b16 %v3344
    %v3576 = vunpack.c.l.b16 %v3345
    %v3577 = vunpack.c.l.b16 %v3346
    %v3578 = vunpack.c.l.b16 %v3347
    %v3579 = vunpack.c.l.b16 %v3348
    %v3580 = vunpack.c.l.b16 %v3349
    %v3581 = vunpack.c.l.b16 %v3350
    %v3582 = vunpack.c.l.b16 %v3351
    %v3583 = vunpack.c.l.b16 %v3352
    %v3584 = vunpack.c.l.b16 %v3353
    %v3585 = vunpack.c.l.b16 %v3354
    %v3586 = vunpack.c.l.b16 %v3355
    %v3587 = vunpack.c.l.b16 %v3356
    %v3588 = vunpack.c.l.b16 %v3357
    %v3589 = vunpack.c.l.b16 %v3358
    %v3590 = vunpack.c.l.b16 %v3359
    %v3591 = vunpack.c.l.b16 %v3360
    %v3592 = vunpack.c.l.b16 %v3361
    %v3593 = vunpack.c.l.b16 %v3362
    %v3594 = vunpack.c.l.b16 %v3363
    %v3595 = vunpack.c.l.b16 %v3364
    %v3596 = vunpack.c.l.b16 %v3365
    %v3597 = vunpack.c.l.b16 %v3366
    %v3598 = vunpack.c.l.b16 %v3367
    %v3599 = vunpack.c.l.b16 %v3368
    %v3600 = vunpack.c.l.b16 %v3369
    %v3601 = vunpack.c.l.b16 %v3370
    %v3602 = vunpack.c.l.b16 %v3371
    %v3603 = vunpack.c.l.b16 %v3372
    %v3604 = vunpack.c.l.b16 %v3373
    %v3605 = vunpack.c.l.b16 %v3374
    %v3606 = vunpack.c.l.b16 %v3375
    %v3607 = vunpack.c.l.b16 %v3376
    %v3608 = vunpack.c.l.b16 %v3377
    %v3609 = vunpack.c.l.b16 %v3378
    %v3610 = vunpack.c.l.b16 %v3379
    %v3611 = vunpack.c.l.b16 %v3380
    %v3612 = vunpack.c.l.b16 %v3381
    %v3613 = vunpack.c.l.b16 %v3382
    %v3614 = vunpack.c.l.b16 %v3383
    %v3615 = vunpack.c.l.b16 %v3384
    %v3616 = vunpack.c.l.b16 %v3385
    %v3617 = vunpack.c.l.b16 %v3386
    %v3618 = vunpack.c.l.b16 %v3387
    %v3619 = vunpack.c.l.b16 %v3388
    %v3620 = vunpack.c.l.b16 %v3389
    %v3621 = vunpack.c.l.b16 %v3390
    %v3622 = vunpack.c.l.b16 %v3391
    %v3623 = vunpack.c.l.b16 %v3392
    %v3624 = vunpack.c.l.b16 %v3393
    %v3625 = vunpack.c.l.b16 %v3394
    %v3626 = vunpack.c.l.b16 %v3395
    %v3627 = vunpack.c.l.b16 %v3396
    %v3628 = vunpack.c.l.b16 %v3397
    %v3629 = vunpack.c.l.b16 %v3398
    %v3630 = vunpack.c.l.b16 %v3399
    %v3631 = vunpack.c.l.b16 %v3400
    %v3632 = vunpack.c.l.b16 %v3401
    %v3633 = vunpack.c.l.b16 %v3402
    %v3634 = vunpack.c.l.b16 %v3403
    %v3635 = vunpack.c.l.b16 %v3404
    %v3636 = vunpack.c.l.b16 %v3405
    %v3637 = vunpack.c.l.b16 %v3406
    %v3638 = vunpack.c.l.b16 %v3407
    %v3639 = vunpack.c.l.b16 %v3408
    %v3640 = vunpack.c.l.b16 %v3409
    %v3641 = vunpack.c.l.b16 %v3410
    %v3642 = vunpack.c.l.b16 %v3411
    %v3643 = vunpack.c.l.b16 %v3412
    %v3644 = vunpack.c.l.b16 %v3413
    %v3645 = vunpack.c.l.b16 %v3414
    %v3646 = vunpack.c.l.b16 %v3415
    %v3647 = vunpack.c.l.b16 %v3416
    %v3648 = vunpack.c.l.b16 %v3417
    %v3649 = vunpack.c.l.b16 %v3418
    %v3650 = vunpack.c.l.b16 %v3419
    %v3651 = vunpack.c.l.b16 %v3420
    %v3652 = vunpack.c.l.b16 %v3421
    %v3653 = vunpack.c.l.b16 %v3422
    %v3654 = vunpack.c.l.b16 %v3423
    %v3655 = vunpack.c.l.b16 %v3424
    %v3656 = vunpack.c.l.b16 %v3425
    %v3657 = vunpack.c.l.b16 %v3426
    %v3658 = vunpack.c.l.b16 %v3427
    %v3659 = vunpack.c.l.b16 %v3428
    %v3660 = vunpack.c.l.b16 %v3429
    %v3661 = vunpack.c.l.b16 %v3430
    %v3662 = vunpack.c.l.b16 %v3431
    %v3663 = vunpack.c.l.b16 %v3432
    %v3664 = vunpack.c.l.b16 %v3433
    %v3665 = vunpack.c.l.b16 %v3434
    %v3666 = vunpack.c.l.b16 %v3435
    %v3667 = vunpack.c.l.b16 %v3436
    %v3668 = vunpack.c.l.b16 %v3437
    %v3669 = vunpack.c.l.b16 %v3438
    %v3670 = vunpack.c.l.b16 %v3439
    %v3671 = vunpack.c.l.b16 %v3440
    %v3672 = vunpack.c.l.b16 %v3441
    %v3673 = vunpack.c.l.b16 %v3442
    %v3674 = vunpack.c.l.b16 %v3443
    %v3675 = vunpack.c.l.b16 %v3444
    %v3676 = vunpack.c.l.b16 %v3445
    %v3677 = vunpack.c.l.b16 %v3446
    %v3678 = vunpack.c.l.b16 %v3447
    %v3679 = vunpack.c.l.b16 %v3448
    %v3680 = vunpack.c.l.b16 %v3449
    %v3681 = vunpack.c.l.b16 %v3450
    %v3682 = vunpack.c.l.b16 %v3451
    %v3683 = vunpack.c.l.b16 %v3452
    %v3684 = vunpack.c.l.b16 %v3453
    %v3685 = vunpack.c.l.b16 %v3454
    %v3686 = vunpack.c.l.b16 %v3455
    %v3687 = vpack.c.b16 %v3576, %v3575
    %v3688 = vpack.c.b16 %v3578, %v3577
    %v3689 = vpack.c.b16 %v3580, %v3579
    %v3690 = vpack.c.b16 %v3582, %v3581
    %v3691 = vpack.c.b16 %v3584, %v3583
    %v3692 = vpack.c.b16 %v3586, %v3585
    %v3693 = vpack.c.b16 %v3588, %v3587
    %v3694 = vpack.c.b16 %v3590, %v3589
    %v3695 = vpack.c.b16 %v3592, %v3591
    %v3696 = vpack.c.b16 %v3594, %v3593
    %v3697 = vpack.c.b16 %v3596, %v3595
    %v3698 = vpack.c.b16 %v3598, %v3597
    %v3699 = vpack.c.b16 %v3600, %v3599
    %v3700 = vpack.c.b16 %v3602, %v3601
    %v3701 = vpack.c.b16 %v3604, %v3603
    %v3702 = vpack.c.b16 %v3606, %v3605
    %v3703 = vpack.c.b16 %v3608, %v3607
    %v3704 = vpack.c.b16 %v3610, %v3609
    %v3705 = vpack.c.b16 %v3612, %v3611
    %v3706 = vpack.c.b16 %v3614, %v3613
    %v3707 = vpack.c.b16 %v3616, %v3615
    %v3708 = vpack.c.b16 %v3618, %v3617
    %v3709 = vpack.c.b16 %v3620, %v3619
    %v3710 = vpack.c.b16 %v3622, %v3621
    %v3711 = vpack.c.b16 %v3624, %v3623
    %v3712 = vpack.c.b16 %v3626, %v3625
    %v3713 = vpack.c.b16 %v3628, %v3627
    %v3714 = vpack.c.b16 %v3630, %v3629
    %v3715 = vpack.c.b16 %v3632, %v3631
    %v3716 = vpack.c.b16 %v3634, %v3633
    %v3717 = vpack.c.b16 %v3636, %v3635
    %v3718 = vpack.c.b16 %v3638, %v3637
    %v3719 = vpack.c.b16 %v3640, %v3639
    %v3720 = vpack.c.b16 %v3642, %v3641
    %v3721 = vpack.c.b16 %v3644, %v3643
    %v3722 = vpack.c.b16 %v3646, %v3645
    %v3723 = vpack.c.b16 %v3648, %v3647
    %v3724 = vpack.c.b16 %v3650, %v3649
    %v3725 = vpack.c.b16 %v3652, %v3651
    %v3726 = vpack.c.b16 %v3654, %v3653
    %v3727 = vpack.c.b16 %v3656, %v3655
    %v3728 = vpack.c.b16 %v3658, %v3657
    %v3729 = vpack.c.b16 %v3660, %v3659
    %v3730 = vpack.c.b16 %v3662, %v3661
    %v3731 = vpack.c.b16 %v3664, %v3663
    %v3732 = vpack.c.b16 %v3666, %v3665
    %v3733 = vpack.c.b16 %v3668, %v3667
    %v3734 = vpack.c.b16 %v3670, %v3669
    %v3735 = vpack.c.b16 %v3672, %v3671
    %v3736 = vpack.c.b16 %v3674, %v3673
    %v3737 = vpack.c.b16 %v3676, %v3675
    %v3738 = vpack.c.b16 %v3678, %v3677
    %v3739 = vpack.c.b16 %v3680, %v3679
    %v3740 = vpack.c.b16 %v3682, %v3681
    %v3741 = vpack.c.b16 %v3684, %v3683
    %v3742 = vpack.c.b16 %v3686, %v3685
    %3799 = vmatprep.subr.bf16.mxu0 0
    %3800 = vmatpush1.bf16.msra.mxu0 %v3687
    %3801 = vmatprep.subr.bf16.mxu0 0
    %3802 = vmatpush1.bf16.msra.mxu0 %v3688
    %3803 = vmatprep.subr.bf16.mxu0 0
    %3804 = vmatpush1.bf16.msra.mxu0 %v3689
    %3805 = vmatprep.subr.bf16.mxu0 0
    %3806 = vmatpush1.bf16.msra.mxu0 %v3690
    %3807 = vmatprep.subr.bf16.mxu0 0
    %3808 = vmatpush1.bf16.msra.mxu0 %v3691
    %3809 = vmatprep.subr.bf16.mxu0 0
    %3810 = vmatpush1.bf16.msra.mxu0 %v3692
    %3811 = vmatprep.subr.bf16.mxu0 0
    %3812 = vmatpush1.bf16.msra.mxu0 %v3693
    %3813 = vmatprep.subr.bf16.mxu0 0
    %3814 = vmatpush1.bf16.msra.mxu0 %v3694
    %3815 = vmatprep.subr.bf16.mxu0 0
    %3816 = vmatpush1.bf16.msra.mxu0 %v3695
    %3817 = vmatprep.subr.bf16.mxu0 0
    %3818 = vmatpush1.bf16.msra.mxu0 %v3696
    %3819 = vmatprep.subr.bf16.mxu0 0
    %3820 = vmatpush1.bf16.msra.mxu0 %v3697
    %3821 = vmatprep.subr.bf16.mxu0 0
    %3822 = vmatpush1.bf16.msra.mxu0 %v3698
    %3823 = vmatprep.subr.bf16.mxu0 0
    %3824 = vmatpush1.bf16.msra.mxu0 %v3699
    %3825 = vmatprep.subr.bf16.mxu0 0
    %3826 = vmatpush1.bf16.msra.mxu0 %v3700
    %3827 = vmatprep.subr.bf16.mxu0 0
    %3828 = vmatpush1.bf16.msra.mxu0 %v3701
    %3829 = vmatprep.subr.bf16.mxu0 0
    %3830 = vmatpush1.bf16.msra.mxu0 %v3702
    %3831 = vmatprep.mubr.bf16.mxu0 %v3338
    %3832 = vmatmul.mubr.bf16.gmra.mrb[0].mxu0 %v3337
    %v3833 = vpop.f32.mrb[0].mxu0
    %v3834 = vadd.f32 %v3461, %v3833
    %v3835 = vpop.f32.mrb[0].mxu0
    %v3836 = vpop.f32.mrb[0].mxu0
    %v3837 = vadd.f32 %v3461, %v3836
    %v3838 = vpop.f32.mrb[0].mxu0
    %3839 = vdwg.mxu0
    %3840 = vmatprep.subr.bf16.mxu0 0
    %3841 = vmatpush1.bf16.msra.mxu0 %v3703
    %3842 = vmatprep.subr.bf16.mxu0 0
    %3843 = vmatpush1.bf16.msra.mxu0 %v3704
    %3844 = vmatprep.subr.bf16.mxu0 0
    %3845 = vmatpush1.bf16.msra.mxu0 %v3705
    %3846 = vmatprep.subr.bf16.mxu0 0
    %3847 = vmatpush1.bf16.msra.mxu0 %v3706
    %3848 = vmatprep.subr.bf16.mxu0 0
    %3849 = vmatpush1.bf16.msra.mxu0 %v3707
    %3850 = vmatprep.subr.bf16.mxu0 0
    %3851 = vmatpush1.bf16.msra.mxu0 %v3708
    %3852 = vmatprep.subr.bf16.mxu0 0
    %3853 = vmatpush1.bf16.msra.mxu0 %v3709
    %3854 = vmatprep.subr.bf16.mxu0 0
    %3855 = vmatpush1.bf16.msra.mxu0 %v3710
    %3856 = vmatprep.subr.bf16.mxu0 0
    %3857 = vmatpush1.bf16.msra.mxu0 %v3711
    %3858 = vmatprep.subr.bf16.mxu0 0
    %3859 = vmatpush1.bf16.msra.mxu0 %v3712
    %3860 = vmatprep.subr.bf16.mxu0 0
    %3861 = vmatpush1.bf16.msra.mxu0 %v3713
    %3862 = vmatprep.subr.bf16.mxu0 0
    %3863 = vmatpush1.bf16.msra.mxu0 %v3714
    %3864 = vmatprep.subr.bf16.mxu0 0
    %3865 = vmatpush1.bf16.msra.mxu0 %v3715
    %3866 = vmatprep.subr.bf16.mxu0 0
    %3867 = vmatpush1.bf16.msra.mxu0 %v3716
    %3868 = vmatprep.subr.bf16.mxu0 0
    %3869 = vmatpush1.bf16.msra.mxu0 %v3717
    %3870 = vmatprep.subr.bf16.mxu0 0
    %3871 = vmatpush1.bf16.msra.mxu0 %v3718
    %3872 = vmatprep.mubr.bf16.mxu0 %v3340
    %3873 = vmatmul.mubr.bf16.gmra.mrb[0].mxu0 %v3339
    %v3874 = vpop.f32.mrb[0].mxu0
    %v3875 = vadd.f32 %v3834, %v3874
    %v3876 = vpop.f32.mrb[0].mxu0
    %v3877 = vpop.f32.mrb[0].mxu0
    %v3878 = vadd.f32 %v3837, %v3877
    %v3879 = vpop.f32.mrb[0].mxu0
    %3880 = vdwg.mxu0
    %3881 = vmatprep.subr.bf16.mxu0 0
    %3882 = vmatpush1.bf16.msra.mxu0 %v3719
    %3883 = vmatprep.subr.bf16.mxu0 0
    %3884 = vmatpush1.bf16.msra.mxu0 %v3720
    %3885 = vmatprep.subr.bf16.mxu0 0
    %3886 = vmatpush1.bf16.msra.mxu0 %v3721
    %3887 = vmatprep.subr.bf16.mxu0 0
    %3888 = vmatpush1.bf16.msra.mxu0 %v3722
    %3889 = vmatprep.subr.bf16.mxu0 0
    %3890 = vmatpush1.bf16.msra.mxu0 %v3723
    %3891 = vmatprep.subr.bf16.mxu0 0
    %3892 = vmatpush1.bf16.msra.mxu0 %v3724
    %3893 = vmatprep.subr.bf16.mxu0 0
    %3894 = vmatpush1.bf16.msra.mxu0 %v3725
    %3895 = vmatprep.subr.bf16.mxu0 0
    %3896 = vmatpush1.bf16.msra.mxu0 %v3726
    %3897 = vmatprep.subr.bf16.mxu0 0
    %3898 = vmatpush1.bf16.msra.mxu0 %v3727
    %3899 = vmatprep.subr.bf16.mxu0 0
    %3900 = vmatpush1.bf16.msra.mxu0 %v3728
    %3901 = vmatprep.subr.bf16.mxu0 0
    %3902 = vmatpush1.bf16.msra.mxu0 %v3729
    %3903 = vmatprep.subr.bf16.mxu0 0
    %3904 = vmatpush1.bf16.msra.mxu0 %v3730
    %3905 = vmatprep.subr.bf16.mxu0 0
    %3906 = vmatpush1.bf16.msra.mxu0 %v3731
    %3907 = vmatprep.subr.bf16.mxu0 0
    %3908 = vmatpush1.bf16.msra.mxu0 %v3732
    %3909 = vmatprep.subr.bf16.mxu0 0
    %3910 = vmatpush1.bf16.msra.mxu0 %v3733
    %3911 = vmatprep.subr.bf16.mxu0 0
    %3912 = vmatpush1.bf16.msra.mxu0 %v3734
    %3913 = vmatprep.mubr.bf16.mxu0 %v3342
    %3914 = vmatmul.mubr.bf16.gmra.mrb[0].mxu0 %v3341
    %v3915 = vpop.f32.mrb[0].mxu0
    %v3916 = vadd.f32 %v3875, %v3915
    %v3917 = vpop.f32.mrb[0].mxu0
    %v3918 = vpop.f32.mrb[0].mxu0
    %v3919 = vadd.f32 %v3878, %v3918
    %v3920 = vpop.f32.mrb[0].mxu0
    %3921 = vdwg.mxu0
    %3922 = vmatprep.subr.bf16.mxu0 0
    %3923 = vmatpush1.bf16.msra.mxu0 %v3735
    %3924 = vmatprep.subr.bf16.mxu0 0
    %3925 = vmatpush1.bf16.msra.mxu0 %v3736
    %3926 = vmatprep.subr.bf16.mxu0 0
    %3927 = vmatpush1.bf16.msra.mxu0 %v3737
    %3928 = vmatprep.subr.bf16.mxu0 0
    %3929 = vmatpush1.bf16.msra.mxu0 %v3738
    %3930 = vmatprep.subr.bf16.mxu0 0
    %3931 = vmatpush1.bf16.msra.mxu0 %v3739
    %3932 = vmatprep.subr.bf16.mxu0 0
    %3933 = vmatpush1.bf16.msra.mxu0 %v3740
    %3934 = vmatprep.subr.bf16.mxu0 0
    %3935 = vmatpush1.bf16.msra.mxu0 %v3741
    %3936 = vmatprep.subr.bf16.mxu0 0
    %3937 = vmatpush1.bf16.msra.mxu0 %v3742
    %3938 = vmatprep.subr.bf16.mxu0 0
    %3939 = vmatpush1.bf16.msra.mxu0 0
    %3940 = vmatprep.subr.bf16.mxu0 0
    %3941 = vmatpush1.bf16.msra.mxu0 0
    %3942 = vmatprep.subr.bf16.mxu0 0
    %3943 = vmatpush1.bf16.msra.mxu0 0
    %3944 = vmatprep.subr.bf16.mxu0 0
    %3945 = vmatpush1.bf16.msra.mxu0 0
    %3946 = vmatprep.subr.bf16.mxu0 0
    %3947 = vmatpush1.bf16.msra.mxu0 0
    %3948 = vmatprep.subr.bf16.mxu0 0
    %3949 = vmatpush1.bf16.msra.mxu0 0
    %3950 = vmatprep.subr.bf16.mxu0 0
    %3951 = vmatpush1.bf16.msra.mxu0 0
    %3952 = vmatprep.subr.bf16.mxu0 0
    %3953 = vmatpush1.bf16.msra.mxu0 0
    %3954 = vmatprep.mubr.bf16.mxu0 0
    %3955 = vmatmul.mubr.bf16.gmra.mrb[0].mxu0 %v3343
    %v3956 = vpop.f32.mrb[0].mxu0
    %v3957 = vadd.f32 %v3916, %v3956
    %v3958 = vpop.f32.mrb[0].mxu0
    %v3959 = vpop.f32.mrb[0].mxu0
    %v3960 = vadd.f32 %v3919, %v3959
    %v3961 = vpop.f32.mrb[0].mxu0
    %3962 = vdwg.mxu0
    %v3963 = vpack.c.bf16 %v2811, %v2807
    %v3964 = vpack.c.bf16 %v2813, %v2809
    %v3965 = vpack.c.bf16 %v2983, %v2979
    %v3966 = vpack.c.bf16 %v2985, %v2981
    %v3967 = vpack.c.bf16 %v3155, %v3151
    %v3968 = vpack.c.bf16 %v3157, %v3153
    %v3969 = vpack.c.bf16 %v3320, %v3317
    %v3977 = vunpack.c.l.b16 %v3963
    %v3978 = vunpack.c.l.b16 %v3964
    %v3979 = vunpack.c.l.b16 %v3965
    %v3980 = vunpack.c.l.b16 %v3966
    %v3981 = vunpack.c.l.b16 %v3967
    %v3982 = vunpack.c.l.b16 %v3968
    %v3983 = vunpack.c.l.b16 %v3969
    %v3984 = vunpack.c.h.b16 %v3963
    %v3985 = vunpack.c.h.b16 %v3964
    %v3986 = vunpack.c.h.b16 %v3965
    %v3987 = vunpack.c.h.b16 %v3966
    %v3988 = vunpack.c.h.b16 %v3967
    %v3989 = vunpack.c.h.b16 %v3968
    %v3990 = vunpack.c.h.b16 %v3969
    %v3991 = vpack.c.b16 %v3978, %v3977
    %v3992 = vpack.c.b16 %v3980, %v3979
    %v3993 = vpack.c.b16 %v3982, %v3981
    %v3994 = vpack.c.b16 %v3983, %v3983
    %v3995 = vpack.c.b16 %v3985, %v3984
    %v3996 = vpack.c.b16 %v3987, %v3986
    %v3997 = vpack.c.b16 %v3989, %v3988
    %v3998 = vpack.c.b16 %v3990, %v3990
    %4007 = vst [vmem:[#allocation11] sm:$0xff] %v3991
    %4008 = vst [vmem:[#allocation11 + $0x8] sm:$0xff] %v3992
    %4009 = vst [vmem:[#allocation11 + $0x10] sm:$0xff] %v3993
    %4010 = vst [vmem:[#allocation11 + $0x18] sm:$0xf] %v3994
    %4011 = vst [vmem:[#allocation11 + $0x1c] sm:$0xff] %v3995
    %4012 = vst [vmem:[#allocation11 + $0x24] sm:$0xff] %v3996
    %4013 = vst [vmem:[#allocation11 + $0x2c] sm:$0xff] %v3997
    %4014 = vst [vmem:[#allocation11 + $0x34] sm:$0xf] %v3998
    %4015 = vst [vmem:[#allocation12] sm:$0xff] %v3957
    %4016 = vst [vmem:[#allocation12 + $0x8] sm:$0xff] %v3960
    %v4017 = vmax.f32 %v3957, 0.0
    %v4018 = vmax.f32 %v3960, 0.0
    %v4019 = vlaneseq
    %v4020 = vshrl.u32 %v4019, 7
    %v4021 = vadd.s32 %v4020, 8
    %s4022 = smul.u32 0, 16
    %v4023 = vstv %s4022
    %v4024 = vadd.s32 %v4020, %v4023
    %v4025 = vadd.s32 %v4021, %v4023
    %vm4026 = vcmp.lt.s32.totalorder %v4024, 8
    %vm4027 = vcmp.lt.s32.totalorder %v4025, 8
    %v4028 = vsel %vm4026, 1, 0
    %v4029 = vsel %vm4027, 1, 0
    %vm4030 = vcmp.eq.s32.totalorder %v4028, 1
    %vm4031 = vcmp.eq.s32.totalorder %v4029, 1
    %v4032 = vsel %vm4030, %v4017, 0.0
    %v4033 = vsel %vm4031, %v4018, 0.0
    %v4034 = vld [vmem:[#allocation14] sm:$0x1]
    %v4035 = vadd.f32 %v4032, %v4033
    %v4036 = vrot.slane %v4035, 4
    %v4037 = vadd.f32 %v4035, %v4036
    %v4038 = vrot.slane %v4037, 2
    %v4039 = vadd.f32 %v4037, %v4038
    %v4040 = vrot.slane %v4039, 1
    %v4041 = vadd.f32 %v4039, %v4040
    %v4042 = vadd.f32 %v4034, %v4041
    %4043 = vst [vmem:[#allocation14] sm:$0x1] %v4042
    %v4044 = vld [vmem:[#allocation15] sm:$0x1]
    %v4045 = vmul.f32 %v4032, %v4032
    %v4046 = vmul.f32 %v4033, %v4033
    %v4047 = vadd.f32 %v4045, %v4046
    %v4048 = vrot.slane %v4047, 4
    %v4049 = vadd.f32 %v4047, %v4048
    %v4050 = vrot.slane %v4049, 2
    %v4051 = vadd.f32 %v4049, %v4050
    %v4052 = vrot.slane %v4051, 1
    %v4053 = vadd.f32 %v4051, %v4052
    %v4054 = vadd.f32 %v4044, %v4053
    %4055 = vst [vmem:[#allocation15] sm:$0x1] %v4054
    // Predicated region
    $region46: #{tpu_custom_call.1} parent=1 // pred_check
      _
    $region47: #{tpu_custom_call.1} parent=1 // pred_check_branch
      %4057 = sbr.rel (0) target = $region49
    $region48: #{tpu_custom_call.1} parent=1 // pred_region
      %s4059 = ssub.s32 896, 896
      %4060 = vsyncadd [#allocation4], %s4059
      %s4061 = sshll.u32 [#allocation11], 4
      %s4062 = int_to_ptr.vmem [resolvable:$true] %s4061
      %4067 = dma.vmem_to_hbm [thread:$0]  %s4062, 896, %s5, [#allocation4], 448, 448, 28
    $region49: #{tpu_custom_call.1} parent=1 // pred_fallthru
      _
    // Predicated region
    $region50: #{tpu_custom_call.1} parent=1 // pred_check
      _
    $region51: #{tpu_custom_call.1} parent=1 // pred_check_branch
      %4069 = sbr.rel (0) target = $region53
    $region52: #{tpu_custom_call.1} parent=1 // pred_region
      %s4071 = ssub.s32 256, 256
      %4072 = vsyncadd [#allocation13], %s4071
      %s4073 = sshll.u32 [#allocation12], 4
      %s4074 = int_to_ptr.vmem [resolvable:$true] %s4073
      %4079 = dma.vmem_to_hbm [thread:$0]  %s4074, 256, %s6, [#allocation13], 128, 128, 8
    $region53: #{tpu_custom_call.1} parent=1 // pred_fallthru
      _
    // Predicated region
    $region54: #{tpu_custom_call.1} parent=1 // pred_check
      _
    $region55: #{tpu_custom_call.1} parent=1 // pred_check_branch
      %4081 = sbr.rel (0) target = $region57
    $region56: #{tpu_custom_call.1} parent=1 // pred_region
      %s4083 = ssub.s32 16, 16
      %4084 = vsyncadd [#allocation13], %s4083
      %s4086 = sshll.u32 [#allocation14], 4
      %s4087 = int_to_ptr.vmem [resolvable:$true] %s4086
      %4089 = dma.vmem_to_hbm [thread:$0]  %s4087, 16, %s7, [#allocation13]
    $region57: #{tpu_custom_call.1} parent=1 // pred_fallthru
      _
    // Predicated region
    $region58: #{tpu_custom_call.1} parent=1 // pred_check
      _
    $region59: #{tpu_custom_call.1} parent=1 // pred_check_branch
      %4091 = sbr.rel (0) target = $region61
    $region60: #{tpu_custom_call.1} parent=1 // pred_region
      %s4093 = ssub.s32 16, 16
      %4094 = vsyncadd [#allocation16], %s4093
      %s4096 = sshll.u32 [#allocation15], 4
      %s4097 = int_to_ptr.vmem [resolvable:$true] %s4096
      %4099 = dma.vmem_to_hbm [thread:$0]  %s4097, 16, %s8, [#allocation16]
    $region61: #{tpu_custom_call.1} parent=1 // pred_fallthru
      _
    // Predicated region
    $region62: #{tpu_custom_call.1} parent=1 // pred_check
      _
    $region63: #{tpu_custom_call.1} parent=1 // pred_check_branch
      %4101 = sbr.rel (0) target = $region65
    $region64: #{tpu_custom_call.1} parent=1 // pred_region
      %4102 = dma.done [#allocation4], 896
    $region65: #{tpu_custom_call.1} parent=1 // pred_fallthru
      _
    // Predicated region
    $region66: #{tpu_custom_call.1} parent=1 // pred_check
      _
    $region67: #{tpu_custom_call.1} parent=1 // pred_check_branch
      %4104 = sbr.rel (0) target = $region69
    $region68: #{tpu_custom_call.1} parent=1 // pred_region
      %4105 = dma.done [#allocation13], 256
    $region69: #{tpu_custom_call.1} parent=1 // pred_fallthru
      _
    // Predicated region
    $region70: #{tpu_custom_call.1} parent=1 // pred_check
      _
    $region71: #{tpu_custom_call.1} parent=1 // pred_check_branch
      %4107 = sbr.rel (0) target = $region73
    $region72: #{tpu_custom_call.1} parent=1 // pred_region
      %4108 = dma.done [#allocation13], 16
    $region73: #{tpu_custom_call.1} parent=1 // pred_fallthru
      _
    // Predicated region
    $region74: #{tpu_custom_call.1} parent=1 // pred_check
      _
    $region75: #{tpu_custom_call.1} parent=1 // pred_check_branch
      %4110 = sbr.rel (0) target = $region77
    $region76: #{tpu_custom_call.1} parent=1 // pred_region
      %4111 = dma.done [#allocation16], 16
    $region77: #{tpu_custom_call.1} parent=1 // pred_fallthru
      _
    %4112 = vsyncpa [#allocation3], 1
    %4113 = vsyncpa [#allocation6], 1
    %4114 = vsyncpa [#allocation9], 1
    %4115 = vsyncpa [#allocation4], 1
    %4116 = vsyncpa [#allocation13], 1
    %4117 = vsyncpa [#allocation16], 1

</llo_original>
